<compile_context>
chip_gen: v6e
topology: v6e:2x2x1
jax: 0.10.0
libtpu: 0.0.40
codegen_flags: <defaults>
</compile_context>

<pallas_src>
import functools

import jax
import jax.numpy as jnp
from jax import lax
from jax.experimental import pallas as pl
from jax.experimental.pallas import tpu as pltpu


def rnn_kernel(ids_ref, proj_ref, whh_ref, wfcb_ref, out_ref, pre_ref,
               *, seq, batch):
    """Single-invocation kernel: all operands resident in VMEM/SMEM.

    ids_ref  : (seq*batch,)         int32 SMEM  flattened token ids (row t*batch+b)
    proj_ref : (vocab, 1, hidden)   f32   VMEM  cached  E @ W_ih + (b_ih + b_hh)
    whh_ref  : (hidden, hidden)     f32   VMEM  transposed PyTorch weight_hh_l0
    wfcb_ref : (hidden+1, output)   f32   VMEM  rows [0:hidden] = fc.weight.T,
                                                row  [hidden]   = fc.bias
    out_ref  : (batch, output)      f32   VMEM  == fc(hidden.squeeze(0))
    pre_ref  : (seq, batch, hidden) f32   VMEM scratch: gathered pre-activations
    """
    vocab = proj_ref.shape[0]
    hidden = whh_ref.shape[0]

    # --- Embedding gather, off the serial chain ------------------------------
    #   pre[t, b, :] = proj[ids[t, b]]
    # Scalar-indexed row reads of the bias-folded projection table (no one-hot
    # matmul, no (seq*batch, vocab) intermediate).  pre is laid out
    # (seq, batch, hidden) so the per-step access below is a plain leading-dim
    # load rather than a sublane-offset slice.
    for t in range(seq):
        for b in range(batch):
            tok = ids_ref[t * batch + b]
            # Clamp out-of-range ids (PyTorch would raise; OOB VMEM reads are
            # silently wrong on TPU, so clamp defensively — scalar ALU, free).
            tok = jnp.minimum(jnp.maximum(tok, 0), vocab - 1)
            pre_ref[t, pl.ds(b, 1), :] = proj_ref[tok]          # (1, hidden)

    w_hh = whh_ref[...]                                          # load once

    # --- Fully-unrolled tanh recurrence (seq is static) ----------------------
    # Serial chain per step: h @ W_hh (MXU) + add (VPU) + tanh (EUP).
    h = jnp.zeros((batch, hidden), dtype=jnp.float32)
    for t in range(seq):
        h = jnp.tanh(pre_ref[t]
                     + jnp.dot(h, w_hh,
                               preferred_element_type=jnp.float32,
                               precision=lax.Precision.HIGHEST))

    # --- Final FC on the last hidden state ------------------------------------
    w_fc = wfcb_ref[pl.ds(0, hidden), :]                         # (hidden, output)
    b_fc = wfcb_ref[pl.ds(hidden, 1), :]                         # (1, output)
    out_ref[...] = (jnp.dot(h, w_fc,
                            preferred_element_type=jnp.float32,
                            precision=lax.Precision.HIGHEST)
                    + b_fc)


def rnn_forward(text, params):
    """text: (seq, batch) int32 token ids. Returns (batch, output_dim) logits."""
    seq, batch = text.shape
    proj = params["proj"]                    # (vocab, 1, hidden)  cached at init
    w_hh = params["w_hh"]                    # (hidden, hidden)
    w_fcb = params["w_fcb"]                  # (hidden+1, output)  cached at init

    vocab, _, hidden_dim = proj.shape
    output_dim = w_fcb.shape[1]

    # Flatten ids; row t*batch + b corresponds to token (t, b).  Lives in SMEM.
    ids = text.reshape(seq * batch).astype(jnp.int32)

    flops = (2 * seq * batch * hidden_dim * hidden_dim        # recurrence
             + 2 * batch * hidden_dim * output_dim)           # final FC
    transcendentals = seq * batch * hidden_dim                # tanh
    bytes_accessed = 4 * (seq * batch
                          + vocab * hidden_dim
                          + hidden_dim * hidden_dim
                          + (hidden_dim + 1) * output_dim
                          + batch * output_dim)

    vmem = pl.BlockSpec(memory_space=pltpu.MemorySpace.VMEM)
    smem = pl.BlockSpec(memory_space=pltpu.MemorySpace.SMEM)
    kernel = functools.partial(rnn_kernel, seq=seq, batch=batch)

    return pl.pallas_call(
        kernel,
        out_shape=jax.ShapeDtypeStruct((batch, output_dim), jnp.float32),
        in_specs=[smem, vmem, vmem, vmem],
        out_specs=vmem,
        scratch_shapes=[pltpu.VMEM((seq, batch, hidden_dim), jnp.float32)],
        cost_estimate=pl.CostEstimate(flops=flops,
                                      transcendentals=transcendentals,
                                      bytes_accessed=bytes_accessed),
    )(ids, proj, w_hh, w_fcb)


def init_params(key, vocab, embed_dim, hidden_dim, output_dim):
    """Deterministic synthetic parameter init (PyTorch-style uniform scales).

    Also caches the input-independent, bias-folded projection table and the
    packed fc weight+bias ONCE here (not per forward call), so the kernel sees
    the minimal operand set.
    """
    ks = jax.random.split(key, 7)
    k_rnn = 1.0 / jnp.sqrt(hidden_dim)
    u = lambda k, shape, s: jax.random.uniform(k, shape, jnp.float32, -s, s)
    p = {
        "embedding": jax.random.normal(ks[0], (vocab, embed_dim), jnp.float32),
        "w_ih": u(ks[1], (embed_dim, hidden_dim), k_rnn),
        "b_ih": u(ks[2], (1, hidden_dim), k_rnn),
        "w_hh": u(ks[3], (hidden_dim, hidden_dim), k_rnn),
        "b_hh": u(ks[4], (1, hidden_dim), k_rnn),
        "w_fc": u(ks[5], (hidden_dim, output_dim), k_rnn),
        "b_fc": u(ks[6], (1, output_dim), k_rnn),
    }
    # proj[v] = E[v] @ W_ih + (b_ih + b_hh), computed once; (vocab, 1, hidden)
    # so the kernel can dynamically index the leading axis per token.
    proj = (jnp.dot(p["embedding"], p["w_ih"],
                    precision=lax.Precision.HIGHEST,
                    preferred_element_type=jnp.float32)
            + (p["b_ih"] + p["b_hh"]))
    p["proj"] = proj.reshape(vocab, 1, hidden_dim)
    # Pack fc weight (transposed) and bias into one operand.
    p["w_fcb"] = jnp.concatenate([p["w_fc"], p["b_fc"]], axis=0)
    return p


if __name__ == "__main__":
    # Small shapes consistent with the module's forward:
    #   input_dim (vocab)=50, embedding_dim=16, hidden_dim=32, output_dim=4
    #   text: (seq_len=8, batch=2) int token ids.
    vocab, embed_dim, hidden_dim, output_dim = 50, 16, 32, 4
    seq_len, batch = 8, 2

    key = jax.random.PRNGKey(0)
    k_text, k_params = jax.random.split(key)

    text = jax.random.randint(k_text, (seq_len, batch), 0, vocab, jnp.int32)
    params = init_params(k_params, vocab, embed_dim, hidden_dim, output_dim)

    logits = rnn_forward(text, params)
    jax.block_until_ready(logits)

    # Pure-JAX reference of the same math, from the RAW (un-folded) parameters:
    # embedding lookup -> tanh RNN -> fc.  Cross-validates the cached folding.
    dot = functools.partial(jnp.dot, precision=lax.Precision.HIGHEST)
    emb = jnp.take(params["embedding"], text, axis=0)        # (seq, batch, embed)
    h = jnp.zeros((batch, hidden_dim), jnp.float32)
    for t in range(seq_len):
        h = jnp.tanh(dot(emb[t], params["w_ih"]) + params["b_ih"]
                     + dot(h, params["w_hh"]) + params["b_hh"])
    ref = dot(h, params["w_fc"]) + params["b_fc"]

    assert jnp.allclose(logits, ref, atol=1e-4, rtol=1e-4), (
        f"mismatch: max abs err {jnp.max(jnp.abs(logits - ref))}")

    print("KERNEL_OK")
</pallas_src>

<mosaic_0001>
module attributes {stable_mosaic.version = 11 : i64} {
  func.func @rnn_kernel(%arg0: memref<16xi32, #tpu.memory_space<smem>>, %arg1: memref<50x1x32xf32, #tpu.memory_space<vmem>>, %arg2: memref<32x32xf32, #tpu.memory_space<vmem>>, %arg3: memref<33x4xf32, #tpu.memory_space<vmem>>, %arg4: memref<2x4xf32, #tpu.memory_space<vmem>>, %arg5: memref<8x2x32xf32, #tpu.memory_space<vmem>>) attributes {dimension_semantics = [], scalar_prefetch = 0 : i64, scratch_operands = 1 : i64, tpu.core_type = #tpu.core_type<tc>} {
    %c0 = arith.constant 0 : index
    %0 = memref.load %arg0[%c0] : memref<16xi32, #tpu.memory_space<smem>>
    %c0_i32 = arith.constant 0 : i32
    %1 = arith.maxsi %0, %c0_i32 : i32
    %c49_i32 = arith.constant 49 : i32
    %2 = arith.minsi %1, %c49_i32 : i32
    %3 = arith.index_cast %2 : i32 to index
    %c0_0 = arith.constant 0 : index
    %c0_1 = arith.constant 0 : index
    %4 = vector.load %arg1[%3, %c0_0, %c0_1] : memref<50x1x32xf32, #tpu.memory_space<vmem>>, vector<1x1x32xf32>
    %5 = vector.shape_cast %4 : vector<1x1x32xf32> to vector<1x32xf32>
    %c0_2 = arith.constant 0 : index
    %c0_3 = arith.constant 0 : index
    %c0_4 = arith.constant 0 : index
    %6 = vector.load %arg5[%c0_2, %c0_3, %c0_4] : memref<8x2x32xf32, #tpu.memory_space<vmem>>, vector<1x1x32xf32>
    %7 = vector.shape_cast %6 : vector<1x1x32xf32> to vector<1x32xf32>
    %8 = vector.shape_cast %5 : vector<1x32xf32> to vector<1x1x32xf32>
    tpu.vector_store %arg5[%c0_2, %c0_3, %c0_4], %8 {strides = array<i32>} : memref<8x2x32xf32, #tpu.memory_space<vmem>>, vector<1x1x32xf32>,
    %c1 = arith.constant 1 : index
    %9 = memref.load %arg0[%c1] : memref<16xi32, #tpu.memory_space<smem>>
    %c0_i32_5 = arith.constant 0 : i32
    %10 = arith.maxsi %9, %c0_i32_5 : i32
    %c49_i32_6 = arith.constant 49 : i32
    %11 = arith.minsi %10, %c49_i32_6 : i32
    %12 = arith.index_cast %11 : i32 to index
    %c0_7 = arith.constant 0 : index
    %c0_8 = arith.constant 0 : index
    %13 = vector.load %arg1[%12, %c0_7, %c0_8] : memref<50x1x32xf32, #tpu.memory_space<vmem>>, vector<1x1x32xf32>
    %14 = vector.shape_cast %13 : vector<1x1x32xf32> to vector<1x32xf32>
    %c0_9 = arith.constant 0 : index
    %c1_10 = arith.constant 1 : index
    %c0_11 = arith.constant 0 : index
    %15 = vector.load %arg5[%c0_9, %c1_10, %c0_11] : memref<8x2x32xf32, #tpu.memory_space<vmem>>, vector<1x1x32xf32>
    %16 = vector.shape_cast %15 : vector<1x1x32xf32> to vector<1x32xf32>
    %17 = vector.shape_cast %14 : vector<1x32xf32> to vector<1x1x32xf32>
    tpu.vector_store %arg5[%c0_9, %c1_10, %c0_11], %17 {strides = array<i32>} : memref<8x2x32xf32, #tpu.memory_space<vmem>>, vector<1x1x32xf32>,
    %c2 = arith.constant 2 : index
    %18 = memref.load %arg0[%c2] : memref<16xi32, #tpu.memory_space<smem>>
    %c0_i32_12 = arith.constant 0 : i32
    %19 = arith.maxsi %18, %c0_i32_12 : i32
    %c49_i32_13 = arith.constant 49 : i32
    %20 = arith.minsi %19, %c49_i32_13 : i32
    %21 = arith.index_cast %20 : i32 to index
    %c0_14 = arith.constant 0 : index
    %c0_15 = arith.constant 0 : index
    %22 = vector.load %arg1[%21, %c0_14, %c0_15] : memref<50x1x32xf32, #tpu.memory_space<vmem>>, vector<1x1x32xf32>
    %23 = vector.shape_cast %22 : vector<1x1x32xf32> to vector<1x32xf32>
    %c1_16 = arith.constant 1 : index
    %c0_17 = arith.constant 0 : index
    %c0_18 = arith.constant 0 : index
    %24 = vector.load %arg5[%c1_16, %c0_17, %c0_18] : memref<8x2x32xf32, #tpu.memory_space<vmem>>, vector<1x1x32xf32>
    %25 = vector.shape_cast %24 : vector<1x1x32xf32> to vector<1x32xf32>
    %26 = vector.shape_cast %23 : vector<1x32xf32> to vector<1x1x32xf32>
    tpu.vector_store %arg5[%c1_16, %c0_17, %c0_18], %26 {strides = array<i32>} : memref<8x2x32xf32, #tpu.memory_space<vmem>>, vector<1x1x32xf32>,
    %c3 = arith.constant 3 : index
    %27 = memref.load %arg0[%c3] : memref<16xi32, #tpu.memory_space<smem>>
    %c0_i32_19 = arith.constant 0 : i32
    %28 = arith.maxsi %27, %c0_i32_19 : i32
    %c49_i32_20 = arith.constant 49 : i32
    %29 = arith.minsi %28, %c49_i32_20 : i32
    %30 = arith.index_cast %29 : i32 to index
    %c0_21 = arith.constant 0 : index
    %c0_22 = arith.constant 0 : index
    %31 = vector.load %arg1[%30, %c0_21, %c0_22] : memref<50x1x32xf32, #tpu.memory_space<vmem>>, vector<1x1x32xf32>
    %32 = vector.shape_cast %31 : vector<1x1x32xf32> to vector<1x32xf32>
    %c1_23 = arith.constant 1 : index
    %c1_24 = arith.constant 1 : index
    %c0_25 = arith.constant 0 : index
    %33 = vector.load %arg5[%c1_23, %c1_24, %c0_25] : memref<8x2x32xf32, #tpu.memory_space<vmem>>, vector<1x1x32xf32>
    %34 = vector.shape_cast %33 : vector<1x1x32xf32> to vector<1x32xf32>
    %35 = vector.shape_cast %32 : vector<1x32xf32> to vector<1x1x32xf32>
    tpu.vector_store %arg5[%c1_23, %c1_24, %c0_25], %35 {strides = array<i32>} : memref<8x2x32xf32, #tpu.memory_space<vmem>>, vector<1x1x32xf32>,
    %c4 = arith.constant 4 : index
    %36 = memref.load %arg0[%c4] : memref<16xi32, #tpu.memory_space<smem>>
    %c0_i32_26 = arith.constant 0 : i32
    %37 = arith.maxsi %36, %c0_i32_26 : i32
    %c49_i32_27 = arith.constant 49 : i32
    %38 = arith.minsi %37, %c49_i32_27 : i32
    %39 = arith.index_cast %38 : i32 to index
    %c0_28 = arith.constant 0 : index
    %c0_29 = arith.constant 0 : index
    %40 = vector.load %arg1[%39, %c0_28, %c0_29] : memref<50x1x32xf32, #tpu.memory_space<vmem>>, vector<1x1x32xf32>
    %41 = vector.shape_cast %40 : vector<1x1x32xf32> to vector<1x32xf32>
    %c2_30 = arith.constant 2 : index
    %c0_31 = arith.constant 0 : index
    %c0_32 = arith.constant 0 : index
    %42 = vector.load %arg5[%c2_30, %c0_31, %c0_32] : memref<8x2x32xf32, #tpu.memory_space<vmem>>, vector<1x1x32xf32>
    %43 = vector.shape_cast %42 : vector<1x1x32xf32> to vector<1x32xf32>
    %44 = vector.shape_cast %41 : vector<1x32xf32> to vector<1x1x32xf32>
    tpu.vector_store %arg5[%c2_30, %c0_31, %c0_32], %44 {strides = array<i32>} : memref<8x2x32xf32, #tpu.memory_space<vmem>>, vector<1x1x32xf32>,
    %c5 = arith.constant 5 : index
    %45 = memref.load %arg0[%c5] : memref<16xi32, #tpu.memory_space<smem>>
    %c0_i32_33 = arith.constant 0 : i32
    %46 = arith.maxsi %45, %c0_i32_33 : i32
    %c49_i32_34 = arith.constant 49 : i32
    %47 = arith.minsi %46, %c49_i32_34 : i32
    %48 = arith.index_cast %47 : i32 to index
    %c0_35 = arith.constant 0 : index
    %c0_36 = arith.constant 0 : index
    %49 = vector.load %arg1[%48, %c0_35, %c0_36] : memref<50x1x32xf32, #tpu.memory_space<vmem>>, vector<1x1x32xf32>
    %50 = vector.shape_cast %49 : vector<1x1x32xf32> to vector<1x32xf32>
    %c2_37 = arith.constant 2 : index
    %c1_38 = arith.constant 1 : index
    %c0_39 = arith.constant 0 : index
    %51 = vector.load %arg5[%c2_37, %c1_38, %c0_39] : memref<8x2x32xf32, #tpu.memory_space<vmem>>, vector<1x1x32xf32>
    %52 = vector.shape_cast %51 : vector<1x1x32xf32> to vector<1x32xf32>
    %53 = vector.shape_cast %50 : vector<1x32xf32> to vector<1x1x32xf32>
    tpu.vector_store %arg5[%c2_37, %c1_38, %c0_39], %53 {strides = array<i32>} : memref<8x2x32xf32, #tpu.memory_space<vmem>>, vector<1x1x32xf32>,
    %c6 = arith.constant 6 : index
    %54 = memref.load %arg0[%c6] : memref<16xi32, #tpu.memory_space<smem>>
    %c0_i32_40 = arith.constant 0 : i32
    %55 = arith.maxsi %54, %c0_i32_40 : i32
    %c49_i32_41 = arith.constant 49 : i32
    %56 = arith.minsi %55, %c49_i32_41 : i32
    %57 = arith.index_cast %56 : i32 to index
    %c0_42 = arith.constant 0 : index
    %c0_43 = arith.constant 0 : index
    %58 = vector.load %arg1[%57, %c0_42, %c0_43] : memref<50x1x32xf32, #tpu.memory_space<vmem>>, vector<1x1x32xf32>
    %59 = vector.shape_cast %58 : vector<1x1x32xf32> to vector<1x32xf32>
    %c3_44 = arith.constant 3 : index
    %c0_45 = arith.constant 0 : index
    %c0_46 = arith.constant 0 : index
    %60 = vector.load %arg5[%c3_44, %c0_45, %c0_46] : memref<8x2x32xf32, #tpu.memory_space<vmem>>, vector<1x1x32xf32>
    %61 = vector.shape_cast %60 : vector<1x1x32xf32> to vector<1x32xf32>
    %62 = vector.shape_cast %59 : vector<1x32xf32> to vector<1x1x32xf32>
    tpu.vector_store %arg5[%c3_44, %c0_45, %c0_46], %62 {strides = array<i32>} : memref<8x2x32xf32, #tpu.memory_space<vmem>>, vector<1x1x32xf32>,
    %c7 = arith.constant 7 : index
    %63 = memref.load %arg0[%c7] : memref<16xi32, #tpu.memory_space<smem>>
    %c0_i32_47 = arith.constant 0 : i32
    %64 = arith.maxsi %63, %c0_i32_47 : i32
    %c49_i32_48 = arith.constant 49 : i32
    %65 = arith.minsi %64, %c49_i32_48 : i32
    %66 = arith.index_cast %65 : i32 to index
    %c0_49 = arith.constant 0 : index
    %c0_50 = arith.constant 0 : index
    %67 = vector.load %arg1[%66, %c0_49, %c0_50] : memref<50x1x32xf32, #tpu.memory_space<vmem>>, vector<1x1x32xf32>
    %68 = vector.shape_cast %67 : vector<1x1x32xf32> to vector<1x32xf32>
    %c3_51 = arith.constant 3 : index
    %c1_52 = arith.constant 1 : index
    %c0_53 = arith.constant 0 : index
    %69 = vector.load %arg5[%c3_51, %c1_52, %c0_53] : memref<8x2x32xf32, #tpu.memory_space<vmem>>, vector<1x1x32xf32>
    %70 = vector.shape_cast %69 : vector<1x1x32xf32> to vector<1x32xf32>
    %71 = vector.shape_cast %68 : vector<1x32xf32> to vector<1x1x32xf32>
    tpu.vector_store %arg5[%c3_51, %c1_52, %c0_53], %71 {strides = array<i32>} : memref<8x2x32xf32, #tpu.memory_space<vmem>>, vector<1x1x32xf32>,
    %c8 = arith.constant 8 : index
    %72 = memref.load %arg0[%c8] : memref<16xi32, #tpu.memory_space<smem>>
    %c0_i32_54 = arith.constant 0 : i32
    %73 = arith.maxsi %72, %c0_i32_54 : i32
    %c49_i32_55 = arith.constant 49 : i32
    %74 = arith.minsi %73, %c49_i32_55 : i32
    %75 = arith.index_cast %74 : i32 to index
    %c0_56 = arith.constant 0 : index
    %c0_57 = arith.constant 0 : index
    %76 = vector.load %arg1[%75, %c0_56, %c0_57] : memref<50x1x32xf32, #tpu.memory_space<vmem>>, vector<1x1x32xf32>
    %77 = vector.shape_cast %76 : vector<1x1x32xf32> to vector<1x32xf32>
    %c4_58 = arith.constant 4 : index
    %c0_59 = arith.constant 0 : index
    %c0_60 = arith.constant 0 : index
    %78 = vector.load %arg5[%c4_58, %c0_59, %c0_60] : memref<8x2x32xf32, #tpu.memory_space<vmem>>, vector<1x1x32xf32>
    %79 = vector.shape_cast %78 : vector<1x1x32xf32> to vector<1x32xf32>
    %80 = vector.shape_cast %77 : vector<1x32xf32> to vector<1x1x32xf32>
    tpu.vector_store %arg5[%c4_58, %c0_59, %c0_60], %80 {strides = array<i32>} : memref<8x2x32xf32, #tpu.memory_space<vmem>>, vector<1x1x32xf32>,
    %c9 = arith.constant 9 : index
    %81 = memref.load %arg0[%c9] : memref<16xi32, #tpu.memory_space<smem>>
    %c0_i32_61 = arith.constant 0 : i32
    %82 = arith.maxsi %81, %c0_i32_61 : i32
    %c49_i32_62 = arith.constant 49 : i32
    %83 = arith.minsi %82, %c49_i32_62 : i32
    %84 = arith.index_cast %83 : i32 to index
    %c0_63 = arith.constant 0 : index
    %c0_64 = arith.constant 0 : index
    %85 = vector.load %arg1[%84, %c0_63, %c0_64] : memref<50x1x32xf32, #tpu.memory_space<vmem>>, vector<1x1x32xf32>
    %86 = vector.shape_cast %85 : vector<1x1x32xf32> to vector<1x32xf32>
    %c4_65 = arith.constant 4 : index
    %c1_66 = arith.constant 1 : index
    %c0_67 = arith.constant 0 : index
    %87 = vector.load %arg5[%c4_65, %c1_66, %c0_67] : memref<8x2x32xf32, #tpu.memory_space<vmem>>, vector<1x1x32xf32>
    %88 = vector.shape_cast %87 : vector<1x1x32xf32> to vector<1x32xf32>
    %89 = vector.shape_cast %86 : vector<1x32xf32> to vector<1x1x32xf32>
    tpu.vector_store %arg5[%c4_65, %c1_66, %c0_67], %89 {strides = array<i32>} : memref<8x2x32xf32, #tpu.memory_space<vmem>>, vector<1x1x32xf32>,
    %c10 = arith.constant 10 : index
    %90 = memref.load %arg0[%c10] : memref<16xi32, #tpu.memory_space<smem>>
    %c0_i32_68 = arith.constant 0 : i32
    %91 = arith.maxsi %90, %c0_i32_68 : i32
    %c49_i32_69 = arith.constant 49 : i32
    %92 = arith.minsi %91, %c49_i32_69 : i32
    %93 = arith.index_cast %92 : i32 to index
    %c0_70 = arith.constant 0 : index
    %c0_71 = arith.constant 0 : index
    %94 = vector.load %arg1[%93, %c0_70, %c0_71] : memref<50x1x32xf32, #tpu.memory_space<vmem>>, vector<1x1x32xf32>
    %95 = vector.shape_cast %94 : vector<1x1x32xf32> to vector<1x32xf32>
    %c5_72 = arith.constant 5 : index
    %c0_73 = arith.constant 0 : index
    %c0_74 = arith.constant 0 : index
    %96 = vector.load %arg5[%c5_72, %c0_73, %c0_74] : memref<8x2x32xf32, #tpu.memory_space<vmem>>, vector<1x1x32xf32>
    %97 = vector.shape_cast %96 : vector<1x1x32xf32> to vector<1x32xf32>
    %98 = vector.shape_cast %95 : vector<1x32xf32> to vector<1x1x32xf32>
    tpu.vector_store %arg5[%c5_72, %c0_73, %c0_74], %98 {strides = array<i32>} : memref<8x2x32xf32, #tpu.memory_space<vmem>>, vector<1x1x32xf32>,
    %c11 = arith.constant 11 : index
    %99 = memref.load %arg0[%c11] : memref<16xi32, #tpu.memory_space<smem>>
    %c0_i32_75 = arith.constant 0 : i32
    %100 = arith.maxsi %99, %c0_i32_75 : i32
    %c49_i32_76 = arith.constant 49 : i32
    %101 = arith.minsi %100, %c49_i32_76 : i32
    %102 = arith.index_cast %101 : i32 to index
    %c0_77 = arith.constant 0 : index
    %c0_78 = arith.constant 0 : index
    %103 = vector.load %arg1[%102, %c0_77, %c0_78] : memref<50x1x32xf32, #tpu.memory_space<vmem>>, vector<1x1x32xf32>
    %104 = vector.shape_cast %103 : vector<1x1x32xf32> to vector<1x32xf32>
    %c5_79 = arith.constant 5 : index
    %c1_80 = arith.constant 1 : index
    %c0_81 = arith.constant 0 : index
    %105 = vector.load %arg5[%c5_79, %c1_80, %c0_81] : memref<8x2x32xf32, #tpu.memory_space<vmem>>, vector<1x1x32xf32>
    %106 = vector.shape_cast %105 : vector<1x1x32xf32> to vector<1x32xf32>
    %107 = vector.shape_cast %104 : vector<1x32xf32> to vector<1x1x32xf32>
    tpu.vector_store %arg5[%c5_79, %c1_80, %c0_81], %107 {strides = array<i32>} : memref<8x2x32xf32, #tpu.memory_space<vmem>>, vector<1x1x32xf32>,
    %c12 = arith.constant 12 : index
    %108 = memref.load %arg0[%c12] : memref<16xi32, #tpu.memory_space<smem>>
    %c0_i32_82 = arith.constant 0 : i32
    %109 = arith.maxsi %108, %c0_i32_82 : i32
    %c49_i32_83 = arith.constant 49 : i32
    %110 = arith.minsi %109, %c49_i32_83 : i32
    %111 = arith.index_cast %110 : i32 to index
    %c0_84 = arith.constant 0 : index
    %c0_85 = arith.constant 0 : index
    %112 = vector.load %arg1[%111, %c0_84, %c0_85] : memref<50x1x32xf32, #tpu.memory_space<vmem>>, vector<1x1x32xf32>
    %113 = vector.shape_cast %112 : vector<1x1x32xf32> to vector<1x32xf32>
    %c6_86 = arith.constant 6 : index
    %c0_87 = arith.constant 0 : index
    %c0_88 = arith.constant 0 : index
    %114 = vector.load %arg5[%c6_86, %c0_87, %c0_88] : memref<8x2x32xf32, #tpu.memory_space<vmem>>, vector<1x1x32xf32>
    %115 = vector.shape_cast %114 : vector<1x1x32xf32> to vector<1x32xf32>
    %116 = vector.shape_cast %113 : vector<1x32xf32> to vector<1x1x32xf32>
    tpu.vector_store %arg5[%c6_86, %c0_87, %c0_88], %116 {strides = array<i32>} : memref<8x2x32xf32, #tpu.memory_space<vmem>>, vector<1x1x32xf32>,
    %c13 = arith.constant 13 : index
    %117 = memref.load %arg0[%c13] : memref<16xi32, #tpu.memory_space<smem>>
    %c0_i32_89 = arith.constant 0 : i32
    %118 = arith.maxsi %117, %c0_i32_89 : i32
    %c49_i32_90 = arith.constant 49 : i32
    %119 = arith.minsi %118, %c49_i32_90 : i32
    %120 = arith.index_cast %119 : i32 to index
    %c0_91 = arith.constant 0 : index
    %c0_92 = arith.constant 0 : index
    %121 = vector.load %arg1[%120, %c0_91, %c0_92] : memref<50x1x32xf32, #tpu.memory_space<vmem>>, vector<1x1x32xf32>
    %122 = vector.shape_cast %121 : vector<1x1x32xf32> to vector<1x32xf32>
    %c6_93 = arith.constant 6 : index
    %c1_94 = arith.constant 1 : index
    %c0_95 = arith.constant 0 : index
    %123 = vector.load %arg5[%c6_93, %c1_94, %c0_95] : memref<8x2x32xf32, #tpu.memory_space<vmem>>, vector<1x1x32xf32>
    %124 = vector.shape_cast %123 : vector<1x1x32xf32> to vector<1x32xf32>
    %125 = vector.shape_cast %122 : vector<1x32xf32> to vector<1x1x32xf32>
    tpu.vector_store %arg5[%c6_93, %c1_94, %c0_95], %125 {strides = array<i32>} : memref<8x2x32xf32, #tpu.memory_space<vmem>>, vector<1x1x32xf32>,
    %c14 = arith.constant 14 : index
    %126 = memref.load %arg0[%c14] : memref<16xi32, #tpu.memory_space<smem>>
    %c0_i32_96 = arith.constant 0 : i32
    %127 = arith.maxsi %126, %c0_i32_96 : i32
    %c49_i32_97 = arith.constant 49 : i32
    %128 = arith.minsi %127, %c49_i32_97 : i32
    %129 = arith.index_cast %128 : i32 to index
    %c0_98 = arith.constant 0 : index
    %c0_99 = arith.constant 0 : index
    %130 = vector.load %arg1[%129, %c0_98, %c0_99] : memref<50x1x32xf32, #tpu.memory_space<vmem>>, vector<1x1x32xf32>
    %131 = vector.shape_cast %130 : vector<1x1x32xf32> to vector<1x32xf32>
    %c7_100 = arith.constant 7 : index
    %c0_101 = arith.constant 0 : index
    %c0_102 = arith.constant 0 : index
    %132 = vector.load %arg5[%c7_100, %c0_101, %c0_102] : memref<8x2x32xf32, #tpu.memory_space<vmem>>, vector<1x1x32xf32>
    %133 = vector.shape_cast %132 : vector<1x1x32xf32> to vector<1x32xf32>
    %134 = vector.shape_cast %131 : vector<1x32xf32> to vector<1x1x32xf32>
    tpu.vector_store %arg5[%c7_100, %c0_101, %c0_102], %134 {strides = array<i32>} : memref<8x2x32xf32, #tpu.memory_space<vmem>>, vector<1x1x32xf32>,
    %c15 = arith.constant 15 : index
    %135 = memref.load %arg0[%c15] : memref<16xi32, #tpu.memory_space<smem>>
    %c0_i32_103 = arith.constant 0 : i32
    %136 = arith.maxsi %135, %c0_i32_103 : i32
    %c49_i32_104 = arith.constant 49 : i32
    %137 = arith.minsi %136, %c49_i32_104 : i32
    %138 = arith.index_cast %137 : i32 to index
    %c0_105 = arith.constant 0 : index
    %c0_106 = arith.constant 0 : index
    %139 = vector.load %arg1[%138, %c0_105, %c0_106] : memref<50x1x32xf32, #tpu.memory_space<vmem>>, vector<1x1x32xf32>
    %140 = vector.shape_cast %139 : vector<1x1x32xf32> to vector<1x32xf32>
    %c7_107 = arith.constant 7 : index
    %c1_108 = arith.constant 1 : index
    %c0_109 = arith.constant 0 : index
    %141 = vector.load %arg5[%c7_107, %c1_108, %c0_109] : memref<8x2x32xf32, #tpu.memory_space<vmem>>, vector<1x1x32xf32>
    %142 = vector.shape_cast %141 : vector<1x1x32xf32> to vector<1x32xf32>
    %143 = vector.shape_cast %140 : vector<1x32xf32> to vector<1x1x32xf32>
    tpu.vector_store %arg5[%c7_107, %c1_108, %c0_109], %143 {strides = array<i32>} : memref<8x2x32xf32, #tpu.memory_space<vmem>>, vector<1x1x32xf32>,
    %c0_110 = arith.constant 0 : index
    %c0_111 = arith.constant 0 : index
    %144 = vector.load %arg2[%c0_110, %c0_111] : memref<32x32xf32, #tpu.memory_space<vmem>>, vector<32x32xf32>
    %cst = arith.constant 0.000000e+00 : f32
    %145 = vector.broadcast %cst : f32 to vector<2x32xf32>
    %c0_112 = arith.constant 0 : index
    %c0_113 = arith.constant 0 : index
    %c0_114 = arith.constant 0 : index
    %146 = vector.load %arg5[%c0_112, %c0_113, %c0_114] : memref<8x2x32xf32, #tpu.memory_space<vmem>>, vector<1x2x32xf32>
    %147 = vector.shape_cast %146 : vector<1x2x32xf32> to vector<2x32xf32>
    %cst_115 = arith.constant dense<0.000000e+00> : vector<2x32xf32>
    %148 = tpu.matmul %145, %144, %cst_115 {dimension_numbers = #tpu.dot_dimension_numbers<[1], [0], [0], [1], [0, 0, 1, 1], [], []>, precision = #tpu.contract_precision<fp32>} : vector<2x32xf32>, vector<32x32xf32>, vector<2x32xf32> -> vector<2x32xf32>
    %149 = arith.addf %147, %148 : vector<2x32xf32>
    %150 = math.tanh %149 : vector<2x32xf32>
    %c1_116 = arith.constant 1 : index
    %c0_117 = arith.constant 0 : index
    %c0_118 = arith.constant 0 : index
    %151 = vector.load %arg5[%c1_116, %c0_117, %c0_118] : memref<8x2x32xf32, #tpu.memory_space<vmem>>, vector<1x2x32xf32>
    %152 = vector.shape_cast %151 : vector<1x2x32xf32> to vector<2x32xf32>
    %cst_119 = arith.constant dense<0.000000e+00> : vector<2x32xf32>
    %153 = tpu.matmul %150, %144, %cst_119 {dimension_numbers = #tpu.dot_dimension_numbers<[1], [0], [0], [1], [0, 0, 1, 1], [], []>, precision = #tpu.contract_precision<fp32>} : vector<2x32xf32>, vector<32x32xf32>, vector<2x32xf32> -> vector<2x32xf32>
    %154 = arith.addf %152, %153 : vector<2x32xf32>
    %155 = math.tanh %154 : vector<2x32xf32>
    %c2_120 = arith.constant 2 : index
    %c0_121 = arith.constant 0 : index
    %c0_122 = arith.constant 0 : index
    %156 = vector.load %arg5[%c2_120, %c0_121, %c0_122] : memref<8x2x32xf32, #tpu.memory_space<vmem>>, vector<1x2x32xf32>
    %157 = vector.shape_cast %156 : vector<1x2x32xf32> to vector<2x32xf32>
    %cst_123 = arith.constant dense<0.000000e+00> : vector<2x32xf32>
    %158 = tpu.matmul %155, %144, %cst_123 {dimension_numbers = #tpu.dot_dimension_numbers<[1], [0], [0], [1], [0, 0, 1, 1], [], []>, precision = #tpu.contract_precision<fp32>} : vector<2x32xf32>, vector<32x32xf32>, vector<2x32xf32> -> vector<2x32xf32>
    %159 = arith.addf %157, %158 : vector<2x32xf32>
    %160 = math.tanh %159 : vector<2x32xf32>
    %c3_124 = arith.constant 3 : index
    %c0_125 = arith.constant 0 : index
    %c0_126 = arith.constant 0 : index
    %161 = vector.load %arg5[%c3_124, %c0_125, %c0_126] : memref<8x2x32xf32, #tpu.memory_space<vmem>>, vector<1x2x32xf32>
    %162 = vector.shape_cast %161 : vector<1x2x32xf32> to vector<2x32xf32>
    %cst_127 = arith.constant dense<0.000000e+00> : vector<2x32xf32>
    %163 = tpu.matmul %160, %144, %cst_127 {dimension_numbers = #tpu.dot_dimension_numbers<[1], [0], [0], [1], [0, 0, 1, 1], [], []>, precision = #tpu.contract_precision<fp32>} : vector<2x32xf32>, vector<32x32xf32>, vector<2x32xf32> -> vector<2x32xf32>
    %164 = arith.addf %162, %163 : vector<2x32xf32>
    %165 = math.tanh %164 : vector<2x32xf32>
    %c4_128 = arith.constant 4 : index
    %c0_129 = arith.constant 0 : index
    %c0_130 = arith.constant 0 : index
    %166 = vector.load %arg5[%c4_128, %c0_129, %c0_130] : memref<8x2x32xf32, #tpu.memory_space<vmem>>, vector<1x2x32xf32>
    %167 = vector.shape_cast %166 : vector<1x2x32xf32> to vector<2x32xf32>
    %cst_131 = arith.constant dense<0.000000e+00> : vector<2x32xf32>
    %168 = tpu.matmul %165, %144, %cst_131 {dimension_numbers = #tpu.dot_dimension_numbers<[1], [0], [0], [1], [0, 0, 1, 1], [], []>, precision = #tpu.contract_precision<fp32>} : vector<2x32xf32>, vector<32x32xf32>, vector<2x32xf32> -> vector<2x32xf32>
    %169 = arith.addf %167, %168 : vector<2x32xf32>
    %170 = math.tanh %169 : vector<2x32xf32>
    %c5_132 = arith.constant 5 : index
    %c0_133 = arith.constant 0 : index
    %c0_134 = arith.constant 0 : index
    %171 = vector.load %arg5[%c5_132, %c0_133, %c0_134] : memref<8x2x32xf32, #tpu.memory_space<vmem>>, vector<1x2x32xf32>
    %172 = vector.shape_cast %171 : vector<1x2x32xf32> to vector<2x32xf32>
    %cst_135 = arith.constant dense<0.000000e+00> : vector<2x32xf32>
    %173 = tpu.matmul %170, %144, %cst_135 {dimension_numbers = #tpu.dot_dimension_numbers<[1], [0], [0], [1], [0, 0, 1, 1], [], []>, precision = #tpu.contract_precision<fp32>} : vector<2x32xf32>, vector<32x32xf32>, vector<2x32xf32> -> vector<2x32xf32>
    %174 = arith.addf %172, %173 : vector<2x32xf32>
    %175 = math.tanh %174 : vector<2x32xf32>
    %c6_136 = arith.constant 6 : index
    %c0_137 = arith.constant 0 : index
    %c0_138 = arith.constant 0 : index
    %176 = vector.load %arg5[%c6_136, %c0_137, %c0_138] : memref<8x2x32xf32, #tpu.memory_space<vmem>>, vector<1x2x32xf32>
    %177 = vector.shape_cast %176 : vector<1x2x32xf32> to vector<2x32xf32>
    %cst_139 = arith.constant dense<0.000000e+00> : vector<2x32xf32>
    %178 = tpu.matmul %175, %144, %cst_139 {dimension_numbers = #tpu.dot_dimension_numbers<[1], [0], [0], [1], [0, 0, 1, 1], [], []>, precision = #tpu.contract_precision<fp32>} : vector<2x32xf32>, vector<32x32xf32>, vector<2x32xf32> -> vector<2x32xf32>
    %179 = arith.addf %177, %178 : vector<2x32xf32>
    %180 = math.tanh %179 : vector<2x32xf32>
    %c7_140 = arith.constant 7 : index
    %c0_141 = arith.constant 0 : index
    %c0_142 = arith.constant 0 : index
    %181 = vector.load %arg5[%c7_140, %c0_141, %c0_142] : memref<8x2x32xf32, #tpu.memory_space<vmem>>, vector<1x2x32xf32>
    %182 = vector.shape_cast %181 : vector<1x2x32xf32> to vector<2x32xf32>
    %cst_143 = arith.constant dense<0.000000e+00> : vector<2x32xf32>
    %183 = tpu.matmul %180, %144, %cst_143 {dimension_numbers = #tpu.dot_dimension_numbers<[1], [0], [0], [1], [0, 0, 1, 1], [], []>, precision = #tpu.contract_precision<fp32>} : vector<2x32xf32>, vector<32x32xf32>, vector<2x32xf32> -> vector<2x32xf32>
    %184 = arith.addf %182, %183 : vector<2x32xf32>
    %185 = math.tanh %184 : vector<2x32xf32>
    %c0_144 = arith.constant 0 : index
    %c0_145 = arith.constant 0 : index
    %186 = vector.load %arg3[%c0_144, %c0_145] : memref<33x4xf32, #tpu.memory_space<vmem>>, vector<32x4xf32>
    %c32 = arith.constant 32 : index
    %c0_146 = arith.constant 0 : index
    %187 = vector.load %arg3[%c32, %c0_146] : memref<33x4xf32, #tpu.memory_space<vmem>>, vector<1x4xf32>
    %cst_147 = arith.constant dense<0.000000e+00> : vector<2x4xf32>
    %188 = tpu.matmul %185, %186, %cst_147 {dimension_numbers = #tpu.dot_dimension_numbers<[1], [0], [0], [1], [0, 0, 1, 1], [], []>, precision = #tpu.contract_precision<fp32>} : vector<2x32xf32>, vector<32x4xf32>, vector<2x4xf32> -> vector<2x4xf32>
    %189 = vector.broadcast %187 : vector<1x4xf32> to vector<2x4xf32>
    %190 = arith.addf %188, %189 : vector<2x4xf32>
    %c0_148 = arith.constant 0 : index
    %c0_149 = arith.constant 0 : index
    %191 = vector.load %arg4[%c0_148, %c0_149] : memref<2x4xf32, #tpu.memory_space<vmem>>, vector<2x4xf32>
    tpu.vector_store %arg4[%c0_148, %c0_149], %190 {strides = array<i32>} : memref<2x4xf32, #tpu.memory_space<vmem>>, vector<2x4xf32>,
    return
  }
}

</mosaic_0001>

<llo_original>
// kernel: tpu_custom_call.1
$region0: #{tpu_custom_call.1}
  #allocation0 [shape = 'u32[]', space=smem, size = 0x4, offset = 0x4, fixed_abs, tag = 'smem constant byte address 0x4 - core index']
  #allocation1 [shape = 'u32[144,128]{1,0:T(1,128)}', space=vmem, size = 0x12000, scoped, tag = 'internal scratch']
  #allocation2 [shape = 'f32[8,2,32]{2,1,0:T(2,128)}', space=vmem, size = 0x2000, scoped, tag = 'scratch operand']
  %s0 = inlined_call_operand.vmem [shape: s32[16], index: 0, kind: input, shape index: {}]
  %s1 = inlined_call_operand.vmem [shape: f32[50,1,32], index: 1, kind: input, shape index: {}]
  %s2 = inlined_call_operand.vmem [shape: f32[32,32], index: 2, kind: input, shape index: {}]
  %s3 = inlined_call_operand.vmem [shape: f32[33,4], index: 3, kind: input, shape index: {}]
  %s4 = inlined_call_operand.hbm [shape: f32[2,4], index: 4, kind: output, shape index: {}]
  %s5 = sld [smem:[#allocation0]]
  $region30: #{tpu_custom_call.1} parent=0
    _
  %s7 = ssub.s32 1, %s5
  %s8 = scalar_select 0, %s7, %s5
  $region1: #{tpu_custom_call.1} parent=0
    #allocation3 [shape = 'u8[512]{0}', space=smem, size = 0x200, scoped, tag = 'input window, operand 0, single buffered']
    #allocation4 [shape = 's32[1]{0}', space=sflag, size = 0x4, scoped, tag = 'scoped memory for tpu_custom_call.1']
    #allocation5 [shape = 's32[1]{0}', space=sflag, size = 0x4, scoped, tag = 'scoped memory for tpu_custom_call.1']
    #allocation6 [shape = 'u8[1024]{0}', space=vmem, size = 0x400, scoped, tag = 'output window, operand 0, single buffered']
    %9 = vsyncpa [#allocation5], 0
    %10 = vsyncpa [#allocation4], 0
    // Predicated region
    $region2: #{tpu_custom_call.1} parent=1 // pred_check
      _
    $region3: #{tpu_custom_call.1} parent=1 // pred_check_branch
      %12 = sbr.rel (0) target = $region5
    $region4: #{tpu_custom_call.1} parent=1 // pred_region
      %s14 = ssub.s32 16, 16
      %15 = vsyncadd [#allocation5], %s14
      %s17 = sshll.u32 %s0, 4
      %s18 = int_to_ptr.vmem [resolvable:$true] %s17
      %20 = dma.vmem_to_smem %s18, 16, [#allocation3], [#allocation5]
    $region5: #{tpu_custom_call.1} parent=1 // pred_fallthru
      _
    // Predicated region
    $region6: #{tpu_custom_call.1} parent=1 // pred_check
      _
    $region7: #{tpu_custom_call.1} parent=1 // pred_check_branch
      %22 = sbr.rel (0) target = $region9
    $region8: #{tpu_custom_call.1} parent=1 // pred_region
      _
    $region9: #{tpu_custom_call.1} parent=1 // pred_fallthru
      _
    // Predicated region
    $region10: #{tpu_custom_call.1} parent=1 // pred_check
      _
    $region11: #{tpu_custom_call.1} parent=1 // pred_check_branch
      %24 = sbr.rel (0) target = $region13
    $region12: #{tpu_custom_call.1} parent=1 // pred_region
      _
    $region13: #{tpu_custom_call.1} parent=1 // pred_fallthru
      _
    // Predicated region
    $region14: #{tpu_custom_call.1} parent=1 // pred_check
      _
    $region15: #{tpu_custom_call.1} parent=1 // pred_check_branch
      %26 = sbr.rel (0) target = $region17
    $region16: #{tpu_custom_call.1} parent=1 // pred_region
      _
    $region17: #{tpu_custom_call.1} parent=1 // pred_fallthru
      _
    // Predicated region
    $region18: #{tpu_custom_call.1} parent=1 // pred_check
      _
    $region19: #{tpu_custom_call.1} parent=1 // pred_check_branch
      %28 = sbr.rel (0) target = $region21
    $region20: #{tpu_custom_call.1} parent=1 // pred_region
      %29 = dma.done [#allocation5], 16
    $region21: #{tpu_custom_call.1} parent=1 // pred_fallthru
      _
    %30 = sfence
    %s31 = sld [smem:[#allocation3]]
    %p32 = scmp.gt.s32.totalorder %s31, 0
    %s33 = scalar_select %p32, %s31, 0
    %p34 = scmp.lt.s32.totalorder %s33, 49
    %s35 = scalar_select %p34, %s33, 49
    %s36 = scalar_lea.vmem %s1, %s35
    %v37 = vld [vmem:[%s36] sm:$0x1]
    %vm38 = vcmask 253952
    %39 = vst.msk [vmem:[#allocation2] sm:$0x1] %vm38, %v37
    %s40 = sld [smem:[#allocation3 + $0x1]]
    %p41 = scmp.gt.s32.totalorder %s40, 0
    %s42 = scalar_select %p41, %s40, 0
    %p43 = scmp.lt.s32.totalorder %s42, 49
    %s44 = scalar_select %p43, %s42, 49
    %s45 = scalar_lea.vmem %s1, %s44
    %v46 = vld [vmem:[%s45] sm:$0x1]
    %47 = vst.msk [vmem:[#allocation2 + $0x1] sm:$0x1] %vm38, %v46
    %s48 = sld [smem:[#allocation3 + $0x2]]
    %p49 = scmp.gt.s32.totalorder %s48, 0
    %s50 = scalar_select %p49, %s48, 0
    %p51 = scmp.lt.s32.totalorder %s50, 49
    %s52 = scalar_select %p51, %s50, 49
    %s53 = scalar_lea.vmem %s1, %s52
    %v54 = vld [vmem:[%s53] sm:$0x1]
    %s55 = scalar_lea.vmem [#allocation2], 2
    %56 = vst.msk [vmem:[%s55] sm:$0x1] %vm38, %v54
    %s57 = sld [smem:[#allocation3 + $0x3]]
    %p58 = scmp.gt.s32.totalorder %s57, 0
    %s59 = scalar_select %p58, %s57, 0
    %p60 = scmp.lt.s32.totalorder %s59, 49
    %s61 = scalar_select %p60, %s59, 49
    %s62 = scalar_lea.vmem %s1, %s61
    %v63 = vld [vmem:[%s62] sm:$0x1]
    %64 = vst.msk [vmem:[%s55 + $0x1] sm:$0x1] %vm38, %v63
    %s65 = sld [smem:[#allocation3 + $0x4]]
    %p66 = scmp.gt.s32.totalorder %s65, 0
    %s67 = scalar_select %p66, %s65, 0
    %p68 = scmp.lt.s32.totalorder %s67, 49
    %s69 = scalar_select %p68, %s67, 49
    %s70 = scalar_lea.vmem %s1, %s69
    %v71 = vld [vmem:[%s70] sm:$0x1]
    %s72 = scalar_lea.vmem [#allocation2], 4
    %73 = vst.msk [vmem:[%s72] sm:$0x1] %vm38, %v71
    %s74 = sld [smem:[#allocation3 + $0x5]]
    %p75 = scmp.gt.s32.totalorder %s74, 0
    %s76 = scalar_select %p75, %s74, 0
    %p77 = scmp.lt.s32.totalorder %s76, 49
    %s78 = scalar_select %p77, %s76, 49
    %s79 = scalar_lea.vmem %s1, %s78
    %v80 = vld [vmem:[%s79] sm:$0x1]
    %81 = vst.msk [vmem:[%s72 + $0x1] sm:$0x1] %vm38, %v80
    %s82 = sld [smem:[#allocation3 + $0x6]]
    %p83 = scmp.gt.s32.totalorder %s82, 0
    %s84 = scalar_select %p83, %s82, 0
    %p85 = scmp.lt.s32.totalorder %s84, 49
    %s86 = scalar_select %p85, %s84, 49
    %s87 = scalar_lea.vmem %s1, %s86
    %v88 = vld [vmem:[%s87] sm:$0x1]
    %s89 = scalar_lea.vmem [#allocation2], 6
    %90 = vst.msk [vmem:[%s89] sm:$0x1] %vm38, %v88
    %s91 = sld [smem:[#allocation3 + $0x7]]
    %p92 = scmp.gt.s32.totalorder %s91, 0
    %s93 = scalar_select %p92, %s91, 0
    %p94 = scmp.lt.s32.totalorder %s93, 49
    %s95 = scalar_select %p94, %s93, 49
    %s96 = scalar_lea.vmem %s1, %s95
    %v97 = vld [vmem:[%s96] sm:$0x1]
    %98 = vst.msk [vmem:[%s89 + $0x1] sm:$0x1] %vm38, %v97
    %s99 = sld [smem:[#allocation3 + $0x8]]
    %p100 = scmp.gt.s32.totalorder %s99, 0
    %s101 = scalar_select %p100, %s99, 0
    %p102 = scmp.lt.s32.totalorder %s101, 49
    %s103 = scalar_select %p102, %s101, 49
    %s104 = scalar_lea.vmem %s1, %s103
    %v105 = vld [vmem:[%s104] sm:$0x1]
    %s106 = scalar_lea.vmem [#allocation2], 8
    %107 = vst.msk [vmem:[%s106] sm:$0x1] %vm38, %v105
    %s108 = sld [smem:[#allocation3 + $0x9]]
    %p109 = scmp.gt.s32.totalorder %s108, 0
    %s110 = scalar_select %p109, %s108, 0
    %p111 = scmp.lt.s32.totalorder %s110, 49
    %s112 = scalar_select %p111, %s110, 49
    %s113 = scalar_lea.vmem %s1, %s112
    %v114 = vld [vmem:[%s113] sm:$0x1]
    %115 = vst.msk [vmem:[%s106 + $0x1] sm:$0x1] %vm38, %v114
    %s116 = sld [smem:[#allocation3 + $0xa]]
    %p117 = scmp.gt.s32.totalorder %s116, 0
    %s118 = scalar_select %p117, %s116, 0
    %p119 = scmp.lt.s32.totalorder %s118, 49
    %s120 = scalar_select %p119, %s118, 49
    %s121 = scalar_lea.vmem %s1, %s120
    %v122 = vld [vmem:[%s121] sm:$0x1]
    %s123 = scalar_lea.vmem [#allocation2], 10
    %124 = vst.msk [vmem:[%s123] sm:$0x1] %vm38, %v122
    %s125 = sld [smem:[#allocation3 + $0xb]]
    %p126 = scmp.gt.s32.totalorder %s125, 0
    %s127 = scalar_select %p126, %s125, 0
    %p128 = scmp.lt.s32.totalorder %s127, 49
    %s129 = scalar_select %p128, %s127, 49
    %s130 = scalar_lea.vmem %s1, %s129
    %v131 = vld [vmem:[%s130] sm:$0x1]
    %132 = vst.msk [vmem:[%s123 + $0x1] sm:$0x1] %vm38, %v131
    %s133 = sld [smem:[#allocation3 + $0xc]]
    %p134 = scmp.gt.s32.totalorder %s133, 0
    %s135 = scalar_select %p134, %s133, 0
    %p136 = scmp.lt.s32.totalorder %s135, 49
    %s137 = scalar_select %p136, %s135, 49
    %s138 = scalar_lea.vmem %s1, %s137
    %v139 = vld [vmem:[%s138] sm:$0x1]
    %s140 = scalar_lea.vmem [#allocation2], 12
    %141 = vst.msk [vmem:[%s140] sm:$0x1] %vm38, %v139
    %s142 = sld [smem:[#allocation3 + $0xd]]
    %p143 = scmp.gt.s32.totalorder %s142, 0
    %s144 = scalar_select %p143, %s142, 0
    %p145 = scmp.lt.s32.totalorder %s144, 49
    %s146 = scalar_select %p145, %s144, 49
    %s147 = scalar_lea.vmem %s1, %s146
    %v148 = vld [vmem:[%s147] sm:$0x1]
    %149 = vst.msk [vmem:[%s140 + $0x1] sm:$0x1] %vm38, %v148
    %s150 = sld [smem:[#allocation3 + $0xe]]
    %p151 = scmp.gt.s32.totalorder %s150, 0
    %s152 = scalar_select %p151, %s150, 0
    %p153 = scmp.lt.s32.totalorder %s152, 49
    %s154 = scalar_select %p153, %s152, 49
    %s155 = scalar_lea.vmem %s1, %s154
    %v156 = vld [vmem:[%s155] sm:$0x1]
    %s157 = scalar_lea.vmem [#allocation2], 14
    %158 = vst.msk [vmem:[%s157] sm:$0x1] %vm38, %v156
    %s159 = sld [smem:[#allocation3 + $0xf]]
    %p160 = scmp.gt.s32.totalorder %s159, 0
    %s161 = scalar_select %p160, %s159, 0
    %p162 = scmp.lt.s32.totalorder %s161, 49
    %s163 = scalar_select %p162, %s161, 49
    %s164 = scalar_lea.vmem %s1, %s163
    %v165 = vld [vmem:[%s164] sm:$0x1]
    %166 = vst.msk [vmem:[%s157 + $0x1] sm:$0x1] %vm38, %v165
    %v167 = vld [vmem:[%s2] sm:$0xff]
    %v168 = vld [vmem:[%s2 + $0x8] sm:$0xff]
    %v169 = vld [vmem:[%s2 + $0x10] sm:$0xff]
    %v170 = vld [vmem:[%s2 + $0x18] sm:$0xff]
    %v171 = vld [vmem:[#allocation2] sm:$0x3]
    %vm172 = vcmask 261120
    %v174 = vsel %vm172, 0.0, 0
    %176 = vmatprep.subr.mxu0 0.0
    %177 = vmatpush1.msra.mxu0 0.0
    %178 = vmatprep.subr.mxu0 0.0
    %179 = vmatpush1.msra.mxu0 0.0
    %180 = vmatprep.subr.mxu0 0.0
    %181 = vmatpush1.msra.mxu0 0.0
    %182 = vmatprep.subr.mxu0 0.0
    %183 = vmatpush1.msra.mxu0 0.0
    %184 = vmatprep.subr.mxu0 0.0
    %185 = vmatpush1.msra.mxu0 0.0
    %186 = vmatprep.subr.mxu0 0.0
    %187 = vmatpush1.msra.mxu0 0.0
    %188 = vmatprep.subr.mxu0 0.0
    %189 = vmatpush1.msra.mxu0 0.0
    %190 = vmatprep.subr.mxu0 0.0
    %191 = vmatpush1.msra.mxu0 0.0
    %192 = vmatprep.subr.mxu0 0.0
    %193 = vmatpush1.msra.mxu0 0.0
    %194 = vmatprep.subr.mxu0 0.0
    %195 = vmatpush1.msra.mxu0 0.0
    %196 = vmatprep.subr.mxu0 0.0
    %197 = vmatpush1.msra.mxu0 0.0
    %198 = vmatprep.subr.mxu0 0.0
    %199 = vmatpush1.msra.mxu0 0.0
    %200 = vmatprep.subr.mxu0 0.0
    %v201 = vand.u32 %v170, 4294901760
    %202 = vmatpush1.msra.mxu0 %v201
    %203 = vmatprep.subr.mxu0 0.0
    %v204 = vand.u32 %v169, 4294901760
    %205 = vmatpush1.msra.mxu0 %v204
    %206 = vmatprep.subr.mxu0 0.0
    %v207 = vand.u32 %v168, 4294901760
    %208 = vmatpush1.msra.mxu0 %v207
    %209 = vmatprep.subr.mxu0 0.0
    %v210 = vand.u32 %v167, 4294901760
    %211 = vmatpush1.msra.mxu0 %v210
    %212 = vmatprep.subr.mxu0 0.0
    %213 = vmatpush2.msra.mxu0 0.0
    %214 = vmatprep.subr.mxu0 0.0
    %215 = vmatpush2.msra.mxu0 0.0
    %216 = vmatprep.subr.mxu0 0.0
    %217 = vmatpush2.msra.mxu0 0.0
    %218 = vmatprep.subr.mxu0 0.0
    %219 = vmatpush2.msra.mxu0 0.0
    %220 = vmatprep.subr.mxu0 0.0
    %221 = vmatpush2.msra.mxu0 0.0
    %222 = vmatprep.subr.mxu0 0.0
    %223 = vmatpush2.msra.mxu0 0.0
    %224 = vmatprep.subr.mxu0 0.0
    %225 = vmatpush2.msra.mxu0 0.0
    %226 = vmatprep.subr.mxu0 0.0
    %227 = vmatpush2.msra.mxu0 0.0
    %228 = vmatprep.subr.mxu0 0.0
    %229 = vmatpush2.msra.mxu0 0.0
    %230 = vmatprep.subr.mxu0 0.0
    %231 = vmatpush2.msra.mxu0 0.0
    %232 = vmatprep.subr.mxu0 0.0
    %233 = vmatpush2.msra.mxu0 0.0
    %234 = vmatprep.subr.mxu0 0.0
    %235 = vmatpush2.msra.mxu0 0.0
    %236 = vmatprep.subr.mxu0 0.0
    %237 = vmatpush2.msra.mxu0 0.0
    %238 = vmatprep.subr.mxu0 0.0
    %239 = vmatpush2.msra.mxu0 0.0
    %240 = vmatprep.subr.mxu0 0.0
    %241 = vmatpush2.msra.mxu0 0.0
    %242 = vmatprep.subr.mxu0 0.0
    %243 = vmatpush2.msra.mxu0 0.0
    %244 = vmatprep.mubr.f32.mxu0 0.0
    %v245 = vand.u32 %v174, 4294901760
    %v246 = vsub.f32 %v174, %v245
    %v247 = vand.u32 %v246, 4294901760
    %v248 = vsub.f32 %v246, %v247
    %v249 = vand.u32 %v248, 4294901760
    %250 = vmatmul.mubr.f32.gmra.mxu0 %v249
    %v251 = vpop.f32.mrf.mxu0
    %v252 = vadd.f32 0.0, %v251
    %v253 = vpop.f32.mrf.mxu0
    %254 = vdwg.mxu0
    %255 = vmatprep.subr.mxu0 0.0
    %256 = vmatpush1.msra.mxu0 0.0
    %257 = vmatprep.subr.mxu0 0.0
    %258 = vmatpush1.msra.mxu0 0.0
    %259 = vmatprep.subr.mxu0 0.0
    %260 = vmatpush1.msra.mxu0 0.0
    %261 = vmatprep.subr.mxu0 0.0
    %262 = vmatpush1.msra.mxu0 0.0
    %263 = vmatprep.subr.mxu0 0.0
    %264 = vmatpush1.msra.mxu0 0.0
    %265 = vmatprep.subr.mxu0 0.0
    %266 = vmatpush1.msra.mxu0 0.0
    %267 = vmatprep.subr.mxu0 0.0
    %268 = vmatpush1.msra.mxu0 0.0
    %269 = vmatprep.subr.mxu0 0.0
    %270 = vmatpush1.msra.mxu0 0.0
    %271 = vmatprep.subr.mxu0 0.0
    %272 = vmatpush1.msra.mxu0 0.0
    %273 = vmatprep.subr.mxu0 0.0
    %274 = vmatpush1.msra.mxu0 0.0
    %275 = vmatprep.subr.mxu0 0.0
    %276 = vmatpush1.msra.mxu0 0.0
    %277 = vmatprep.subr.mxu0 0.0
    %278 = vmatpush1.msra.mxu0 0.0
    %279 = vmatprep.subr.mxu0 0.0
    %v280 = vand.u32 %v170, 4294901760
    %v281 = vsub.f32 %v170, %v280
    %v282 = vand.u32 %v281, 4294901760
    %v283 = vsub.f32 %v281, %v282
    %v284 = vand.u32 %v283, 4294901760
    %285 = vmatpush1.msra.mxu0 %v284
    %286 = vmatprep.subr.mxu0 0.0
    %v287 = vand.u32 %v169, 4294901760
    %v288 = vsub.f32 %v169, %v287
    %v289 = vand.u32 %v288, 4294901760
    %v290 = vsub.f32 %v288, %v289
    %v291 = vand.u32 %v290, 4294901760
    %292 = vmatpush1.msra.mxu0 %v291
    %293 = vmatprep.subr.mxu0 0.0
    %v294 = vand.u32 %v168, 4294901760
    %v295 = vsub.f32 %v168, %v294
    %v296 = vand.u32 %v295, 4294901760
    %v297 = vsub.f32 %v295, %v296
    %v298 = vand.u32 %v297, 4294901760
    %299 = vmatpush1.msra.mxu0 %v298
    %300 = vmatprep.subr.mxu0 0.0
    %v301 = vand.u32 %v167, 4294901760
    %v302 = vsub.f32 %v167, %v301
    %v303 = vand.u32 %v302, 4294901760
    %v304 = vsub.f32 %v302, %v303
    %v305 = vand.u32 %v304, 4294901760
    %306 = vmatpush1.msra.mxu0 %v305
    %307 = vmatprep.subr.mxu0 0.0
    %308 = vmatpush2.msra.mxu0 0.0
    %309 = vmatprep.subr.mxu0 0.0
    %310 = vmatpush2.msra.mxu0 0.0
    %311 = vmatprep.subr.mxu0 0.0
    %312 = vmatpush2.msra.mxu0 0.0
    %313 = vmatprep.subr.mxu0 0.0
    %314 = vmatpush2.msra.mxu0 0.0
    %315 = vmatprep.subr.mxu0 0.0
    %316 = vmatpush2.msra.mxu0 0.0
    %317 = vmatprep.subr.mxu0 0.0
    %318 = vmatpush2.msra.mxu0 0.0
    %319 = vmatprep.subr.mxu0 0.0
    %320 = vmatpush2.msra.mxu0 0.0
    %321 = vmatprep.subr.mxu0 0.0
    %322 = vmatpush2.msra.mxu0 0.0
    %323 = vmatprep.subr.mxu0 0.0
    %324 = vmatpush2.msra.mxu0 0.0
    %325 = vmatprep.subr.mxu0 0.0
    %326 = vmatpush2.msra.mxu0 0.0
    %327 = vmatprep.subr.mxu0 0.0
    %328 = vmatpush2.msra.mxu0 0.0
    %329 = vmatprep.subr.mxu0 0.0
    %330 = vmatpush2.msra.mxu0 0.0
    %331 = vmatprep.subr.mxu0 0.0
    %332 = vmatpush2.msra.mxu0 0.0
    %333 = vmatprep.subr.mxu0 0.0
    %334 = vmatpush2.msra.mxu0 0.0
    %335 = vmatprep.subr.mxu0 0.0
    %336 = vmatpush2.msra.mxu0 0.0
    %337 = vmatprep.subr.mxu0 0.0
    %338 = vmatpush2.msra.mxu0 0.0
    %339 = vmatprep.mubr.f32.mxu0 0.0
    %v340 = vand.u32 %v174, 4294901760
    %341 = vmatmul.mubr.f32.gmra.mxu0 %v340
    %v342 = vpop.f32.mrf.mxu0
    %v343 = vadd.f32 %v252, %v342
    %v344 = vpop.f32.mrf.mxu0
    %345 = vdwg.mxu0
    %346 = vmatprep.subr.mxu0 0.0
    %347 = vmatpush1.msra.mxu0 0.0
    %348 = vmatprep.subr.mxu0 0.0
    %349 = vmatpush1.msra.mxu0 0.0
    %350 = vmatprep.subr.mxu0 0.0
    %351 = vmatpush1.msra.mxu0 0.0
    %352 = vmatprep.subr.mxu0 0.0
    %353 = vmatpush1.msra.mxu0 0.0
    %354 = vmatprep.subr.mxu0 0.0
    %355 = vmatpush1.msra.mxu0 0.0
    %356 = vmatprep.subr.mxu0 0.0
    %357 = vmatpush1.msra.mxu0 0.0
    %358 = vmatprep.subr.mxu0 0.0
    %359 = vmatpush1.msra.mxu0 0.0
    %360 = vmatprep.subr.mxu0 0.0
    %361 = vmatpush1.msra.mxu0 0.0
    %362 = vmatprep.subr.mxu0 0.0
    %363 = vmatpush1.msra.mxu0 0.0
    %364 = vmatprep.subr.mxu0 0.0
    %365 = vmatpush1.msra.mxu0 0.0
    %366 = vmatprep.subr.mxu0 0.0
    %367 = vmatpush1.msra.mxu0 0.0
    %368 = vmatprep.subr.mxu0 0.0
    %369 = vmatpush1.msra.mxu0 0.0
    %370 = vmatprep.subr.mxu0 0.0
    %v371 = vand.u32 %v170, 4294901760
    %v372 = vsub.f32 %v170, %v371
    %373 = vmatpush1.msra.mxu0 %v372
    %374 = vmatprep.subr.mxu0 0.0
    %v375 = vand.u32 %v169, 4294901760
    %v376 = vsub.f32 %v169, %v375
    %377 = vmatpush1.msra.mxu0 %v376
    %378 = vmatprep.subr.mxu0 0.0
    %v379 = vand.u32 %v168, 4294901760
    %v380 = vsub.f32 %v168, %v379
    %381 = vmatpush1.msra.mxu0 %v380
    %382 = vmatprep.subr.mxu0 0.0
    %v383 = vand.u32 %v167, 4294901760
    %v384 = vsub.f32 %v167, %v383
    %385 = vmatpush1.msra.mxu0 %v384
    %386 = vmatprep.subr.mxu0 0.0
    %387 = vmatpush2.msra.mxu0 0.0
    %388 = vmatprep.subr.mxu0 0.0
    %389 = vmatpush2.msra.mxu0 0.0
    %390 = vmatprep.subr.mxu0 0.0
    %391 = vmatpush2.msra.mxu0 0.0
    %392 = vmatprep.subr.mxu0 0.0
    %393 = vmatpush2.msra.mxu0 0.0
    %394 = vmatprep.subr.mxu0 0.0
    %395 = vmatpush2.msra.mxu0 0.0
    %396 = vmatprep.subr.mxu0 0.0
    %397 = vmatpush2.msra.mxu0 0.0
    %398 = vmatprep.subr.mxu0 0.0
    %399 = vmatpush2.msra.mxu0 0.0
    %400 = vmatprep.subr.mxu0 0.0
    %401 = vmatpush2.msra.mxu0 0.0
    %402 = vmatprep.subr.mxu0 0.0
    %403 = vmatpush2.msra.mxu0 0.0
    %404 = vmatprep.subr.mxu0 0.0
    %405 = vmatpush2.msra.mxu0 0.0
    %406 = vmatprep.subr.mxu0 0.0
    %407 = vmatpush2.msra.mxu0 0.0
    %408 = vmatprep.subr.mxu0 0.0
    %409 = vmatpush2.msra.mxu0 0.0
    %410 = vmatprep.subr.mxu0 0.0
    %411 = vmatpush2.msra.mxu0 0.0
    %412 = vmatprep.subr.mxu0 0.0
    %413 = vmatpush2.msra.mxu0 0.0
    %414 = vmatprep.subr.mxu0 0.0
    %415 = vmatpush2.msra.mxu0 0.0
    %416 = vmatprep.subr.mxu0 0.0
    %417 = vmatpush2.msra.mxu0 0.0
    %418 = vmatprep.mubr.f32.mxu0 0.0
    %v419 = vand.u32 %v174, 4294901760
    %v420 = vsub.f32 %v174, %v419
    %421 = vmatmul.mubr.f32.gmra.mxu0 %v420
    %v422 = vpop.f32.mrf.mxu0
    %v423 = vadd.f32 %v343, %v422
    %v424 = vpop.f32.mrf.mxu0
    %425 = vdwg.mxu0
    %426 = vmatprep.subr.mxu0 0.0
    %427 = vmatpush1.msra.mxu0 0.0
    %428 = vmatprep.subr.mxu0 0.0
    %429 = vmatpush1.msra.mxu0 0.0
    %430 = vmatprep.subr.mxu0 0.0
    %431 = vmatpush1.msra.mxu0 0.0
    %432 = vmatprep.subr.mxu0 0.0
    %433 = vmatpush1.msra.mxu0 0.0
    %434 = vmatprep.subr.mxu0 0.0
    %435 = vmatpush1.msra.mxu0 0.0
    %436 = vmatprep.subr.mxu0 0.0
    %437 = vmatpush1.msra.mxu0 0.0
    %438 = vmatprep.subr.mxu0 0.0
    %439 = vmatpush1.msra.mxu0 0.0
    %440 = vmatprep.subr.mxu0 0.0
    %441 = vmatpush1.msra.mxu0 0.0
    %442 = vmatprep.subr.mxu0 0.0
    %443 = vmatpush1.msra.mxu0 0.0
    %444 = vmatprep.subr.mxu0 0.0
    %445 = vmatpush1.msra.mxu0 0.0
    %446 = vmatprep.subr.mxu0 0.0
    %447 = vmatpush1.msra.mxu0 0.0
    %448 = vmatprep.subr.mxu0 0.0
    %449 = vmatpush1.msra.mxu0 0.0
    %450 = vmatprep.subr.mxu0 0.0
    %v451 = vand.u32 %v170, 4294901760
    %452 = vmatpush1.msra.mxu0 %v451
    %453 = vmatprep.subr.mxu0 0.0
    %v454 = vand.u32 %v169, 4294901760
    %455 = vmatpush1.msra.mxu0 %v454
    %456 = vmatprep.subr.mxu0 0.0
    %v457 = vand.u32 %v168, 4294901760
    %458 = vmatpush1.msra.mxu0 %v457
    %459 = vmatprep.subr.mxu0 0.0
    %v460 = vand.u32 %v167, 4294901760
    %461 = vmatpush1.msra.mxu0 %v460
    %462 = vmatprep.subr.mxu0 0.0
    %463 = vmatpush2.msra.mxu0 0.0
    %464 = vmatprep.subr.mxu0 0.0
    %465 = vmatpush2.msra.mxu0 0.0
    %466 = vmatprep.subr.mxu0 0.0
    %467 = vmatpush2.msra.mxu0 0.0
    %468 = vmatprep.subr.mxu0 0.0
    %469 = vmatpush2.msra.mxu0 0.0
    %470 = vmatprep.subr.mxu0 0.0
    %471 = vmatpush2.msra.mxu0 0.0
    %472 = vmatprep.subr.mxu0 0.0
    %473 = vmatpush2.msra.mxu0 0.0
    %474 = vmatprep.subr.mxu0 0.0
    %475 = vmatpush2.msra.mxu0 0.0
    %476 = vmatprep.subr.mxu0 0.0
    %477 = vmatpush2.msra.mxu0 0.0
    %478 = vmatprep.subr.mxu0 0.0
    %479 = vmatpush2.msra.mxu0 0.0
    %480 = vmatprep.subr.mxu0 0.0
    %481 = vmatpush2.msra.mxu0 0.0
    %482 = vmatprep.subr.mxu0 0.0
    %483 = vmatpush2.msra.mxu0 0.0
    %484 = vmatprep.subr.mxu0 0.0
    %485 = vmatpush2.msra.mxu0 0.0
    %486 = vmatprep.subr.mxu0 0.0
    %487 = vmatpush2.msra.mxu0 0.0
    %488 = vmatprep.subr.mxu0 0.0
    %489 = vmatpush2.msra.mxu0 0.0
    %490 = vmatprep.subr.mxu0 0.0
    %491 = vmatpush2.msra.mxu0 0.0
    %492 = vmatprep.subr.mxu0 0.0
    %493 = vmatpush2.msra.mxu0 0.0
    %494 = vmatprep.mubr.f32.mxu0 0.0
    %v495 = vand.u32 %v174, 4294901760
    %v496 = vsub.f32 %v174, %v495
    %v497 = vand.u32 %v496, 4294901760
    %498 = vmatmul.mubr.f32.gmra.mxu0 %v497
    %v499 = vpop.f32.mrf.mxu0
    %v500 = vadd.f32 %v423, %v499
    %v501 = vpop.f32.mrf.mxu0
    %502 = vdwg.mxu0
    %503 = vmatprep.subr.mxu0 0.0
    %504 = vmatpush1.msra.mxu0 0.0
    %505 = vmatprep.subr.mxu0 0.0
    %506 = vmatpush1.msra.mxu0 0.0
    %507 = vmatprep.subr.mxu0 0.0
    %508 = vmatpush1.msra.mxu0 0.0
    %509 = vmatprep.subr.mxu0 0.0
    %510 = vmatpush1.msra.mxu0 0.0
    %511 = vmatprep.subr.mxu0 0.0
    %512 = vmatpush1.msra.mxu0 0.0
    %513 = vmatprep.subr.mxu0 0.0
    %514 = vmatpush1.msra.mxu0 0.0
    %515 = vmatprep.subr.mxu0 0.0
    %516 = vmatpush1.msra.mxu0 0.0
    %517 = vmatprep.subr.mxu0 0.0
    %518 = vmatpush1.msra.mxu0 0.0
    %519 = vmatprep.subr.mxu0 0.0
    %520 = vmatpush1.msra.mxu0 0.0
    %521 = vmatprep.subr.mxu0 0.0
    %522 = vmatpush1.msra.mxu0 0.0
    %523 = vmatprep.subr.mxu0 0.0
    %524 = vmatpush1.msra.mxu0 0.0
    %525 = vmatprep.subr.mxu0 0.0
    %526 = vmatpush1.msra.mxu0 0.0
    %527 = vmatprep.subr.mxu0 0.0
    %v528 = vand.u32 %v170, 4294901760
    %v529 = vsub.f32 %v170, %v528
    %v530 = vand.u32 %v529, 4294901760
    %531 = vmatpush1.msra.mxu0 %v530
    %532 = vmatprep.subr.mxu0 0.0
    %v533 = vand.u32 %v169, 4294901760
    %v534 = vsub.f32 %v169, %v533
    %v535 = vand.u32 %v534, 4294901760
    %536 = vmatpush1.msra.mxu0 %v535
    %537 = vmatprep.subr.mxu0 0.0
    %v538 = vand.u32 %v168, 4294901760
    %v539 = vsub.f32 %v168, %v538
    %v540 = vand.u32 %v539, 4294901760
    %541 = vmatpush1.msra.mxu0 %v540
    %542 = vmatprep.subr.mxu0 0.0
    %v543 = vand.u32 %v167, 4294901760
    %v544 = vsub.f32 %v167, %v543
    %v545 = vand.u32 %v544, 4294901760
    %546 = vmatpush1.msra.mxu0 %v545
    %547 = vmatprep.subr.mxu0 0.0
    %548 = vmatpush2.msra.mxu0 0.0
    %549 = vmatprep.subr.mxu0 0.0
    %550 = vmatpush2.msra.mxu0 0.0
    %551 = vmatprep.subr.mxu0 0.0
    %552 = vmatpush2.msra.mxu0 0.0
    %553 = vmatprep.subr.mxu0 0.0
    %554 = vmatpush2.msra.mxu0 0.0
    %555 = vmatprep.subr.mxu0 0.0
    %556 = vmatpush2.msra.mxu0 0.0
    %557 = vmatprep.subr.mxu0 0.0
    %558 = vmatpush2.msra.mxu0 0.0
    %559 = vmatprep.subr.mxu0 0.0
    %560 = vmatpush2.msra.mxu0 0.0
    %561 = vmatprep.subr.mxu0 0.0
    %562 = vmatpush2.msra.mxu0 0.0
    %563 = vmatprep.subr.mxu0 0.0
    %564 = vmatpush2.msra.mxu0 0.0
    %565 = vmatprep.subr.mxu0 0.0
    %566 = vmatpush2.msra.mxu0 0.0
    %567 = vmatprep.subr.mxu0 0.0
    %568 = vmatpush2.msra.mxu0 0.0
    %569 = vmatprep.subr.mxu0 0.0
    %570 = vmatpush2.msra.mxu0 0.0
    %571 = vmatprep.subr.mxu0 0.0
    %572 = vmatpush2.msra.mxu0 0.0
    %573 = vmatprep.subr.mxu0 0.0
    %574 = vmatpush2.msra.mxu0 0.0
    %575 = vmatprep.subr.mxu0 0.0
    %576 = vmatpush2.msra.mxu0 0.0
    %577 = vmatprep.subr.mxu0 0.0
    %578 = vmatpush2.msra.mxu0 0.0
    %579 = vmatprep.mubr.f32.mxu0 0.0
    %v580 = vand.u32 %v174, 4294901760
    %581 = vmatmul.mubr.f32.gmra.mxu0 %v580
    %v582 = vpop.f32.mrf.mxu0
    %v583 = vadd.f32 %v500, %v582
    %v584 = vpop.f32.mrf.mxu0
    %585 = vdwg.mxu0
    %586 = vmatprep.subr.mxu0 0.0
    %587 = vmatpush1.msra.mxu0 0.0
    %588 = vmatprep.subr.mxu0 0.0
    %589 = vmatpush1.msra.mxu0 0.0
    %590 = vmatprep.subr.mxu0 0.0
    %591 = vmatpush1.msra.mxu0 0.0
    %592 = vmatprep.subr.mxu0 0.0
    %593 = vmatpush1.msra.mxu0 0.0
    %594 = vmatprep.subr.mxu0 0.0
    %595 = vmatpush1.msra.mxu0 0.0
    %596 = vmatprep.subr.mxu0 0.0
    %597 = vmatpush1.msra.mxu0 0.0
    %598 = vmatprep.subr.mxu0 0.0
    %599 = vmatpush1.msra.mxu0 0.0
    %600 = vmatprep.subr.mxu0 0.0
    %601 = vmatpush1.msra.mxu0 0.0
    %602 = vmatprep.subr.mxu0 0.0
    %603 = vmatpush1.msra.mxu0 0.0
    %604 = vmatprep.subr.mxu0 0.0
    %605 = vmatpush1.msra.mxu0 0.0
    %606 = vmatprep.subr.mxu0 0.0
    %607 = vmatpush1.msra.mxu0 0.0
    %608 = vmatprep.subr.mxu0 0.0
    %609 = vmatpush1.msra.mxu0 0.0
    %610 = vmatprep.subr.mxu0 0.0
    %v611 = vand.u32 %v170, 4294901760
    %612 = vmatpush1.msra.mxu0 %v611
    %613 = vmatprep.subr.mxu0 0.0
    %v614 = vand.u32 %v169, 4294901760
    %615 = vmatpush1.msra.mxu0 %v614
    %616 = vmatprep.subr.mxu0 0.0
    %v617 = vand.u32 %v168, 4294901760
    %618 = vmatpush1.msra.mxu0 %v617
    %619 = vmatprep.subr.mxu0 0.0
    %v620 = vand.u32 %v167, 4294901760
    %621 = vmatpush1.msra.mxu0 %v620
    %622 = vmatprep.subr.mxu0 0.0
    %623 = vmatpush2.msra.mxu0 0.0
    %624 = vmatprep.subr.mxu0 0.0
    %625 = vmatpush2.msra.mxu0 0.0
    %626 = vmatprep.subr.mxu0 0.0
    %627 = vmatpush2.msra.mxu0 0.0
    %628 = vmatprep.subr.mxu0 0.0
    %629 = vmatpush2.msra.mxu0 0.0
    %630 = vmatprep.subr.mxu0 0.0
    %631 = vmatpush2.msra.mxu0 0.0
    %632 = vmatprep.subr.mxu0 0.0
    %633 = vmatpush2.msra.mxu0 0.0
    %634 = vmatprep.subr.mxu0 0.0
    %635 = vmatpush2.msra.mxu0 0.0
    %636 = vmatprep.subr.mxu0 0.0
    %637 = vmatpush2.msra.mxu0 0.0
    %638 = vmatprep.subr.mxu0 0.0
    %639 = vmatpush2.msra.mxu0 0.0
    %640 = vmatprep.subr.mxu0 0.0
    %641 = vmatpush2.msra.mxu0 0.0
    %642 = vmatprep.subr.mxu0 0.0
    %643 = vmatpush2.msra.mxu0 0.0
    %644 = vmatprep.subr.mxu0 0.0
    %645 = vmatpush2.msra.mxu0 0.0
    %646 = vmatprep.subr.mxu0 0.0
    %647 = vmatpush2.msra.mxu0 0.0
    %648 = vmatprep.subr.mxu0 0.0
    %649 = vmatpush2.msra.mxu0 0.0
    %650 = vmatprep.subr.mxu0 0.0
    %651 = vmatpush2.msra.mxu0 0.0
    %652 = vmatprep.subr.mxu0 0.0
    %653 = vmatpush2.msra.mxu0 0.0
    %654 = vmatprep.mubr.f32.mxu0 0.0
    %v655 = vand.u32 %v174, 4294901760
    %656 = vmatmul.mubr.f32.gmra.mxu0 %v655
    %v657 = vpop.f32.mrf.mxu0
    %v658 = vadd.f32 %v583, %v657
    %v659 = vpop.f32.mrf.mxu0
    %660 = vdwg.mxu0
    %v661 = vadd.f32 %v171, %v658
    %v662 = vtanh.pop %v661
    %v663 = vld [vmem:[%s55] sm:$0x3]
    %v665 = vsel %vm172, %v662, 0
    %667 = vmatprep.subr.mxu0 0.0
    %668 = vmatpush1.msra.mxu0 0.0
    %669 = vmatprep.subr.mxu0 0.0
    %670 = vmatpush1.msra.mxu0 0.0
    %671 = vmatprep.subr.mxu0 0.0
    %672 = vmatpush1.msra.mxu0 0.0
    %673 = vmatprep.subr.mxu0 0.0
    %674 = vmatpush1.msra.mxu0 0.0
    %675 = vmatprep.subr.mxu0 0.0
    %676 = vmatpush1.msra.mxu0 0.0
    %677 = vmatprep.subr.mxu0 0.0
    %678 = vmatpush1.msra.mxu0 0.0
    %679 = vmatprep.subr.mxu0 0.0
    %680 = vmatpush1.msra.mxu0 0.0
    %681 = vmatprep.subr.mxu0 0.0
    %682 = vmatpush1.msra.mxu0 0.0
    %683 = vmatprep.subr.mxu0 0.0
    %684 = vmatpush1.msra.mxu0 0.0
    %685 = vmatprep.subr.mxu0 0.0
    %686 = vmatpush1.msra.mxu0 0.0
    %687 = vmatprep.subr.mxu0 0.0
    %688 = vmatpush1.msra.mxu0 0.0
    %689 = vmatprep.subr.mxu0 0.0
    %690 = vmatpush1.msra.mxu0 0.0
    %691 = vmatprep.subr.mxu0 0.0
    %v692 = vand.u32 %v170, 4294901760
    %693 = vmatpush1.msra.mxu0 %v692
    %694 = vmatprep.subr.mxu0 0.0
    %v695 = vand.u32 %v169, 4294901760
    %696 = vmatpush1.msra.mxu0 %v695
    %697 = vmatprep.subr.mxu0 0.0
    %v698 = vand.u32 %v168, 4294901760
    %699 = vmatpush1.msra.mxu0 %v698
    %700 = vmatprep.subr.mxu0 0.0
    %v701 = vand.u32 %v167, 4294901760
    %702 = vmatpush1.msra.mxu0 %v701
    %703 = vmatprep.subr.mxu0 0.0
    %704 = vmatpush2.msra.mxu0 0.0
    %705 = vmatprep.subr.mxu0 0.0
    %706 = vmatpush2.msra.mxu0 0.0
    %707 = vmatprep.subr.mxu0 0.0
    %708 = vmatpush2.msra.mxu0 0.0
    %709 = vmatprep.subr.mxu0 0.0
    %710 = vmatpush2.msra.mxu0 0.0
    %711 = vmatprep.subr.mxu0 0.0
    %712 = vmatpush2.msra.mxu0 0.0
    %713 = vmatprep.subr.mxu0 0.0
    %714 = vmatpush2.msra.mxu0 0.0
    %715 = vmatprep.subr.mxu0 0.0
    %716 = vmatpush2.msra.mxu0 0.0
    %717 = vmatprep.subr.mxu0 0.0
    %718 = vmatpush2.msra.mxu0 0.0
    %719 = vmatprep.subr.mxu0 0.0
    %720 = vmatpush2.msra.mxu0 0.0
    %721 = vmatprep.subr.mxu0 0.0
    %722 = vmatpush2.msra.mxu0 0.0
    %723 = vmatprep.subr.mxu0 0.0
    %724 = vmatpush2.msra.mxu0 0.0
    %725 = vmatprep.subr.mxu0 0.0
    %726 = vmatpush2.msra.mxu0 0.0
    %727 = vmatprep.subr.mxu0 0.0
    %728 = vmatpush2.msra.mxu0 0.0
    %729 = vmatprep.subr.mxu0 0.0
    %730 = vmatpush2.msra.mxu0 0.0
    %731 = vmatprep.subr.mxu0 0.0
    %732 = vmatpush2.msra.mxu0 0.0
    %733 = vmatprep.subr.mxu0 0.0
    %734 = vmatpush2.msra.mxu0 0.0
    %735 = vmatprep.mubr.f32.mxu0 0.0
    %v736 = vand.u32 %v665, 4294901760
    %v737 = vsub.f32 %v665, %v736
    %v738 = vand.u32 %v737, 4294901760
    %v739 = vsub.f32 %v737, %v738
    %v740 = vand.u32 %v739, 4294901760
    %741 = vmatmul.mubr.f32.gmra.mxu0 %v740
    %v742 = vpop.f32.mrf.mxu0
    %v743 = vadd.f32 0.0, %v742
    %v744 = vpop.f32.mrf.mxu0
    %745 = vdwg.mxu0
    %746 = vmatprep.subr.mxu0 0.0
    %747 = vmatpush1.msra.mxu0 0.0
    %748 = vmatprep.subr.mxu0 0.0
    %749 = vmatpush1.msra.mxu0 0.0
    %750 = vmatprep.subr.mxu0 0.0
    %751 = vmatpush1.msra.mxu0 0.0
    %752 = vmatprep.subr.mxu0 0.0
    %753 = vmatpush1.msra.mxu0 0.0
    %754 = vmatprep.subr.mxu0 0.0
    %755 = vmatpush1.msra.mxu0 0.0
    %756 = vmatprep.subr.mxu0 0.0
    %757 = vmatpush1.msra.mxu0 0.0
    %758 = vmatprep.subr.mxu0 0.0
    %759 = vmatpush1.msra.mxu0 0.0
    %760 = vmatprep.subr.mxu0 0.0
    %761 = vmatpush1.msra.mxu0 0.0
    %762 = vmatprep.subr.mxu0 0.0
    %763 = vmatpush1.msra.mxu0 0.0
    %764 = vmatprep.subr.mxu0 0.0
    %765 = vmatpush1.msra.mxu0 0.0
    %766 = vmatprep.subr.mxu0 0.0
    %767 = vmatpush1.msra.mxu0 0.0
    %768 = vmatprep.subr.mxu0 0.0
    %769 = vmatpush1.msra.mxu0 0.0
    %770 = vmatprep.subr.mxu0 0.0
    %v771 = vand.u32 %v170, 4294901760
    %v772 = vsub.f32 %v170, %v771
    %v773 = vand.u32 %v772, 4294901760
    %v774 = vsub.f32 %v772, %v773
    %v775 = vand.u32 %v774, 4294901760
    %776 = vmatpush1.msra.mxu0 %v775
    %777 = vmatprep.subr.mxu0 0.0
    %v778 = vand.u32 %v169, 4294901760
    %v779 = vsub.f32 %v169, %v778
    %v780 = vand.u32 %v779, 4294901760
    %v781 = vsub.f32 %v779, %v780
    %v782 = vand.u32 %v781, 4294901760
    %783 = vmatpush1.msra.mxu0 %v782
    %784 = vmatprep.subr.mxu0 0.0
    %v785 = vand.u32 %v168, 4294901760
    %v786 = vsub.f32 %v168, %v785
    %v787 = vand.u32 %v786, 4294901760
    %v788 = vsub.f32 %v786, %v787
    %v789 = vand.u32 %v788, 4294901760
    %790 = vmatpush1.msra.mxu0 %v789
    %791 = vmatprep.subr.mxu0 0.0
    %v792 = vand.u32 %v167, 4294901760
    %v793 = vsub.f32 %v167, %v792
    %v794 = vand.u32 %v793, 4294901760
    %v795 = vsub.f32 %v793, %v794
    %v796 = vand.u32 %v795, 4294901760
    %797 = vmatpush1.msra.mxu0 %v796
    %798 = vmatprep.subr.mxu0 0.0
    %799 = vmatpush2.msra.mxu0 0.0
    %800 = vmatprep.subr.mxu0 0.0
    %801 = vmatpush2.msra.mxu0 0.0
    %802 = vmatprep.subr.mxu0 0.0
    %803 = vmatpush2.msra.mxu0 0.0
    %804 = vmatprep.subr.mxu0 0.0
    %805 = vmatpush2.msra.mxu0 0.0
    %806 = vmatprep.subr.mxu0 0.0
    %807 = vmatpush2.msra.mxu0 0.0
    %808 = vmatprep.subr.mxu0 0.0
    %809 = vmatpush2.msra.mxu0 0.0
    %810 = vmatprep.subr.mxu0 0.0
    %811 = vmatpush2.msra.mxu0 0.0
    %812 = vmatprep.subr.mxu0 0.0
    %813 = vmatpush2.msra.mxu0 0.0
    %814 = vmatprep.subr.mxu0 0.0
    %815 = vmatpush2.msra.mxu0 0.0
    %816 = vmatprep.subr.mxu0 0.0
    %817 = vmatpush2.msra.mxu0 0.0
    %818 = vmatprep.subr.mxu0 0.0
    %819 = vmatpush2.msra.mxu0 0.0
    %820 = vmatprep.subr.mxu0 0.0
    %821 = vmatpush2.msra.mxu0 0.0
    %822 = vmatprep.subr.mxu0 0.0
    %823 = vmatpush2.msra.mxu0 0.0
    %824 = vmatprep.subr.mxu0 0.0
    %825 = vmatpush2.msra.mxu0 0.0
    %826 = vmatprep.subr.mxu0 0.0
    %827 = vmatpush2.msra.mxu0 0.0
    %828 = vmatprep.subr.mxu0 0.0
    %829 = vmatpush2.msra.mxu0 0.0
    %830 = vmatprep.mubr.f32.mxu0 0.0
    %v831 = vand.u32 %v665, 4294901760
    %832 = vmatmul.mubr.f32.gmra.mxu0 %v831
    %v833 = vpop.f32.mrf.mxu0
    %v834 = vadd.f32 %v743, %v833
    %v835 = vpop.f32.mrf.mxu0
    %836 = vdwg.mxu0
    %837 = vmatprep.subr.mxu0 0.0
    %838 = vmatpush1.msra.mxu0 0.0
    %839 = vmatprep.subr.mxu0 0.0
    %840 = vmatpush1.msra.mxu0 0.0
    %841 = vmatprep.subr.mxu0 0.0
    %842 = vmatpush1.msra.mxu0 0.0
    %843 = vmatprep.subr.mxu0 0.0
    %844 = vmatpush1.msra.mxu0 0.0
    %845 = vmatprep.subr.mxu0 0.0
    %846 = vmatpush1.msra.mxu0 0.0
    %847 = vmatprep.subr.mxu0 0.0
    %848 = vmatpush1.msra.mxu0 0.0
    %849 = vmatprep.subr.mxu0 0.0
    %850 = vmatpush1.msra.mxu0 0.0
    %851 = vmatprep.subr.mxu0 0.0
    %852 = vmatpush1.msra.mxu0 0.0
    %853 = vmatprep.subr.mxu0 0.0
    %854 = vmatpush1.msra.mxu0 0.0
    %855 = vmatprep.subr.mxu0 0.0
    %856 = vmatpush1.msra.mxu0 0.0
    %857 = vmatprep.subr.mxu0 0.0
    %858 = vmatpush1.msra.mxu0 0.0
    %859 = vmatprep.subr.mxu0 0.0
    %860 = vmatpush1.msra.mxu0 0.0
    %861 = vmatprep.subr.mxu0 0.0
    %v862 = vand.u32 %v170, 4294901760
    %v863 = vsub.f32 %v170, %v862
    %864 = vmatpush1.msra.mxu0 %v863
    %865 = vmatprep.subr.mxu0 0.0
    %v866 = vand.u32 %v169, 4294901760
    %v867 = vsub.f32 %v169, %v866
    %868 = vmatpush1.msra.mxu0 %v867
    %869 = vmatprep.subr.mxu0 0.0
    %v870 = vand.u32 %v168, 4294901760
    %v871 = vsub.f32 %v168, %v870
    %872 = vmatpush1.msra.mxu0 %v871
    %873 = vmatprep.subr.mxu0 0.0
    %v874 = vand.u32 %v167, 4294901760
    %v875 = vsub.f32 %v167, %v874
    %876 = vmatpush1.msra.mxu0 %v875
    %877 = vmatprep.subr.mxu0 0.0
    %878 = vmatpush2.msra.mxu0 0.0
    %879 = vmatprep.subr.mxu0 0.0
    %880 = vmatpush2.msra.mxu0 0.0
    %881 = vmatprep.subr.mxu0 0.0
    %882 = vmatpush2.msra.mxu0 0.0
    %883 = vmatprep.subr.mxu0 0.0
    %884 = vmatpush2.msra.mxu0 0.0
    %885 = vmatprep.subr.mxu0 0.0
    %886 = vmatpush2.msra.mxu0 0.0
    %887 = vmatprep.subr.mxu0 0.0
    %888 = vmatpush2.msra.mxu0 0.0
    %889 = vmatprep.subr.mxu0 0.0
    %890 = vmatpush2.msra.mxu0 0.0
    %891 = vmatprep.subr.mxu0 0.0
    %892 = vmatpush2.msra.mxu0 0.0
    %893 = vmatprep.subr.mxu0 0.0
    %894 = vmatpush2.msra.mxu0 0.0
    %895 = vmatprep.subr.mxu0 0.0
    %896 = vmatpush2.msra.mxu0 0.0
    %897 = vmatprep.subr.mxu0 0.0
    %898 = vmatpush2.msra.mxu0 0.0
    %899 = vmatprep.subr.mxu0 0.0
    %900 = vmatpush2.msra.mxu0 0.0
    %901 = vmatprep.subr.mxu0 0.0
    %902 = vmatpush2.msra.mxu0 0.0
    %903 = vmatprep.subr.mxu0 0.0
    %904 = vmatpush2.msra.mxu0 0.0
    %905 = vmatprep.subr.mxu0 0.0
    %906 = vmatpush2.msra.mxu0 0.0
    %907 = vmatprep.subr.mxu0 0.0
    %908 = vmatpush2.msra.mxu0 0.0
    %909 = vmatprep.mubr.f32.mxu0 0.0
    %v910 = vand.u32 %v665, 4294901760
    %v911 = vsub.f32 %v665, %v910
    %912 = vmatmul.mubr.f32.gmra.mxu0 %v911
    %v913 = vpop.f32.mrf.mxu0
    %v914 = vadd.f32 %v834, %v913
    %v915 = vpop.f32.mrf.mxu0
    %916 = vdwg.mxu0
    %917 = vmatprep.subr.mxu0 0.0
    %918 = vmatpush1.msra.mxu0 0.0
    %919 = vmatprep.subr.mxu0 0.0
    %920 = vmatpush1.msra.mxu0 0.0
    %921 = vmatprep.subr.mxu0 0.0
    %922 = vmatpush1.msra.mxu0 0.0
    %923 = vmatprep.subr.mxu0 0.0
    %924 = vmatpush1.msra.mxu0 0.0
    %925 = vmatprep.subr.mxu0 0.0
    %926 = vmatpush1.msra.mxu0 0.0
    %927 = vmatprep.subr.mxu0 0.0
    %928 = vmatpush1.msra.mxu0 0.0
    %929 = vmatprep.subr.mxu0 0.0
    %930 = vmatpush1.msra.mxu0 0.0
    %931 = vmatprep.subr.mxu0 0.0
    %932 = vmatpush1.msra.mxu0 0.0
    %933 = vmatprep.subr.mxu0 0.0
    %934 = vmatpush1.msra.mxu0 0.0
    %935 = vmatprep.subr.mxu0 0.0
    %936 = vmatpush1.msra.mxu0 0.0
    %937 = vmatprep.subr.mxu0 0.0
    %938 = vmatpush1.msra.mxu0 0.0
    %939 = vmatprep.subr.mxu0 0.0
    %940 = vmatpush1.msra.mxu0 0.0
    %941 = vmatprep.subr.mxu0 0.0
    %v942 = vand.u32 %v170, 4294901760
    %943 = vmatpush1.msra.mxu0 %v942
    %944 = vmatprep.subr.mxu0 0.0
    %v945 = vand.u32 %v169, 4294901760
    %946 = vmatpush1.msra.mxu0 %v945
    %947 = vmatprep.subr.mxu0 0.0
    %v948 = vand.u32 %v168, 4294901760
    %949 = vmatpush1.msra.mxu0 %v948
    %950 = vmatprep.subr.mxu0 0.0
    %v951 = vand.u32 %v167, 4294901760
    %952 = vmatpush1.msra.mxu0 %v951
    %953 = vmatprep.subr.mxu0 0.0
    %954 = vmatpush2.msra.mxu0 0.0
    %955 = vmatprep.subr.mxu0 0.0
    %956 = vmatpush2.msra.mxu0 0.0
    %957 = vmatprep.subr.mxu0 0.0
    %958 = vmatpush2.msra.mxu0 0.0
    %959 = vmatprep.subr.mxu0 0.0
    %960 = vmatpush2.msra.mxu0 0.0
    %961 = vmatprep.subr.mxu0 0.0
    %962 = vmatpush2.msra.mxu0 0.0
    %963 = vmatprep.subr.mxu0 0.0
    %964 = vmatpush2.msra.mxu0 0.0
    %965 = vmatprep.subr.mxu0 0.0
    %966 = vmatpush2.msra.mxu0 0.0
    %967 = vmatprep.subr.mxu0 0.0
    %968 = vmatpush2.msra.mxu0 0.0
    %969 = vmatprep.subr.mxu0 0.0
    %970 = vmatpush2.msra.mxu0 0.0
    %971 = vmatprep.subr.mxu0 0.0
    %972 = vmatpush2.msra.mxu0 0.0
    %973 = vmatprep.subr.mxu0 0.0
    %974 = vmatpush2.msra.mxu0 0.0
    %975 = vmatprep.subr.mxu0 0.0
    %976 = vmatpush2.msra.mxu0 0.0
    %977 = vmatprep.subr.mxu0 0.0
    %978 = vmatpush2.msra.mxu0 0.0
    %979 = vmatprep.subr.mxu0 0.0
    %980 = vmatpush2.msra.mxu0 0.0
    %981 = vmatprep.subr.mxu0 0.0
    %982 = vmatpush2.msra.mxu0 0.0
    %983 = vmatprep.subr.mxu0 0.0
    %984 = vmatpush2.msra.mxu0 0.0
    %985 = vmatprep.mubr.f32.mxu0 0.0
    %v986 = vand.u32 %v665, 4294901760
    %v987 = vsub.f32 %v665, %v986
    %v988 = vand.u32 %v987, 4294901760
    %989 = vmatmul.mubr.f32.gmra.mxu0 %v988
    %v990 = vpop.f32.mrf.mxu0
    %v991 = vadd.f32 %v914, %v990
    %v992 = vpop.f32.mrf.mxu0
    %993 = vdwg.mxu0
    %994 = vmatprep.subr.mxu0 0.0
    %995 = vmatpush1.msra.mxu0 0.0
    %996 = vmatprep.subr.mxu0 0.0
    %997 = vmatpush1.msra.mxu0 0.0
    %998 = vmatprep.subr.mxu0 0.0
    %999 = vmatpush1.msra.mxu0 0.0
    %1000 = vmatprep.subr.mxu0 0.0
    %1001 = vmatpush1.msra.mxu0 0.0
    %1002 = vmatprep.subr.mxu0 0.0
    %1003 = vmatpush1.msra.mxu0 0.0
    %1004 = vmatprep.subr.mxu0 0.0
    %1005 = vmatpush1.msra.mxu0 0.0
    %1006 = vmatprep.subr.mxu0 0.0
    %1007 = vmatpush1.msra.mxu0 0.0
    %1008 = vmatprep.subr.mxu0 0.0
    %1009 = vmatpush1.msra.mxu0 0.0
    %1010 = vmatprep.subr.mxu0 0.0
    %1011 = vmatpush1.msra.mxu0 0.0
    %1012 = vmatprep.subr.mxu0 0.0
    %1013 = vmatpush1.msra.mxu0 0.0
    %1014 = vmatprep.subr.mxu0 0.0
    %1015 = vmatpush1.msra.mxu0 0.0
    %1016 = vmatprep.subr.mxu0 0.0
    %1017 = vmatpush1.msra.mxu0 0.0
    %1018 = vmatprep.subr.mxu0 0.0
    %v1019 = vand.u32 %v170, 4294901760
    %v1020 = vsub.f32 %v170, %v1019
    %v1021 = vand.u32 %v1020, 4294901760
    %1022 = vmatpush1.msra.mxu0 %v1021
    %1023 = vmatprep.subr.mxu0 0.0
    %v1024 = vand.u32 %v169, 4294901760
    %v1025 = vsub.f32 %v169, %v1024
    %v1026 = vand.u32 %v1025, 4294901760
    %1027 = vmatpush1.msra.mxu0 %v1026
    %1028 = vmatprep.subr.mxu0 0.0
    %v1029 = vand.u32 %v168, 4294901760
    %v1030 = vsub.f32 %v168, %v1029
    %v1031 = vand.u32 %v1030, 4294901760
    %1032 = vmatpush1.msra.mxu0 %v1031
    %1033 = vmatprep.subr.mxu0 0.0
    %v1034 = vand.u32 %v167, 4294901760
    %v1035 = vsub.f32 %v167, %v1034
    %v1036 = vand.u32 %v1035, 4294901760
    %1037 = vmatpush1.msra.mxu0 %v1036
    %1038 = vmatprep.subr.mxu0 0.0
    %1039 = vmatpush2.msra.mxu0 0.0
    %1040 = vmatprep.subr.mxu0 0.0
    %1041 = vmatpush2.msra.mxu0 0.0
    %1042 = vmatprep.subr.mxu0 0.0
    %1043 = vmatpush2.msra.mxu0 0.0
    %1044 = vmatprep.subr.mxu0 0.0
    %1045 = vmatpush2.msra.mxu0 0.0
    %1046 = vmatprep.subr.mxu0 0.0
    %1047 = vmatpush2.msra.mxu0 0.0
    %1048 = vmatprep.subr.mxu0 0.0
    %1049 = vmatpush2.msra.mxu0 0.0
    %1050 = vmatprep.subr.mxu0 0.0
    %1051 = vmatpush2.msra.mxu0 0.0
    %1052 = vmatprep.subr.mxu0 0.0
    %1053 = vmatpush2.msra.mxu0 0.0
    %1054 = vmatprep.subr.mxu0 0.0
    %1055 = vmatpush2.msra.mxu0 0.0
    %1056 = vmatprep.subr.mxu0 0.0
    %1057 = vmatpush2.msra.mxu0 0.0
    %1058 = vmatprep.subr.mxu0 0.0
    %1059 = vmatpush2.msra.mxu0 0.0
    %1060 = vmatprep.subr.mxu0 0.0
    %1061 = vmatpush2.msra.mxu0 0.0
    %1062 = vmatprep.subr.mxu0 0.0
    %1063 = vmatpush2.msra.mxu0 0.0
    %1064 = vmatprep.subr.mxu0 0.0
    %1065 = vmatpush2.msra.mxu0 0.0
    %1066 = vmatprep.subr.mxu0 0.0
    %1067 = vmatpush2.msra.mxu0 0.0
    %1068 = vmatprep.subr.mxu0 0.0
    %1069 = vmatpush2.msra.mxu0 0.0
    %1070 = vmatprep.mubr.f32.mxu0 0.0
    %v1071 = vand.u32 %v665, 4294901760
    %1072 = vmatmul.mubr.f32.gmra.mxu0 %v1071
    %v1073 = vpop.f32.mrf.mxu0
    %v1074 = vadd.f32 %v991, %v1073
    %v1075 = vpop.f32.mrf.mxu0
    %1076 = vdwg.mxu0
    %1077 = vmatprep.subr.mxu0 0.0
    %1078 = vmatpush1.msra.mxu0 0.0
    %1079 = vmatprep.subr.mxu0 0.0
    %1080 = vmatpush1.msra.mxu0 0.0
    %1081 = vmatprep.subr.mxu0 0.0
    %1082 = vmatpush1.msra.mxu0 0.0
    %1083 = vmatprep.subr.mxu0 0.0
    %1084 = vmatpush1.msra.mxu0 0.0
    %1085 = vmatprep.subr.mxu0 0.0
    %1086 = vmatpush1.msra.mxu0 0.0
    %1087 = vmatprep.subr.mxu0 0.0
    %1088 = vmatpush1.msra.mxu0 0.0
    %1089 = vmatprep.subr.mxu0 0.0
    %1090 = vmatpush1.msra.mxu0 0.0
    %1091 = vmatprep.subr.mxu0 0.0
    %1092 = vmatpush1.msra.mxu0 0.0
    %1093 = vmatprep.subr.mxu0 0.0
    %1094 = vmatpush1.msra.mxu0 0.0
    %1095 = vmatprep.subr.mxu0 0.0
    %1096 = vmatpush1.msra.mxu0 0.0
    %1097 = vmatprep.subr.mxu0 0.0
    %1098 = vmatpush1.msra.mxu0 0.0
    %1099 = vmatprep.subr.mxu0 0.0
    %1100 = vmatpush1.msra.mxu0 0.0
    %1101 = vmatprep.subr.mxu0 0.0
    %v1102 = vand.u32 %v170, 4294901760
    %1103 = vmatpush1.msra.mxu0 %v1102
    %1104 = vmatprep.subr.mxu0 0.0
    %v1105 = vand.u32 %v169, 4294901760
    %1106 = vmatpush1.msra.mxu0 %v1105
    %1107 = vmatprep.subr.mxu0 0.0
    %v1108 = vand.u32 %v168, 4294901760
    %1109 = vmatpush1.msra.mxu0 %v1108
    %1110 = vmatprep.subr.mxu0 0.0
    %v1111 = vand.u32 %v167, 4294901760
    %1112 = vmatpush1.msra.mxu0 %v1111
    %1113 = vmatprep.subr.mxu0 0.0
    %1114 = vmatpush2.msra.mxu0 0.0
    %1115 = vmatprep.subr.mxu0 0.0
    %1116 = vmatpush2.msra.mxu0 0.0
    %1117 = vmatprep.subr.mxu0 0.0
    %1118 = vmatpush2.msra.mxu0 0.0
    %1119 = vmatprep.subr.mxu0 0.0
    %1120 = vmatpush2.msra.mxu0 0.0
    %1121 = vmatprep.subr.mxu0 0.0
    %1122 = vmatpush2.msra.mxu0 0.0
    %1123 = vmatprep.subr.mxu0 0.0
    %1124 = vmatpush2.msra.mxu0 0.0
    %1125 = vmatprep.subr.mxu0 0.0
    %1126 = vmatpush2.msra.mxu0 0.0
    %1127 = vmatprep.subr.mxu0 0.0
    %1128 = vmatpush2.msra.mxu0 0.0
    %1129 = vmatprep.subr.mxu0 0.0
    %1130 = vmatpush2.msra.mxu0 0.0
    %1131 = vmatprep.subr.mxu0 0.0
    %1132 = vmatpush2.msra.mxu0 0.0
    %1133 = vmatprep.subr.mxu0 0.0
    %1134 = vmatpush2.msra.mxu0 0.0
    %1135 = vmatprep.subr.mxu0 0.0
    %1136 = vmatpush2.msra.mxu0 0.0
    %1137 = vmatprep.subr.mxu0 0.0
    %1138 = vmatpush2.msra.mxu0 0.0
    %1139 = vmatprep.subr.mxu0 0.0
    %1140 = vmatpush2.msra.mxu0 0.0
    %1141 = vmatprep.subr.mxu0 0.0
    %1142 = vmatpush2.msra.mxu0 0.0
    %1143 = vmatprep.subr.mxu0 0.0
    %1144 = vmatpush2.msra.mxu0 0.0
    %1145 = vmatprep.mubr.f32.mxu0 0.0
    %v1146 = vand.u32 %v665, 4294901760
    %1147 = vmatmul.mubr.f32.gmra.mxu0 %v1146
    %v1148 = vpop.f32.mrf.mxu0
    %v1149 = vadd.f32 %v1074, %v1148
    %v1150 = vpop.f32.mrf.mxu0
    %1151 = vdwg.mxu0
    %v1152 = vadd.f32 %v663, %v1149
    %v1153 = vtanh.pop %v1152
    %v1154 = vld [vmem:[%s72] sm:$0x3]
    %v1156 = vsel %vm172, %v1153, 0
    %1158 = vmatprep.subr.mxu0 0.0
    %1159 = vmatpush1.msra.mxu0 0.0
    %1160 = vmatprep.subr.mxu0 0.0
    %1161 = vmatpush1.msra.mxu0 0.0
    %1162 = vmatprep.subr.mxu0 0.0
    %1163 = vmatpush1.msra.mxu0 0.0
    %1164 = vmatprep.subr.mxu0 0.0
    %1165 = vmatpush1.msra.mxu0 0.0
    %1166 = vmatprep.subr.mxu0 0.0
    %1167 = vmatpush1.msra.mxu0 0.0
    %1168 = vmatprep.subr.mxu0 0.0
    %1169 = vmatpush1.msra.mxu0 0.0
    %1170 = vmatprep.subr.mxu0 0.0
    %1171 = vmatpush1.msra.mxu0 0.0
    %1172 = vmatprep.subr.mxu0 0.0
    %1173 = vmatpush1.msra.mxu0 0.0
    %1174 = vmatprep.subr.mxu0 0.0
    %1175 = vmatpush1.msra.mxu0 0.0
    %1176 = vmatprep.subr.mxu0 0.0
    %1177 = vmatpush1.msra.mxu0 0.0
    %1178 = vmatprep.subr.mxu0 0.0
    %1179 = vmatpush1.msra.mxu0 0.0
    %1180 = vmatprep.subr.mxu0 0.0
    %1181 = vmatpush1.msra.mxu0 0.0
    %1182 = vmatprep.subr.mxu0 0.0
    %v1183 = vand.u32 %v170, 4294901760
    %1184 = vmatpush1.msra.mxu0 %v1183
    %1185 = vmatprep.subr.mxu0 0.0
    %v1186 = vand.u32 %v169, 4294901760
    %1187 = vmatpush1.msra.mxu0 %v1186
    %1188 = vmatprep.subr.mxu0 0.0
    %v1189 = vand.u32 %v168, 4294901760
    %1190 = vmatpush1.msra.mxu0 %v1189
    %1191 = vmatprep.subr.mxu0 0.0
    %v1192 = vand.u32 %v167, 4294901760
    %1193 = vmatpush1.msra.mxu0 %v1192
    %1194 = vmatprep.subr.mxu0 0.0
    %1195 = vmatpush2.msra.mxu0 0.0
    %1196 = vmatprep.subr.mxu0 0.0
    %1197 = vmatpush2.msra.mxu0 0.0
    %1198 = vmatprep.subr.mxu0 0.0
    %1199 = vmatpush2.msra.mxu0 0.0
    %1200 = vmatprep.subr.mxu0 0.0
    %1201 = vmatpush2.msra.mxu0 0.0
    %1202 = vmatprep.subr.mxu0 0.0
    %1203 = vmatpush2.msra.mxu0 0.0
    %1204 = vmatprep.subr.mxu0 0.0
    %1205 = vmatpush2.msra.mxu0 0.0
    %1206 = vmatprep.subr.mxu0 0.0
    %1207 = vmatpush2.msra.mxu0 0.0
    %1208 = vmatprep.subr.mxu0 0.0
    %1209 = vmatpush2.msra.mxu0 0.0
    %1210 = vmatprep.subr.mxu0 0.0
    %1211 = vmatpush2.msra.mxu0 0.0
    %1212 = vmatprep.subr.mxu0 0.0
    %1213 = vmatpush2.msra.mxu0 0.0
    %1214 = vmatprep.subr.mxu0 0.0
    %1215 = vmatpush2.msra.mxu0 0.0
    %1216 = vmatprep.subr.mxu0 0.0
    %1217 = vmatpush2.msra.mxu0 0.0
    %1218 = vmatprep.subr.mxu0 0.0
    %1219 = vmatpush2.msra.mxu0 0.0
    %1220 = vmatprep.subr.mxu0 0.0
    %1221 = vmatpush2.msra.mxu0 0.0
    %1222 = vmatprep.subr.mxu0 0.0
    %1223 = vmatpush2.msra.mxu0 0.0
    %1224 = vmatprep.subr.mxu0 0.0
    %1225 = vmatpush2.msra.mxu0 0.0
    %1226 = vmatprep.mubr.f32.mxu0 0.0
    %v1227 = vand.u32 %v1156, 4294901760
    %v1228 = vsub.f32 %v1156, %v1227
    %v1229 = vand.u32 %v1228, 4294901760
    %v1230 = vsub.f32 %v1228, %v1229
    %v1231 = vand.u32 %v1230, 4294901760
    %1232 = vmatmul.mubr.f32.gmra.mxu0 %v1231
    %v1233 = vpop.f32.mrf.mxu0
    %v1234 = vadd.f32 0.0, %v1233
    %v1235 = vpop.f32.mrf.mxu0
    %1236 = vdwg.mxu0
    %1237 = vmatprep.subr.mxu0 0.0
    %1238 = vmatpush1.msra.mxu0 0.0
    %1239 = vmatprep.subr.mxu0 0.0
    %1240 = vmatpush1.msra.mxu0 0.0
    %1241 = vmatprep.subr.mxu0 0.0
    %1242 = vmatpush1.msra.mxu0 0.0
    %1243 = vmatprep.subr.mxu0 0.0
    %1244 = vmatpush1.msra.mxu0 0.0
    %1245 = vmatprep.subr.mxu0 0.0
    %1246 = vmatpush1.msra.mxu0 0.0
    %1247 = vmatprep.subr.mxu0 0.0
    %1248 = vmatpush1.msra.mxu0 0.0
    %1249 = vmatprep.subr.mxu0 0.0
    %1250 = vmatpush1.msra.mxu0 0.0
    %1251 = vmatprep.subr.mxu0 0.0
    %1252 = vmatpush1.msra.mxu0 0.0
    %1253 = vmatprep.subr.mxu0 0.0
    %1254 = vmatpush1.msra.mxu0 0.0
    %1255 = vmatprep.subr.mxu0 0.0
    %1256 = vmatpush1.msra.mxu0 0.0
    %1257 = vmatprep.subr.mxu0 0.0
    %1258 = vmatpush1.msra.mxu0 0.0
    %1259 = vmatprep.subr.mxu0 0.0
    %1260 = vmatpush1.msra.mxu0 0.0
    %1261 = vmatprep.subr.mxu0 0.0
    %v1262 = vand.u32 %v170, 4294901760
    %v1263 = vsub.f32 %v170, %v1262
    %v1264 = vand.u32 %v1263, 4294901760
    %v1265 = vsub.f32 %v1263, %v1264
    %v1266 = vand.u32 %v1265, 4294901760
    %1267 = vmatpush1.msra.mxu0 %v1266
    %1268 = vmatprep.subr.mxu0 0.0
    %v1269 = vand.u32 %v169, 4294901760
    %v1270 = vsub.f32 %v169, %v1269
    %v1271 = vand.u32 %v1270, 4294901760
    %v1272 = vsub.f32 %v1270, %v1271
    %v1273 = vand.u32 %v1272, 4294901760
    %1274 = vmatpush1.msra.mxu0 %v1273
    %1275 = vmatprep.subr.mxu0 0.0
    %v1276 = vand.u32 %v168, 4294901760
    %v1277 = vsub.f32 %v168, %v1276
    %v1278 = vand.u32 %v1277, 4294901760
    %v1279 = vsub.f32 %v1277, %v1278
    %v1280 = vand.u32 %v1279, 4294901760
    %1281 = vmatpush1.msra.mxu0 %v1280
    %1282 = vmatprep.subr.mxu0 0.0
    %v1283 = vand.u32 %v167, 4294901760
    %v1284 = vsub.f32 %v167, %v1283
    %v1285 = vand.u32 %v1284, 4294901760
    %v1286 = vsub.f32 %v1284, %v1285
    %v1287 = vand.u32 %v1286, 4294901760
    %1288 = vmatpush1.msra.mxu0 %v1287
    %1289 = vmatprep.subr.mxu0 0.0
    %1290 = vmatpush2.msra.mxu0 0.0
    %1291 = vmatprep.subr.mxu0 0.0
    %1292 = vmatpush2.msra.mxu0 0.0
    %1293 = vmatprep.subr.mxu0 0.0
    %1294 = vmatpush2.msra.mxu0 0.0
    %1295 = vmatprep.subr.mxu0 0.0
    %1296 = vmatpush2.msra.mxu0 0.0
    %1297 = vmatprep.subr.mxu0 0.0
    %1298 = vmatpush2.msra.mxu0 0.0
    %1299 = vmatprep.subr.mxu0 0.0
    %1300 = vmatpush2.msra.mxu0 0.0
    %1301 = vmatprep.subr.mxu0 0.0
    %1302 = vmatpush2.msra.mxu0 0.0
    %1303 = vmatprep.subr.mxu0 0.0
    %1304 = vmatpush2.msra.mxu0 0.0
    %1305 = vmatprep.subr.mxu0 0.0
    %1306 = vmatpush2.msra.mxu0 0.0
    %1307 = vmatprep.subr.mxu0 0.0
    %1308 = vmatpush2.msra.mxu0 0.0
    %1309 = vmatprep.subr.mxu0 0.0
    %1310 = vmatpush2.msra.mxu0 0.0
    %1311 = vmatprep.subr.mxu0 0.0
    %1312 = vmatpush2.msra.mxu0 0.0
    %1313 = vmatprep.subr.mxu0 0.0
    %1314 = vmatpush2.msra.mxu0 0.0
    %1315 = vmatprep.subr.mxu0 0.0
    %1316 = vmatpush2.msra.mxu0 0.0
    %1317 = vmatprep.subr.mxu0 0.0
    %1318 = vmatpush2.msra.mxu0 0.0
    %1319 = vmatprep.subr.mxu0 0.0
    %1320 = vmatpush2.msra.mxu0 0.0
    %1321 = vmatprep.mubr.f32.mxu0 0.0
    %v1322 = vand.u32 %v1156, 4294901760
    %1323 = vmatmul.mubr.f32.gmra.mxu0 %v1322
    %v1324 = vpop.f32.mrf.mxu0
    %v1325 = vadd.f32 %v1234, %v1324
    %v1326 = vpop.f32.mrf.mxu0
    %1327 = vdwg.mxu0
    %1328 = vmatprep.subr.mxu0 0.0
    %1329 = vmatpush1.msra.mxu0 0.0
    %1330 = vmatprep.subr.mxu0 0.0
    %1331 = vmatpush1.msra.mxu0 0.0
    %1332 = vmatprep.subr.mxu0 0.0
    %1333 = vmatpush1.msra.mxu0 0.0
    %1334 = vmatprep.subr.mxu0 0.0
    %1335 = vmatpush1.msra.mxu0 0.0
    %1336 = vmatprep.subr.mxu0 0.0
    %1337 = vmatpush1.msra.mxu0 0.0
    %1338 = vmatprep.subr.mxu0 0.0
    %1339 = vmatpush1.msra.mxu0 0.0
    %1340 = vmatprep.subr.mxu0 0.0
    %1341 = vmatpush1.msra.mxu0 0.0
    %1342 = vmatprep.subr.mxu0 0.0
    %1343 = vmatpush1.msra.mxu0 0.0
    %1344 = vmatprep.subr.mxu0 0.0
    %1345 = vmatpush1.msra.mxu0 0.0
    %1346 = vmatprep.subr.mxu0 0.0
    %1347 = vmatpush1.msra.mxu0 0.0
    %1348 = vmatprep.subr.mxu0 0.0
    %1349 = vmatpush1.msra.mxu0 0.0
    %1350 = vmatprep.subr.mxu0 0.0
    %1351 = vmatpush1.msra.mxu0 0.0
    %1352 = vmatprep.subr.mxu0 0.0
    %v1353 = vand.u32 %v170, 4294901760
    %v1354 = vsub.f32 %v170, %v1353
    %1355 = vmatpush1.msra.mxu0 %v1354
    %1356 = vmatprep.subr.mxu0 0.0
    %v1357 = vand.u32 %v169, 4294901760
    %v1358 = vsub.f32 %v169, %v1357
    %1359 = vmatpush1.msra.mxu0 %v1358
    %1360 = vmatprep.subr.mxu0 0.0
    %v1361 = vand.u32 %v168, 4294901760
    %v1362 = vsub.f32 %v168, %v1361
    %1363 = vmatpush1.msra.mxu0 %v1362
    %1364 = vmatprep.subr.mxu0 0.0
    %v1365 = vand.u32 %v167, 4294901760
    %v1366 = vsub.f32 %v167, %v1365
    %1367 = vmatpush1.msra.mxu0 %v1366
    %1368 = vmatprep.subr.mxu0 0.0
    %1369 = vmatpush2.msra.mxu0 0.0
    %1370 = vmatprep.subr.mxu0 0.0
    %1371 = vmatpush2.msra.mxu0 0.0
    %1372 = vmatprep.subr.mxu0 0.0
    %1373 = vmatpush2.msra.mxu0 0.0
    %1374 = vmatprep.subr.mxu0 0.0
    %1375 = vmatpush2.msra.mxu0 0.0
    %1376 = vmatprep.subr.mxu0 0.0
    %1377 = vmatpush2.msra.mxu0 0.0
    %1378 = vmatprep.subr.mxu0 0.0
    %1379 = vmatpush2.msra.mxu0 0.0
    %1380 = vmatprep.subr.mxu0 0.0
    %1381 = vmatpush2.msra.mxu0 0.0
    %1382 = vmatprep.subr.mxu0 0.0
    %1383 = vmatpush2.msra.mxu0 0.0
    %1384 = vmatprep.subr.mxu0 0.0
    %1385 = vmatpush2.msra.mxu0 0.0
    %1386 = vmatprep.subr.mxu0 0.0
    %1387 = vmatpush2.msra.mxu0 0.0
    %1388 = vmatprep.subr.mxu0 0.0
    %1389 = vmatpush2.msra.mxu0 0.0
    %1390 = vmatprep.subr.mxu0 0.0
    %1391 = vmatpush2.msra.mxu0 0.0
    %1392 = vmatprep.subr.mxu0 0.0
    %1393 = vmatpush2.msra.mxu0 0.0
    %1394 = vmatprep.subr.mxu0 0.0
    %1395 = vmatpush2.msra.mxu0 0.0
    %1396 = vmatprep.subr.mxu0 0.0
    %1397 = vmatpush2.msra.mxu0 0.0
    %1398 = vmatprep.subr.mxu0 0.0
    %1399 = vmatpush2.msra.mxu0 0.0
    %1400 = vmatprep.mubr.f32.mxu0 0.0
    %v1401 = vand.u32 %v1156, 4294901760
    %v1402 = vsub.f32 %v1156, %v1401
    %1403 = vmatmul.mubr.f32.gmra.mxu0 %v1402
    %v1404 = vpop.f32.mrf.mxu0
    %v1405 = vadd.f32 %v1325, %v1404
    %v1406 = vpop.f32.mrf.mxu0
    %1407 = vdwg.mxu0
    %1408 = vmatprep.subr.mxu0 0.0
    %1409 = vmatpush1.msra.mxu0 0.0
    %1410 = vmatprep.subr.mxu0 0.0
    %1411 = vmatpush1.msra.mxu0 0.0
    %1412 = vmatprep.subr.mxu0 0.0
    %1413 = vmatpush1.msra.mxu0 0.0
    %1414 = vmatprep.subr.mxu0 0.0
    %1415 = vmatpush1.msra.mxu0 0.0
    %1416 = vmatprep.subr.mxu0 0.0
    %1417 = vmatpush1.msra.mxu0 0.0
    %1418 = vmatprep.subr.mxu0 0.0
    %1419 = vmatpush1.msra.mxu0 0.0
    %1420 = vmatprep.subr.mxu0 0.0
    %1421 = vmatpush1.msra.mxu0 0.0
    %1422 = vmatprep.subr.mxu0 0.0
    %1423 = vmatpush1.msra.mxu0 0.0
    %1424 = vmatprep.subr.mxu0 0.0
    %1425 = vmatpush1.msra.mxu0 0.0
    %1426 = vmatprep.subr.mxu0 0.0
    %1427 = vmatpush1.msra.mxu0 0.0
    %1428 = vmatprep.subr.mxu0 0.0
    %1429 = vmatpush1.msra.mxu0 0.0
    %1430 = vmatprep.subr.mxu0 0.0
    %1431 = vmatpush1.msra.mxu0 0.0
    %1432 = vmatprep.subr.mxu0 0.0
    %v1433 = vand.u32 %v170, 4294901760
    %1434 = vmatpush1.msra.mxu0 %v1433
    %1435 = vmatprep.subr.mxu0 0.0
    %v1436 = vand.u32 %v169, 4294901760
    %1437 = vmatpush1.msra.mxu0 %v1436
    %1438 = vmatprep.subr.mxu0 0.0
    %v1439 = vand.u32 %v168, 4294901760
    %1440 = vmatpush1.msra.mxu0 %v1439
    %1441 = vmatprep.subr.mxu0 0.0
    %v1442 = vand.u32 %v167, 4294901760
    %1443 = vmatpush1.msra.mxu0 %v1442
    %1444 = vmatprep.subr.mxu0 0.0
    %1445 = vmatpush2.msra.mxu0 0.0
    %1446 = vmatprep.subr.mxu0 0.0
    %1447 = vmatpush2.msra.mxu0 0.0
    %1448 = vmatprep.subr.mxu0 0.0
    %1449 = vmatpush2.msra.mxu0 0.0
    %1450 = vmatprep.subr.mxu0 0.0
    %1451 = vmatpush2.msra.mxu0 0.0
    %1452 = vmatprep.subr.mxu0 0.0
    %1453 = vmatpush2.msra.mxu0 0.0
    %1454 = vmatprep.subr.mxu0 0.0
    %1455 = vmatpush2.msra.mxu0 0.0
    %1456 = vmatprep.subr.mxu0 0.0
    %1457 = vmatpush2.msra.mxu0 0.0
    %1458 = vmatprep.subr.mxu0 0.0
    %1459 = vmatpush2.msra.mxu0 0.0
    %1460 = vmatprep.subr.mxu0 0.0
    %1461 = vmatpush2.msra.mxu0 0.0
    %1462 = vmatprep.subr.mxu0 0.0
    %1463 = vmatpush2.msra.mxu0 0.0
    %1464 = vmatprep.subr.mxu0 0.0
    %1465 = vmatpush2.msra.mxu0 0.0
    %1466 = vmatprep.subr.mxu0 0.0
    %1467 = vmatpush2.msra.mxu0 0.0
    %1468 = vmatprep.subr.mxu0 0.0
    %1469 = vmatpush2.msra.mxu0 0.0
    %1470 = vmatprep.subr.mxu0 0.0
    %1471 = vmatpush2.msra.mxu0 0.0
    %1472 = vmatprep.subr.mxu0 0.0
    %1473 = vmatpush2.msra.mxu0 0.0
    %1474 = vmatprep.subr.mxu0 0.0
    %1475 = vmatpush2.msra.mxu0 0.0
    %1476 = vmatprep.mubr.f32.mxu0 0.0
    %v1477 = vand.u32 %v1156, 4294901760
    %v1478 = vsub.f32 %v1156, %v1477
    %v1479 = vand.u32 %v1478, 4294901760
    %1480 = vmatmul.mubr.f32.gmra.mxu0 %v1479
    %v1481 = vpop.f32.mrf.mxu0
    %v1482 = vadd.f32 %v1405, %v1481
    %v1483 = vpop.f32.mrf.mxu0
    %1484 = vdwg.mxu0
    %1485 = vmatprep.subr.mxu0 0.0
    %1486 = vmatpush1.msra.mxu0 0.0
    %1487 = vmatprep.subr.mxu0 0.0
    %1488 = vmatpush1.msra.mxu0 0.0
    %1489 = vmatprep.subr.mxu0 0.0
    %1490 = vmatpush1.msra.mxu0 0.0
    %1491 = vmatprep.subr.mxu0 0.0
    %1492 = vmatpush1.msra.mxu0 0.0
    %1493 = vmatprep.subr.mxu0 0.0
    %1494 = vmatpush1.msra.mxu0 0.0
    %1495 = vmatprep.subr.mxu0 0.0
    %1496 = vmatpush1.msra.mxu0 0.0
    %1497 = vmatprep.subr.mxu0 0.0
    %1498 = vmatpush1.msra.mxu0 0.0
    %1499 = vmatprep.subr.mxu0 0.0
    %1500 = vmatpush1.msra.mxu0 0.0
    %1501 = vmatprep.subr.mxu0 0.0
    %1502 = vmatpush1.msra.mxu0 0.0
    %1503 = vmatprep.subr.mxu0 0.0
    %1504 = vmatpush1.msra.mxu0 0.0
    %1505 = vmatprep.subr.mxu0 0.0
    %1506 = vmatpush1.msra.mxu0 0.0
    %1507 = vmatprep.subr.mxu0 0.0
    %1508 = vmatpush1.msra.mxu0 0.0
    %1509 = vmatprep.subr.mxu0 0.0
    %v1510 = vand.u32 %v170, 4294901760
    %v1511 = vsub.f32 %v170, %v1510
    %v1512 = vand.u32 %v1511, 4294901760
    %1513 = vmatpush1.msra.mxu0 %v1512
    %1514 = vmatprep.subr.mxu0 0.0
    %v1515 = vand.u32 %v169, 4294901760
    %v1516 = vsub.f32 %v169, %v1515
    %v1517 = vand.u32 %v1516, 4294901760
    %1518 = vmatpush1.msra.mxu0 %v1517
    %1519 = vmatprep.subr.mxu0 0.0
    %v1520 = vand.u32 %v168, 4294901760
    %v1521 = vsub.f32 %v168, %v1520
    %v1522 = vand.u32 %v1521, 4294901760
    %1523 = vmatpush1.msra.mxu0 %v1522
    %1524 = vmatprep.subr.mxu0 0.0
    %v1525 = vand.u32 %v167, 4294901760
    %v1526 = vsub.f32 %v167, %v1525
    %v1527 = vand.u32 %v1526, 4294901760
    %1528 = vmatpush1.msra.mxu0 %v1527
    %1529 = vmatprep.subr.mxu0 0.0
    %1530 = vmatpush2.msra.mxu0 0.0
    %1531 = vmatprep.subr.mxu0 0.0
    %1532 = vmatpush2.msra.mxu0 0.0
    %1533 = vmatprep.subr.mxu0 0.0
    %1534 = vmatpush2.msra.mxu0 0.0
    %1535 = vmatprep.subr.mxu0 0.0
    %1536 = vmatpush2.msra.mxu0 0.0
    %1537 = vmatprep.subr.mxu0 0.0
    %1538 = vmatpush2.msra.mxu0 0.0
    %1539 = vmatprep.subr.mxu0 0.0
    %1540 = vmatpush2.msra.mxu0 0.0
    %1541 = vmatprep.subr.mxu0 0.0
    %1542 = vmatpush2.msra.mxu0 0.0
    %1543 = vmatprep.subr.mxu0 0.0
    %1544 = vmatpush2.msra.mxu0 0.0
    %1545 = vmatprep.subr.mxu0 0.0
    %1546 = vmatpush2.msra.mxu0 0.0
    %1547 = vmatprep.subr.mxu0 0.0
    %1548 = vmatpush2.msra.mxu0 0.0
    %1549 = vmatprep.subr.mxu0 0.0
    %1550 = vmatpush2.msra.mxu0 0.0
    %1551 = vmatprep.subr.mxu0 0.0
    %1552 = vmatpush2.msra.mxu0 0.0
    %1553 = vmatprep.subr.mxu0 0.0
    %1554 = vmatpush2.msra.mxu0 0.0
    %1555 = vmatprep.subr.mxu0 0.0
    %1556 = vmatpush2.msra.mxu0 0.0
    %1557 = vmatprep.subr.mxu0 0.0
    %1558 = vmatpush2.msra.mxu0 0.0
    %1559 = vmatprep.subr.mxu0 0.0
    %1560 = vmatpush2.msra.mxu0 0.0
    %1561 = vmatprep.mubr.f32.mxu0 0.0
    %v1562 = vand.u32 %v1156, 4294901760
    %1563 = vmatmul.mubr.f32.gmra.mxu0 %v1562
    %v1564 = vpop.f32.mrf.mxu0
    %v1565 = vadd.f32 %v1482, %v1564
    %v1566 = vpop.f32.mrf.mxu0
    %1567 = vdwg.mxu0
    %1568 = vmatprep.subr.mxu0 0.0
    %1569 = vmatpush1.msra.mxu0 0.0
    %1570 = vmatprep.subr.mxu0 0.0
    %1571 = vmatpush1.msra.mxu0 0.0
    %1572 = vmatprep.subr.mxu0 0.0
    %1573 = vmatpush1.msra.mxu0 0.0
    %1574 = vmatprep.subr.mxu0 0.0
    %1575 = vmatpush1.msra.mxu0 0.0
    %1576 = vmatprep.subr.mxu0 0.0
    %1577 = vmatpush1.msra.mxu0 0.0
    %1578 = vmatprep.subr.mxu0 0.0
    %1579 = vmatpush1.msra.mxu0 0.0
    %1580 = vmatprep.subr.mxu0 0.0
    %1581 = vmatpush1.msra.mxu0 0.0
    %1582 = vmatprep.subr.mxu0 0.0
    %1583 = vmatpush1.msra.mxu0 0.0
    %1584 = vmatprep.subr.mxu0 0.0
    %1585 = vmatpush1.msra.mxu0 0.0
    %1586 = vmatprep.subr.mxu0 0.0
    %1587 = vmatpush1.msra.mxu0 0.0
    %1588 = vmatprep.subr.mxu0 0.0
    %1589 = vmatpush1.msra.mxu0 0.0
    %1590 = vmatprep.subr.mxu0 0.0
    %1591 = vmatpush1.msra.mxu0 0.0
    %1592 = vmatprep.subr.mxu0 0.0
    %v1593 = vand.u32 %v170, 4294901760
    %1594 = vmatpush1.msra.mxu0 %v1593
    %1595 = vmatprep.subr.mxu0 0.0
    %v1596 = vand.u32 %v169, 4294901760
    %1597 = vmatpush1.msra.mxu0 %v1596
    %1598 = vmatprep.subr.mxu0 0.0
    %v1599 = vand.u32 %v168, 4294901760
    %1600 = vmatpush1.msra.mxu0 %v1599
    %1601 = vmatprep.subr.mxu0 0.0
    %v1602 = vand.u32 %v167, 4294901760
    %1603 = vmatpush1.msra.mxu0 %v1602
    %1604 = vmatprep.subr.mxu0 0.0
    %1605 = vmatpush2.msra.mxu0 0.0
    %1606 = vmatprep.subr.mxu0 0.0
    %1607 = vmatpush2.msra.mxu0 0.0
    %1608 = vmatprep.subr.mxu0 0.0
    %1609 = vmatpush2.msra.mxu0 0.0
    %1610 = vmatprep.subr.mxu0 0.0
    %1611 = vmatpush2.msra.mxu0 0.0
    %1612 = vmatprep.subr.mxu0 0.0
    %1613 = vmatpush2.msra.mxu0 0.0
    %1614 = vmatprep.subr.mxu0 0.0
    %1615 = vmatpush2.msra.mxu0 0.0
    %1616 = vmatprep.subr.mxu0 0.0
    %1617 = vmatpush2.msra.mxu0 0.0
    %1618 = vmatprep.subr.mxu0 0.0
    %1619 = vmatpush2.msra.mxu0 0.0
    %1620 = vmatprep.subr.mxu0 0.0
    %1621 = vmatpush2.msra.mxu0 0.0
    %1622 = vmatprep.subr.mxu0 0.0
    %1623 = vmatpush2.msra.mxu0 0.0
    %1624 = vmatprep.subr.mxu0 0.0
    %1625 = vmatpush2.msra.mxu0 0.0
    %1626 = vmatprep.subr.mxu0 0.0
    %1627 = vmatpush2.msra.mxu0 0.0
    %1628 = vmatprep.subr.mxu0 0.0
    %1629 = vmatpush2.msra.mxu0 0.0
    %1630 = vmatprep.subr.mxu0 0.0
    %1631 = vmatpush2.msra.mxu0 0.0
    %1632 = vmatprep.subr.mxu0 0.0
    %1633 = vmatpush2.msra.mxu0 0.0
    %1634 = vmatprep.subr.mxu0 0.0
    %1635 = vmatpush2.msra.mxu0 0.0
    %1636 = vmatprep.mubr.f32.mxu0 0.0
    %v1637 = vand.u32 %v1156, 4294901760
    %1638 = vmatmul.mubr.f32.gmra.mxu0 %v1637
    %v1639 = vpop.f32.mrf.mxu0
    %v1640 = vadd.f32 %v1565, %v1639
    %v1641 = vpop.f32.mrf.mxu0
    %1642 = vdwg.mxu0
    %v1643 = vadd.f32 %v1154, %v1640
    %v1644 = vtanh.pop %v1643
    %v1645 = vld [vmem:[%s89] sm:$0x3]
    %v1647 = vsel %vm172, %v1644, 0
    %1649 = vmatprep.subr.mxu0 0.0
    %1650 = vmatpush1.msra.mxu0 0.0
    %1651 = vmatprep.subr.mxu0 0.0
    %1652 = vmatpush1.msra.mxu0 0.0
    %1653 = vmatprep.subr.mxu0 0.0
    %1654 = vmatpush1.msra.mxu0 0.0
    %1655 = vmatprep.subr.mxu0 0.0
    %1656 = vmatpush1.msra.mxu0 0.0
    %1657 = vmatprep.subr.mxu0 0.0
    %1658 = vmatpush1.msra.mxu0 0.0
    %1659 = vmatprep.subr.mxu0 0.0
    %1660 = vmatpush1.msra.mxu0 0.0
    %1661 = vmatprep.subr.mxu0 0.0
    %1662 = vmatpush1.msra.mxu0 0.0
    %1663 = vmatprep.subr.mxu0 0.0
    %1664 = vmatpush1.msra.mxu0 0.0
    %1665 = vmatprep.subr.mxu0 0.0
    %1666 = vmatpush1.msra.mxu0 0.0
    %1667 = vmatprep.subr.mxu0 0.0
    %1668 = vmatpush1.msra.mxu0 0.0
    %1669 = vmatprep.subr.mxu0 0.0
    %1670 = vmatpush1.msra.mxu0 0.0
    %1671 = vmatprep.subr.mxu0 0.0
    %1672 = vmatpush1.msra.mxu0 0.0
    %1673 = vmatprep.subr.mxu0 0.0
    %v1674 = vand.u32 %v170, 4294901760
    %1675 = vmatpush1.msra.mxu0 %v1674
    %1676 = vmatprep.subr.mxu0 0.0
    %v1677 = vand.u32 %v169, 4294901760
    %1678 = vmatpush1.msra.mxu0 %v1677
    %1679 = vmatprep.subr.mxu0 0.0
    %v1680 = vand.u32 %v168, 4294901760
    %1681 = vmatpush1.msra.mxu0 %v1680
    %1682 = vmatprep.subr.mxu0 0.0
    %v1683 = vand.u32 %v167, 4294901760
    %1684 = vmatpush1.msra.mxu0 %v1683
    %1685 = vmatprep.subr.mxu0 0.0
    %1686 = vmatpush2.msra.mxu0 0.0
    %1687 = vmatprep.subr.mxu0 0.0
    %1688 = vmatpush2.msra.mxu0 0.0
    %1689 = vmatprep.subr.mxu0 0.0
    %1690 = vmatpush2.msra.mxu0 0.0
    %1691 = vmatprep.subr.mxu0 0.0
    %1692 = vmatpush2.msra.mxu0 0.0
    %1693 = vmatprep.subr.mxu0 0.0
    %1694 = vmatpush2.msra.mxu0 0.0
    %1695 = vmatprep.subr.mxu0 0.0
    %1696 = vmatpush2.msra.mxu0 0.0
    %1697 = vmatprep.subr.mxu0 0.0
    %1698 = vmatpush2.msra.mxu0 0.0
    %1699 = vmatprep.subr.mxu0 0.0
    %1700 = vmatpush2.msra.mxu0 0.0
    %1701 = vmatprep.subr.mxu0 0.0
    %1702 = vmatpush2.msra.mxu0 0.0
    %1703 = vmatprep.subr.mxu0 0.0
    %1704 = vmatpush2.msra.mxu0 0.0
    %1705 = vmatprep.subr.mxu0 0.0
    %1706 = vmatpush2.msra.mxu0 0.0
    %1707 = vmatprep.subr.mxu0 0.0
    %1708 = vmatpush2.msra.mxu0 0.0
    %1709 = vmatprep.subr.mxu0 0.0
    %1710 = vmatpush2.msra.mxu0 0.0
    %1711 = vmatprep.subr.mxu0 0.0
    %1712 = vmatpush2.msra.mxu0 0.0
    %1713 = vmatprep.subr.mxu0 0.0
    %1714 = vmatpush2.msra.mxu0 0.0
    %1715 = vmatprep.subr.mxu0 0.0
    %1716 = vmatpush2.msra.mxu0 0.0
    %1717 = vmatprep.mubr.f32.mxu0 0.0
    %v1718 = vand.u32 %v1647, 4294901760
    %v1719 = vsub.f32 %v1647, %v1718
    %v1720 = vand.u32 %v1719, 4294901760
    %v1721 = vsub.f32 %v1719, %v1720
    %v1722 = vand.u32 %v1721, 4294901760
    %1723 = vmatmul.mubr.f32.gmra.mxu0 %v1722
    %v1724 = vpop.f32.mrf.mxu0
    %v1725 = vadd.f32 0.0, %v1724
    %v1726 = vpop.f32.mrf.mxu0
    %1727 = vdwg.mxu0
    %1728 = vmatprep.subr.mxu0 0.0
    %1729 = vmatpush1.msra.mxu0 0.0
    %1730 = vmatprep.subr.mxu0 0.0
    %1731 = vmatpush1.msra.mxu0 0.0
    %1732 = vmatprep.subr.mxu0 0.0
    %1733 = vmatpush1.msra.mxu0 0.0
    %1734 = vmatprep.subr.mxu0 0.0
    %1735 = vmatpush1.msra.mxu0 0.0
    %1736 = vmatprep.subr.mxu0 0.0
    %1737 = vmatpush1.msra.mxu0 0.0
    %1738 = vmatprep.subr.mxu0 0.0
    %1739 = vmatpush1.msra.mxu0 0.0
    %1740 = vmatprep.subr.mxu0 0.0
    %1741 = vmatpush1.msra.mxu0 0.0
    %1742 = vmatprep.subr.mxu0 0.0
    %1743 = vmatpush1.msra.mxu0 0.0
    %1744 = vmatprep.subr.mxu0 0.0
    %1745 = vmatpush1.msra.mxu0 0.0
    %1746 = vmatprep.subr.mxu0 0.0
    %1747 = vmatpush1.msra.mxu0 0.0
    %1748 = vmatprep.subr.mxu0 0.0
    %1749 = vmatpush1.msra.mxu0 0.0
    %1750 = vmatprep.subr.mxu0 0.0
    %1751 = vmatpush1.msra.mxu0 0.0
    %1752 = vmatprep.subr.mxu0 0.0
    %v1753 = vand.u32 %v170, 4294901760
    %v1754 = vsub.f32 %v170, %v1753
    %v1755 = vand.u32 %v1754, 4294901760
    %v1756 = vsub.f32 %v1754, %v1755
    %v1757 = vand.u32 %v1756, 4294901760
    %1758 = vmatpush1.msra.mxu0 %v1757
    %1759 = vmatprep.subr.mxu0 0.0
    %v1760 = vand.u32 %v169, 4294901760
    %v1761 = vsub.f32 %v169, %v1760
    %v1762 = vand.u32 %v1761, 4294901760
    %v1763 = vsub.f32 %v1761, %v1762
    %v1764 = vand.u32 %v1763, 4294901760
    %1765 = vmatpush1.msra.mxu0 %v1764
    %1766 = vmatprep.subr.mxu0 0.0
    %v1767 = vand.u32 %v168, 4294901760
    %v1768 = vsub.f32 %v168, %v1767
    %v1769 = vand.u32 %v1768, 4294901760
    %v1770 = vsub.f32 %v1768, %v1769
    %v1771 = vand.u32 %v1770, 4294901760
    %1772 = vmatpush1.msra.mxu0 %v1771
    %1773 = vmatprep.subr.mxu0 0.0
    %v1774 = vand.u32 %v167, 4294901760
    %v1775 = vsub.f32 %v167, %v1774
    %v1776 = vand.u32 %v1775, 4294901760
    %v1777 = vsub.f32 %v1775, %v1776
    %v1778 = vand.u32 %v1777, 4294901760
    %1779 = vmatpush1.msra.mxu0 %v1778
    %1780 = vmatprep.subr.mxu0 0.0
    %1781 = vmatpush2.msra.mxu0 0.0
    %1782 = vmatprep.subr.mxu0 0.0
    %1783 = vmatpush2.msra.mxu0 0.0
    %1784 = vmatprep.subr.mxu0 0.0
    %1785 = vmatpush2.msra.mxu0 0.0
    %1786 = vmatprep.subr.mxu0 0.0
    %1787 = vmatpush2.msra.mxu0 0.0
    %1788 = vmatprep.subr.mxu0 0.0
    %1789 = vmatpush2.msra.mxu0 0.0
    %1790 = vmatprep.subr.mxu0 0.0
    %1791 = vmatpush2.msra.mxu0 0.0
    %1792 = vmatprep.subr.mxu0 0.0
    %1793 = vmatpush2.msra.mxu0 0.0
    %1794 = vmatprep.subr.mxu0 0.0
    %1795 = vmatpush2.msra.mxu0 0.0
    %1796 = vmatprep.subr.mxu0 0.0
    %1797 = vmatpush2.msra.mxu0 0.0
    %1798 = vmatprep.subr.mxu0 0.0
    %1799 = vmatpush2.msra.mxu0 0.0
    %1800 = vmatprep.subr.mxu0 0.0
    %1801 = vmatpush2.msra.mxu0 0.0
    %1802 = vmatprep.subr.mxu0 0.0
    %1803 = vmatpush2.msra.mxu0 0.0
    %1804 = vmatprep.subr.mxu0 0.0
    %1805 = vmatpush2.msra.mxu0 0.0
    %1806 = vmatprep.subr.mxu0 0.0
    %1807 = vmatpush2.msra.mxu0 0.0
    %1808 = vmatprep.subr.mxu0 0.0
    %1809 = vmatpush2.msra.mxu0 0.0
    %1810 = vmatprep.subr.mxu0 0.0
    %1811 = vmatpush2.msra.mxu0 0.0
    %1812 = vmatprep.mubr.f32.mxu0 0.0
    %v1813 = vand.u32 %v1647, 4294901760
    %1814 = vmatmul.mubr.f32.gmra.mxu0 %v1813
    %v1815 = vpop.f32.mrf.mxu0
    %v1816 = vadd.f32 %v1725, %v1815
    %v1817 = vpop.f32.mrf.mxu0
    %1818 = vdwg.mxu0
    %1819 = vmatprep.subr.mxu0 0.0
    %1820 = vmatpush1.msra.mxu0 0.0
    %1821 = vmatprep.subr.mxu0 0.0
    %1822 = vmatpush1.msra.mxu0 0.0
    %1823 = vmatprep.subr.mxu0 0.0
    %1824 = vmatpush1.msra.mxu0 0.0
    %1825 = vmatprep.subr.mxu0 0.0
    %1826 = vmatpush1.msra.mxu0 0.0
    %1827 = vmatprep.subr.mxu0 0.0
    %1828 = vmatpush1.msra.mxu0 0.0
    %1829 = vmatprep.subr.mxu0 0.0
    %1830 = vmatpush1.msra.mxu0 0.0
    %1831 = vmatprep.subr.mxu0 0.0
    %1832 = vmatpush1.msra.mxu0 0.0
    %1833 = vmatprep.subr.mxu0 0.0
    %1834 = vmatpush1.msra.mxu0 0.0
    %1835 = vmatprep.subr.mxu0 0.0
    %1836 = vmatpush1.msra.mxu0 0.0
    %1837 = vmatprep.subr.mxu0 0.0
    %1838 = vmatpush1.msra.mxu0 0.0
    %1839 = vmatprep.subr.mxu0 0.0
    %1840 = vmatpush1.msra.mxu0 0.0
    %1841 = vmatprep.subr.mxu0 0.0
    %1842 = vmatpush1.msra.mxu0 0.0
    %1843 = vmatprep.subr.mxu0 0.0
    %v1844 = vand.u32 %v170, 4294901760
    %v1845 = vsub.f32 %v170, %v1844
    %1846 = vmatpush1.msra.mxu0 %v1845
    %1847 = vmatprep.subr.mxu0 0.0
    %v1848 = vand.u32 %v169, 4294901760
    %v1849 = vsub.f32 %v169, %v1848
    %1850 = vmatpush1.msra.mxu0 %v1849
    %1851 = vmatprep.subr.mxu0 0.0
    %v1852 = vand.u32 %v168, 4294901760
    %v1853 = vsub.f32 %v168, %v1852
    %1854 = vmatpush1.msra.mxu0 %v1853
    %1855 = vmatprep.subr.mxu0 0.0
    %v1856 = vand.u32 %v167, 4294901760
    %v1857 = vsub.f32 %v167, %v1856
    %1858 = vmatpush1.msra.mxu0 %v1857
    %1859 = vmatprep.subr.mxu0 0.0
    %1860 = vmatpush2.msra.mxu0 0.0
    %1861 = vmatprep.subr.mxu0 0.0
    %1862 = vmatpush2.msra.mxu0 0.0
    %1863 = vmatprep.subr.mxu0 0.0
    %1864 = vmatpush2.msra.mxu0 0.0
    %1865 = vmatprep.subr.mxu0 0.0
    %1866 = vmatpush2.msra.mxu0 0.0
    %1867 = vmatprep.subr.mxu0 0.0
    %1868 = vmatpush2.msra.mxu0 0.0
    %1869 = vmatprep.subr.mxu0 0.0
    %1870 = vmatpush2.msra.mxu0 0.0
    %1871 = vmatprep.subr.mxu0 0.0
    %1872 = vmatpush2.msra.mxu0 0.0
    %1873 = vmatprep.subr.mxu0 0.0
    %1874 = vmatpush2.msra.mxu0 0.0
    %1875 = vmatprep.subr.mxu0 0.0
    %1876 = vmatpush2.msra.mxu0 0.0
    %1877 = vmatprep.subr.mxu0 0.0
    %1878 = vmatpush2.msra.mxu0 0.0
    %1879 = vmatprep.subr.mxu0 0.0
    %1880 = vmatpush2.msra.mxu0 0.0
    %1881 = vmatprep.subr.mxu0 0.0
    %1882 = vmatpush2.msra.mxu0 0.0
    %1883 = vmatprep.subr.mxu0 0.0
    %1884 = vmatpush2.msra.mxu0 0.0
    %1885 = vmatprep.subr.mxu0 0.0
    %1886 = vmatpush2.msra.mxu0 0.0
    %1887 = vmatprep.subr.mxu0 0.0
    %1888 = vmatpush2.msra.mxu0 0.0
    %1889 = vmatprep.subr.mxu0 0.0
    %1890 = vmatpush2.msra.mxu0 0.0
    %1891 = vmatprep.mubr.f32.mxu0 0.0
    %v1892 = vand.u32 %v1647, 4294901760
    %v1893 = vsub.f32 %v1647, %v1892
    %1894 = vmatmul.mubr.f32.gmra.mxu0 %v1893
    %v1895 = vpop.f32.mrf.mxu0
    %v1896 = vadd.f32 %v1816, %v1895
    %v1897 = vpop.f32.mrf.mxu0
    %1898 = vdwg.mxu0
    %1899 = vmatprep.subr.mxu0 0.0
    %1900 = vmatpush1.msra.mxu0 0.0
    %1901 = vmatprep.subr.mxu0 0.0
    %1902 = vmatpush1.msra.mxu0 0.0
    %1903 = vmatprep.subr.mxu0 0.0
    %1904 = vmatpush1.msra.mxu0 0.0
    %1905 = vmatprep.subr.mxu0 0.0
    %1906 = vmatpush1.msra.mxu0 0.0
    %1907 = vmatprep.subr.mxu0 0.0
    %1908 = vmatpush1.msra.mxu0 0.0
    %1909 = vmatprep.subr.mxu0 0.0
    %1910 = vmatpush1.msra.mxu0 0.0
    %1911 = vmatprep.subr.mxu0 0.0
    %1912 = vmatpush1.msra.mxu0 0.0
    %1913 = vmatprep.subr.mxu0 0.0
    %1914 = vmatpush1.msra.mxu0 0.0
    %1915 = vmatprep.subr.mxu0 0.0
    %1916 = vmatpush1.msra.mxu0 0.0
    %1917 = vmatprep.subr.mxu0 0.0
    %1918 = vmatpush1.msra.mxu0 0.0
    %1919 = vmatprep.subr.mxu0 0.0
    %1920 = vmatpush1.msra.mxu0 0.0
    %1921 = vmatprep.subr.mxu0 0.0
    %1922 = vmatpush1.msra.mxu0 0.0
    %1923 = vmatprep.subr.mxu0 0.0
    %v1924 = vand.u32 %v170, 4294901760
    %1925 = vmatpush1.msra.mxu0 %v1924
    %1926 = vmatprep.subr.mxu0 0.0
    %v1927 = vand.u32 %v169, 4294901760
    %1928 = vmatpush1.msra.mxu0 %v1927
    %1929 = vmatprep.subr.mxu0 0.0
    %v1930 = vand.u32 %v168, 4294901760
    %1931 = vmatpush1.msra.mxu0 %v1930
    %1932 = vmatprep.subr.mxu0 0.0
    %v1933 = vand.u32 %v167, 4294901760
    %1934 = vmatpush1.msra.mxu0 %v1933
    %1935 = vmatprep.subr.mxu0 0.0
    %1936 = vmatpush2.msra.mxu0 0.0
    %1937 = vmatprep.subr.mxu0 0.0
    %1938 = vmatpush2.msra.mxu0 0.0
    %1939 = vmatprep.subr.mxu0 0.0
    %1940 = vmatpush2.msra.mxu0 0.0
    %1941 = vmatprep.subr.mxu0 0.0
    %1942 = vmatpush2.msra.mxu0 0.0
    %1943 = vmatprep.subr.mxu0 0.0
    %1944 = vmatpush2.msra.mxu0 0.0
    %1945 = vmatprep.subr.mxu0 0.0
    %1946 = vmatpush2.msra.mxu0 0.0
    %1947 = vmatprep.subr.mxu0 0.0
    %1948 = vmatpush2.msra.mxu0 0.0
    %1949 = vmatprep.subr.mxu0 0.0
    %1950 = vmatpush2.msra.mxu0 0.0
    %1951 = vmatprep.subr.mxu0 0.0
    %1952 = vmatpush2.msra.mxu0 0.0
    %1953 = vmatprep.subr.mxu0 0.0
    %1954 = vmatpush2.msra.mxu0 0.0
    %1955 = vmatprep.subr.mxu0 0.0
    %1956 = vmatpush2.msra.mxu0 0.0
    %1957 = vmatprep.subr.mxu0 0.0
    %1958 = vmatpush2.msra.mxu0 0.0
    %1959 = vmatprep.subr.mxu0 0.0
    %1960 = vmatpush2.msra.mxu0 0.0
    %1961 = vmatprep.subr.mxu0 0.0
    %1962 = vmatpush2.msra.mxu0 0.0
    %1963 = vmatprep.subr.mxu0 0.0
    %1964 = vmatpush2.msra.mxu0 0.0
    %1965 = vmatprep.subr.mxu0 0.0
    %1966 = vmatpush2.msra.mxu0 0.0
    %1967 = vmatprep.mubr.f32.mxu0 0.0
    %v1968 = vand.u32 %v1647, 4294901760
    %v1969 = vsub.f32 %v1647, %v1968
    %v1970 = vand.u32 %v1969, 4294901760
    %1971 = vmatmul.mubr.f32.gmra.mxu0 %v1970
    %v1972 = vpop.f32.mrf.mxu0
    %v1973 = vadd.f32 %v1896, %v1972
    %v1974 = vpop.f32.mrf.mxu0
    %1975 = vdwg.mxu0
    %1976 = vmatprep.subr.mxu0 0.0
    %1977 = vmatpush1.msra.mxu0 0.0
    %1978 = vmatprep.subr.mxu0 0.0
    %1979 = vmatpush1.msra.mxu0 0.0
    %1980 = vmatprep.subr.mxu0 0.0
    %1981 = vmatpush1.msra.mxu0 0.0
    %1982 = vmatprep.subr.mxu0 0.0
    %1983 = vmatpush1.msra.mxu0 0.0
    %1984 = vmatprep.subr.mxu0 0.0
    %1985 = vmatpush1.msra.mxu0 0.0
    %1986 = vmatprep.subr.mxu0 0.0
    %1987 = vmatpush1.msra.mxu0 0.0
    %1988 = vmatprep.subr.mxu0 0.0
    %1989 = vmatpush1.msra.mxu0 0.0
    %1990 = vmatprep.subr.mxu0 0.0
    %1991 = vmatpush1.msra.mxu0 0.0
    %1992 = vmatprep.subr.mxu0 0.0
    %1993 = vmatpush1.msra.mxu0 0.0
    %1994 = vmatprep.subr.mxu0 0.0
    %1995 = vmatpush1.msra.mxu0 0.0
    %1996 = vmatprep.subr.mxu0 0.0
    %1997 = vmatpush1.msra.mxu0 0.0
    %1998 = vmatprep.subr.mxu0 0.0
    %1999 = vmatpush1.msra.mxu0 0.0
    %2000 = vmatprep.subr.mxu0 0.0
    %v2001 = vand.u32 %v170, 4294901760
    %v2002 = vsub.f32 %v170, %v2001
    %v2003 = vand.u32 %v2002, 4294901760
    %2004 = vmatpush1.msra.mxu0 %v2003
    %2005 = vmatprep.subr.mxu0 0.0
    %v2006 = vand.u32 %v169, 4294901760
    %v2007 = vsub.f32 %v169, %v2006
    %v2008 = vand.u32 %v2007, 4294901760
    %2009 = vmatpush1.msra.mxu0 %v2008
    %2010 = vmatprep.subr.mxu0 0.0
    %v2011 = vand.u32 %v168, 4294901760
    %v2012 = vsub.f32 %v168, %v2011
    %v2013 = vand.u32 %v2012, 4294901760
    %2014 = vmatpush1.msra.mxu0 %v2013
    %2015 = vmatprep.subr.mxu0 0.0
    %v2016 = vand.u32 %v167, 4294901760
    %v2017 = vsub.f32 %v167, %v2016
    %v2018 = vand.u32 %v2017, 4294901760
    %2019 = vmatpush1.msra.mxu0 %v2018
    %2020 = vmatprep.subr.mxu0 0.0
    %2021 = vmatpush2.msra.mxu0 0.0
    %2022 = vmatprep.subr.mxu0 0.0
    %2023 = vmatpush2.msra.mxu0 0.0
    %2024 = vmatprep.subr.mxu0 0.0
    %2025 = vmatpush2.msra.mxu0 0.0
    %2026 = vmatprep.subr.mxu0 0.0
    %2027 = vmatpush2.msra.mxu0 0.0
    %2028 = vmatprep.subr.mxu0 0.0
    %2029 = vmatpush2.msra.mxu0 0.0
    %2030 = vmatprep.subr.mxu0 0.0
    %2031 = vmatpush2.msra.mxu0 0.0
    %2032 = vmatprep.subr.mxu0 0.0
    %2033 = vmatpush2.msra.mxu0 0.0
    %2034 = vmatprep.subr.mxu0 0.0
    %2035 = vmatpush2.msra.mxu0 0.0
    %2036 = vmatprep.subr.mxu0 0.0
    %2037 = vmatpush2.msra.mxu0 0.0
    %2038 = vmatprep.subr.mxu0 0.0
    %2039 = vmatpush2.msra.mxu0 0.0
    %2040 = vmatprep.subr.mxu0 0.0
    %2041 = vmatpush2.msra.mxu0 0.0
    %2042 = vmatprep.subr.mxu0 0.0
    %2043 = vmatpush2.msra.mxu0 0.0
    %2044 = vmatprep.subr.mxu0 0.0
    %2045 = vmatpush2.msra.mxu0 0.0
    %2046 = vmatprep.subr.mxu0 0.0
    %2047 = vmatpush2.msra.mxu0 0.0
    %2048 = vmatprep.subr.mxu0 0.0
    %2049 = vmatpush2.msra.mxu0 0.0
    %2050 = vmatprep.subr.mxu0 0.0
    %2051 = vmatpush2.msra.mxu0 0.0
    %2052 = vmatprep.mubr.f32.mxu0 0.0
    %v2053 = vand.u32 %v1647, 4294901760
    %2054 = vmatmul.mubr.f32.gmra.mxu0 %v2053
    %v2055 = vpop.f32.mrf.mxu0
    %v2056 = vadd.f32 %v1973, %v2055
    %v2057 = vpop.f32.mrf.mxu0
    %2058 = vdwg.mxu0
    %2059 = vmatprep.subr.mxu0 0.0
    %2060 = vmatpush1.msra.mxu0 0.0
    %2061 = vmatprep.subr.mxu0 0.0
    %2062 = vmatpush1.msra.mxu0 0.0
    %2063 = vmatprep.subr.mxu0 0.0
    %2064 = vmatpush1.msra.mxu0 0.0
    %2065 = vmatprep.subr.mxu0 0.0
    %2066 = vmatpush1.msra.mxu0 0.0
    %2067 = vmatprep.subr.mxu0 0.0
    %2068 = vmatpush1.msra.mxu0 0.0
    %2069 = vmatprep.subr.mxu0 0.0
    %2070 = vmatpush1.msra.mxu0 0.0
    %2071 = vmatprep.subr.mxu0 0.0
    %2072 = vmatpush1.msra.mxu0 0.0
    %2073 = vmatprep.subr.mxu0 0.0
    %2074 = vmatpush1.msra.mxu0 0.0
    %2075 = vmatprep.subr.mxu0 0.0
    %2076 = vmatpush1.msra.mxu0 0.0
    %2077 = vmatprep.subr.mxu0 0.0
    %2078 = vmatpush1.msra.mxu0 0.0
    %2079 = vmatprep.subr.mxu0 0.0
    %2080 = vmatpush1.msra.mxu0 0.0
    %2081 = vmatprep.subr.mxu0 0.0
    %2082 = vmatpush1.msra.mxu0 0.0
    %2083 = vmatprep.subr.mxu0 0.0
    %v2084 = vand.u32 %v170, 4294901760
    %2085 = vmatpush1.msra.mxu0 %v2084
    %2086 = vmatprep.subr.mxu0 0.0
    %v2087 = vand.u32 %v169, 4294901760
    %2088 = vmatpush1.msra.mxu0 %v2087
    %2089 = vmatprep.subr.mxu0 0.0
    %v2090 = vand.u32 %v168, 4294901760
    %2091 = vmatpush1.msra.mxu0 %v2090
    %2092 = vmatprep.subr.mxu0 0.0
    %v2093 = vand.u32 %v167, 4294901760
    %2094 = vmatpush1.msra.mxu0 %v2093
    %2095 = vmatprep.subr.mxu0 0.0
    %2096 = vmatpush2.msra.mxu0 0.0
    %2097 = vmatprep.subr.mxu0 0.0
    %2098 = vmatpush2.msra.mxu0 0.0
    %2099 = vmatprep.subr.mxu0 0.0
    %2100 = vmatpush2.msra.mxu0 0.0
    %2101 = vmatprep.subr.mxu0 0.0
    %2102 = vmatpush2.msra.mxu0 0.0
    %2103 = vmatprep.subr.mxu0 0.0
    %2104 = vmatpush2.msra.mxu0 0.0
    %2105 = vmatprep.subr.mxu0 0.0
    %2106 = vmatpush2.msra.mxu0 0.0
    %2107 = vmatprep.subr.mxu0 0.0
    %2108 = vmatpush2.msra.mxu0 0.0
    %2109 = vmatprep.subr.mxu0 0.0
    %2110 = vmatpush2.msra.mxu0 0.0
    %2111 = vmatprep.subr.mxu0 0.0
    %2112 = vmatpush2.msra.mxu0 0.0
    %2113 = vmatprep.subr.mxu0 0.0
    %2114 = vmatpush2.msra.mxu0 0.0
    %2115 = vmatprep.subr.mxu0 0.0
    %2116 = vmatpush2.msra.mxu0 0.0
    %2117 = vmatprep.subr.mxu0 0.0
    %2118 = vmatpush2.msra.mxu0 0.0
    %2119 = vmatprep.subr.mxu0 0.0
    %2120 = vmatpush2.msra.mxu0 0.0
    %2121 = vmatprep.subr.mxu0 0.0
    %2122 = vmatpush2.msra.mxu0 0.0
    %2123 = vmatprep.subr.mxu0 0.0
    %2124 = vmatpush2.msra.mxu0 0.0
    %2125 = vmatprep.subr.mxu0 0.0
    %2126 = vmatpush2.msra.mxu0 0.0
    %2127 = vmatprep.mubr.f32.mxu0 0.0
    %v2128 = vand.u32 %v1647, 4294901760
    %2129 = vmatmul.mubr.f32.gmra.mxu0 %v2128
    %v2130 = vpop.f32.mrf.mxu0
    %v2131 = vadd.f32 %v2056, %v2130
    %v2132 = vpop.f32.mrf.mxu0
    %2133 = vdwg.mxu0
    %v2134 = vadd.f32 %v1645, %v2131
    %v2135 = vtanh.pop %v2134
    %v2136 = vld [vmem:[%s106] sm:$0x3]
    %v2138 = vsel %vm172, %v2135, 0
    %2140 = vmatprep.subr.mxu0 0.0
    %2141 = vmatpush1.msra.mxu0 0.0
    %2142 = vmatprep.subr.mxu0 0.0
    %2143 = vmatpush1.msra.mxu0 0.0
    %2144 = vmatprep.subr.mxu0 0.0
    %2145 = vmatpush1.msra.mxu0 0.0
    %2146 = vmatprep.subr.mxu0 0.0
    %2147 = vmatpush1.msra.mxu0 0.0
    %2148 = vmatprep.subr.mxu0 0.0
    %2149 = vmatpush1.msra.mxu0 0.0
    %2150 = vmatprep.subr.mxu0 0.0
    %2151 = vmatpush1.msra.mxu0 0.0
    %2152 = vmatprep.subr.mxu0 0.0
    %2153 = vmatpush1.msra.mxu0 0.0
    %2154 = vmatprep.subr.mxu0 0.0
    %2155 = vmatpush1.msra.mxu0 0.0
    %2156 = vmatprep.subr.mxu0 0.0
    %2157 = vmatpush1.msra.mxu0 0.0
    %2158 = vmatprep.subr.mxu0 0.0
    %2159 = vmatpush1.msra.mxu0 0.0
    %2160 = vmatprep.subr.mxu0 0.0
    %2161 = vmatpush1.msra.mxu0 0.0
    %2162 = vmatprep.subr.mxu0 0.0
    %2163 = vmatpush1.msra.mxu0 0.0
    %2164 = vmatprep.subr.mxu0 0.0
    %v2165 = vand.u32 %v170, 4294901760
    %2166 = vmatpush1.msra.mxu0 %v2165
    %2167 = vmatprep.subr.mxu0 0.0
    %v2168 = vand.u32 %v169, 4294901760
    %2169 = vmatpush1.msra.mxu0 %v2168
    %2170 = vmatprep.subr.mxu0 0.0
    %v2171 = vand.u32 %v168, 4294901760
    %2172 = vmatpush1.msra.mxu0 %v2171
    %2173 = vmatprep.subr.mxu0 0.0
    %v2174 = vand.u32 %v167, 4294901760
    %2175 = vmatpush1.msra.mxu0 %v2174
    %2176 = vmatprep.subr.mxu0 0.0
    %2177 = vmatpush2.msra.mxu0 0.0
    %2178 = vmatprep.subr.mxu0 0.0
    %2179 = vmatpush2.msra.mxu0 0.0
    %2180 = vmatprep.subr.mxu0 0.0
    %2181 = vmatpush2.msra.mxu0 0.0
    %2182 = vmatprep.subr.mxu0 0.0
    %2183 = vmatpush2.msra.mxu0 0.0
    %2184 = vmatprep.subr.mxu0 0.0
    %2185 = vmatpush2.msra.mxu0 0.0
    %2186 = vmatprep.subr.mxu0 0.0
    %2187 = vmatpush2.msra.mxu0 0.0
    %2188 = vmatprep.subr.mxu0 0.0
    %2189 = vmatpush2.msra.mxu0 0.0
    %2190 = vmatprep.subr.mxu0 0.0
    %2191 = vmatpush2.msra.mxu0 0.0
    %2192 = vmatprep.subr.mxu0 0.0
    %2193 = vmatpush2.msra.mxu0 0.0
    %2194 = vmatprep.subr.mxu0 0.0
    %2195 = vmatpush2.msra.mxu0 0.0
    %2196 = vmatprep.subr.mxu0 0.0
    %2197 = vmatpush2.msra.mxu0 0.0
    %2198 = vmatprep.subr.mxu0 0.0
    %2199 = vmatpush2.msra.mxu0 0.0
    %2200 = vmatprep.subr.mxu0 0.0
    %2201 = vmatpush2.msra.mxu0 0.0
    %2202 = vmatprep.subr.mxu0 0.0
    %2203 = vmatpush2.msra.mxu0 0.0
    %2204 = vmatprep.subr.mxu0 0.0
    %2205 = vmatpush2.msra.mxu0 0.0
    %2206 = vmatprep.subr.mxu0 0.0
    %2207 = vmatpush2.msra.mxu0 0.0
    %2208 = vmatprep.mubr.f32.mxu0 0.0
    %v2209 = vand.u32 %v2138, 4294901760
    %v2210 = vsub.f32 %v2138, %v2209
    %v2211 = vand.u32 %v2210, 4294901760
    %v2212 = vsub.f32 %v2210, %v2211
    %v2213 = vand.u32 %v2212, 4294901760
    %2214 = vmatmul.mubr.f32.gmra.mxu0 %v2213
    %v2215 = vpop.f32.mrf.mxu0
    %v2216 = vadd.f32 0.0, %v2215
    %v2217 = vpop.f32.mrf.mxu0
    %2218 = vdwg.mxu0
    %2219 = vmatprep.subr.mxu0 0.0
    %2220 = vmatpush1.msra.mxu0 0.0
    %2221 = vmatprep.subr.mxu0 0.0
    %2222 = vmatpush1.msra.mxu0 0.0
    %2223 = vmatprep.subr.mxu0 0.0
    %2224 = vmatpush1.msra.mxu0 0.0
    %2225 = vmatprep.subr.mxu0 0.0
    %2226 = vmatpush1.msra.mxu0 0.0
    %2227 = vmatprep.subr.mxu0 0.0
    %2228 = vmatpush1.msra.mxu0 0.0
    %2229 = vmatprep.subr.mxu0 0.0
    %2230 = vmatpush1.msra.mxu0 0.0
    %2231 = vmatprep.subr.mxu0 0.0
    %2232 = vmatpush1.msra.mxu0 0.0
    %2233 = vmatprep.subr.mxu0 0.0
    %2234 = vmatpush1.msra.mxu0 0.0
    %2235 = vmatprep.subr.mxu0 0.0
    %2236 = vmatpush1.msra.mxu0 0.0
    %2237 = vmatprep.subr.mxu0 0.0
    %2238 = vmatpush1.msra.mxu0 0.0
    %2239 = vmatprep.subr.mxu0 0.0
    %2240 = vmatpush1.msra.mxu0 0.0
    %2241 = vmatprep.subr.mxu0 0.0
    %2242 = vmatpush1.msra.mxu0 0.0
    %2243 = vmatprep.subr.mxu0 0.0
    %v2244 = vand.u32 %v170, 4294901760
    %v2245 = vsub.f32 %v170, %v2244
    %v2246 = vand.u32 %v2245, 4294901760
    %v2247 = vsub.f32 %v2245, %v2246
    %v2248 = vand.u32 %v2247, 4294901760
    %2249 = vmatpush1.msra.mxu0 %v2248
    %2250 = vmatprep.subr.mxu0 0.0
    %v2251 = vand.u32 %v169, 4294901760
    %v2252 = vsub.f32 %v169, %v2251
    %v2253 = vand.u32 %v2252, 4294901760
    %v2254 = vsub.f32 %v2252, %v2253
    %v2255 = vand.u32 %v2254, 4294901760
    %2256 = vmatpush1.msra.mxu0 %v2255
    %2257 = vmatprep.subr.mxu0 0.0
    %v2258 = vand.u32 %v168, 4294901760
    %v2259 = vsub.f32 %v168, %v2258
    %v2260 = vand.u32 %v2259, 4294901760
    %v2261 = vsub.f32 %v2259, %v2260
    %v2262 = vand.u32 %v2261, 4294901760
    %2263 = vmatpush1.msra.mxu0 %v2262
    %2264 = vmatprep.subr.mxu0 0.0
    %v2265 = vand.u32 %v167, 4294901760
    %v2266 = vsub.f32 %v167, %v2265
    %v2267 = vand.u32 %v2266, 4294901760
    %v2268 = vsub.f32 %v2266, %v2267
    %v2269 = vand.u32 %v2268, 4294901760
    %2270 = vmatpush1.msra.mxu0 %v2269
    %2271 = vmatprep.subr.mxu0 0.0
    %2272 = vmatpush2.msra.mxu0 0.0
    %2273 = vmatprep.subr.mxu0 0.0
    %2274 = vmatpush2.msra.mxu0 0.0
    %2275 = vmatprep.subr.mxu0 0.0
    %2276 = vmatpush2.msra.mxu0 0.0
    %2277 = vmatprep.subr.mxu0 0.0
    %2278 = vmatpush2.msra.mxu0 0.0
    %2279 = vmatprep.subr.mxu0 0.0
    %2280 = vmatpush2.msra.mxu0 0.0
    %2281 = vmatprep.subr.mxu0 0.0
    %2282 = vmatpush2.msra.mxu0 0.0
    %2283 = vmatprep.subr.mxu0 0.0
    %2284 = vmatpush2.msra.mxu0 0.0
    %2285 = vmatprep.subr.mxu0 0.0
    %2286 = vmatpush2.msra.mxu0 0.0
    %2287 = vmatprep.subr.mxu0 0.0
    %2288 = vmatpush2.msra.mxu0 0.0
    %2289 = vmatprep.subr.mxu0 0.0
    %2290 = vmatpush2.msra.mxu0 0.0
    %2291 = vmatprep.subr.mxu0 0.0
    %2292 = vmatpush2.msra.mxu0 0.0
    %2293 = vmatprep.subr.mxu0 0.0
    %2294 = vmatpush2.msra.mxu0 0.0
    %2295 = vmatprep.subr.mxu0 0.0
    %2296 = vmatpush2.msra.mxu0 0.0
    %2297 = vmatprep.subr.mxu0 0.0
    %2298 = vmatpush2.msra.mxu0 0.0
    %2299 = vmatprep.subr.mxu0 0.0
    %2300 = vmatpush2.msra.mxu0 0.0
    %2301 = vmatprep.subr.mxu0 0.0
    %2302 = vmatpush2.msra.mxu0 0.0
    %2303 = vmatprep.mubr.f32.mxu0 0.0
    %v2304 = vand.u32 %v2138, 4294901760
    %2305 = vmatmul.mubr.f32.gmra.mxu0 %v2304
    %v2306 = vpop.f32.mrf.mxu0
    %v2307 = vadd.f32 %v2216, %v2306
    %v2308 = vpop.f32.mrf.mxu0
    %2309 = vdwg.mxu0
    %2310 = vmatprep.subr.mxu0 0.0
    %2311 = vmatpush1.msra.mxu0 0.0
    %2312 = vmatprep.subr.mxu0 0.0
    %2313 = vmatpush1.msra.mxu0 0.0
    %2314 = vmatprep.subr.mxu0 0.0
    %2315 = vmatpush1.msra.mxu0 0.0
    %2316 = vmatprep.subr.mxu0 0.0
    %2317 = vmatpush1.msra.mxu0 0.0
    %2318 = vmatprep.subr.mxu0 0.0
    %2319 = vmatpush1.msra.mxu0 0.0
    %2320 = vmatprep.subr.mxu0 0.0
    %2321 = vmatpush1.msra.mxu0 0.0
    %2322 = vmatprep.subr.mxu0 0.0
    %2323 = vmatpush1.msra.mxu0 0.0
    %2324 = vmatprep.subr.mxu0 0.0
    %2325 = vmatpush1.msra.mxu0 0.0
    %2326 = vmatprep.subr.mxu0 0.0
    %2327 = vmatpush1.msra.mxu0 0.0
    %2328 = vmatprep.subr.mxu0 0.0
    %2329 = vmatpush1.msra.mxu0 0.0
    %2330 = vmatprep.subr.mxu0 0.0
    %2331 = vmatpush1.msra.mxu0 0.0
    %2332 = vmatprep.subr.mxu0 0.0
    %2333 = vmatpush1.msra.mxu0 0.0
    %2334 = vmatprep.subr.mxu0 0.0
    %v2335 = vand.u32 %v170, 4294901760
    %v2336 = vsub.f32 %v170, %v2335
    %2337 = vmatpush1.msra.mxu0 %v2336
    %2338 = vmatprep.subr.mxu0 0.0
    %v2339 = vand.u32 %v169, 4294901760
    %v2340 = vsub.f32 %v169, %v2339
    %2341 = vmatpush1.msra.mxu0 %v2340
    %2342 = vmatprep.subr.mxu0 0.0
    %v2343 = vand.u32 %v168, 4294901760
    %v2344 = vsub.f32 %v168, %v2343
    %2345 = vmatpush1.msra.mxu0 %v2344
    %2346 = vmatprep.subr.mxu0 0.0
    %v2347 = vand.u32 %v167, 4294901760
    %v2348 = vsub.f32 %v167, %v2347
    %2349 = vmatpush1.msra.mxu0 %v2348
    %2350 = vmatprep.subr.mxu0 0.0
    %2351 = vmatpush2.msra.mxu0 0.0
    %2352 = vmatprep.subr.mxu0 0.0
    %2353 = vmatpush2.msra.mxu0 0.0
    %2354 = vmatprep.subr.mxu0 0.0
    %2355 = vmatpush2.msra.mxu0 0.0
    %2356 = vmatprep.subr.mxu0 0.0
    %2357 = vmatpush2.msra.mxu0 0.0
    %2358 = vmatprep.subr.mxu0 0.0
    %2359 = vmatpush2.msra.mxu0 0.0
    %2360 = vmatprep.subr.mxu0 0.0
    %2361 = vmatpush2.msra.mxu0 0.0
    %2362 = vmatprep.subr.mxu0 0.0
    %2363 = vmatpush2.msra.mxu0 0.0
    %2364 = vmatprep.subr.mxu0 0.0
    %2365 = vmatpush2.msra.mxu0 0.0
    %2366 = vmatprep.subr.mxu0 0.0
    %2367 = vmatpush2.msra.mxu0 0.0
    %2368 = vmatprep.subr.mxu0 0.0
    %2369 = vmatpush2.msra.mxu0 0.0
    %2370 = vmatprep.subr.mxu0 0.0
    %2371 = vmatpush2.msra.mxu0 0.0
    %2372 = vmatprep.subr.mxu0 0.0
    %2373 = vmatpush2.msra.mxu0 0.0
    %2374 = vmatprep.subr.mxu0 0.0
    %2375 = vmatpush2.msra.mxu0 0.0
    %2376 = vmatprep.subr.mxu0 0.0
    %2377 = vmatpush2.msra.mxu0 0.0
    %2378 = vmatprep.subr.mxu0 0.0
    %2379 = vmatpush2.msra.mxu0 0.0
    %2380 = vmatprep.subr.mxu0 0.0
    %2381 = vmatpush2.msra.mxu0 0.0
    %2382 = vmatprep.mubr.f32.mxu0 0.0
    %v2383 = vand.u32 %v2138, 4294901760
    %v2384 = vsub.f32 %v2138, %v2383
    %2385 = vmatmul.mubr.f32.gmra.mxu0 %v2384
    %v2386 = vpop.f32.mrf.mxu0
    %v2387 = vadd.f32 %v2307, %v2386
    %v2388 = vpop.f32.mrf.mxu0
    %2389 = vdwg.mxu0
    %2390 = vmatprep.subr.mxu0 0.0
    %2391 = vmatpush1.msra.mxu0 0.0
    %2392 = vmatprep.subr.mxu0 0.0
    %2393 = vmatpush1.msra.mxu0 0.0
    %2394 = vmatprep.subr.mxu0 0.0
    %2395 = vmatpush1.msra.mxu0 0.0
    %2396 = vmatprep.subr.mxu0 0.0
    %2397 = vmatpush1.msra.mxu0 0.0
    %2398 = vmatprep.subr.mxu0 0.0
    %2399 = vmatpush1.msra.mxu0 0.0
    %2400 = vmatprep.subr.mxu0 0.0
    %2401 = vmatpush1.msra.mxu0 0.0
    %2402 = vmatprep.subr.mxu0 0.0
    %2403 = vmatpush1.msra.mxu0 0.0
    %2404 = vmatprep.subr.mxu0 0.0
    %2405 = vmatpush1.msra.mxu0 0.0
    %2406 = vmatprep.subr.mxu0 0.0
    %2407 = vmatpush1.msra.mxu0 0.0
    %2408 = vmatprep.subr.mxu0 0.0
    %2409 = vmatpush1.msra.mxu0 0.0
    %2410 = vmatprep.subr.mxu0 0.0
    %2411 = vmatpush1.msra.mxu0 0.0
    %2412 = vmatprep.subr.mxu0 0.0
    %2413 = vmatpush1.msra.mxu0 0.0
    %2414 = vmatprep.subr.mxu0 0.0
    %v2415 = vand.u32 %v170, 4294901760
    %2416 = vmatpush1.msra.mxu0 %v2415
    %2417 = vmatprep.subr.mxu0 0.0
    %v2418 = vand.u32 %v169, 4294901760
    %2419 = vmatpush1.msra.mxu0 %v2418
    %2420 = vmatprep.subr.mxu0 0.0
    %v2421 = vand.u32 %v168, 4294901760
    %2422 = vmatpush1.msra.mxu0 %v2421
    %2423 = vmatprep.subr.mxu0 0.0
    %v2424 = vand.u32 %v167, 4294901760
    %2425 = vmatpush1.msra.mxu0 %v2424
    %2426 = vmatprep.subr.mxu0 0.0
    %2427 = vmatpush2.msra.mxu0 0.0
    %2428 = vmatprep.subr.mxu0 0.0
    %2429 = vmatpush2.msra.mxu0 0.0
    %2430 = vmatprep.subr.mxu0 0.0
    %2431 = vmatpush2.msra.mxu0 0.0
    %2432 = vmatprep.subr.mxu0 0.0
    %2433 = vmatpush2.msra.mxu0 0.0
    %2434 = vmatprep.subr.mxu0 0.0
    %2435 = vmatpush2.msra.mxu0 0.0
    %2436 = vmatprep.subr.mxu0 0.0
    %2437 = vmatpush2.msra.mxu0 0.0
    %2438 = vmatprep.subr.mxu0 0.0
    %2439 = vmatpush2.msra.mxu0 0.0
    %2440 = vmatprep.subr.mxu0 0.0
    %2441 = vmatpush2.msra.mxu0 0.0
    %2442 = vmatprep.subr.mxu0 0.0
    %2443 = vmatpush2.msra.mxu0 0.0
    %2444 = vmatprep.subr.mxu0 0.0
    %2445 = vmatpush2.msra.mxu0 0.0
    %2446 = vmatprep.subr.mxu0 0.0
    %2447 = vmatpush2.msra.mxu0 0.0
    %2448 = vmatprep.subr.mxu0 0.0
    %2449 = vmatpush2.msra.mxu0 0.0
    %2450 = vmatprep.subr.mxu0 0.0
    %2451 = vmatpush2.msra.mxu0 0.0
    %2452 = vmatprep.subr.mxu0 0.0
    %2453 = vmatpush2.msra.mxu0 0.0
    %2454 = vmatprep.subr.mxu0 0.0
    %2455 = vmatpush2.msra.mxu0 0.0
    %2456 = vmatprep.subr.mxu0 0.0
    %2457 = vmatpush2.msra.mxu0 0.0
    %2458 = vmatprep.mubr.f32.mxu0 0.0
    %v2459 = vand.u32 %v2138, 4294901760
    %v2460 = vsub.f32 %v2138, %v2459
    %v2461 = vand.u32 %v2460, 4294901760
    %2462 = vmatmul.mubr.f32.gmra.mxu0 %v2461
    %v2463 = vpop.f32.mrf.mxu0
    %v2464 = vadd.f32 %v2387, %v2463
    %v2465 = vpop.f32.mrf.mxu0
    %2466 = vdwg.mxu0
    %2467 = vmatprep.subr.mxu0 0.0
    %2468 = vmatpush1.msra.mxu0 0.0
    %2469 = vmatprep.subr.mxu0 0.0
    %2470 = vmatpush1.msra.mxu0 0.0
    %2471 = vmatprep.subr.mxu0 0.0
    %2472 = vmatpush1.msra.mxu0 0.0
    %2473 = vmatprep.subr.mxu0 0.0
    %2474 = vmatpush1.msra.mxu0 0.0
    %2475 = vmatprep.subr.mxu0 0.0
    %2476 = vmatpush1.msra.mxu0 0.0
    %2477 = vmatprep.subr.mxu0 0.0
    %2478 = vmatpush1.msra.mxu0 0.0
    %2479 = vmatprep.subr.mxu0 0.0
    %2480 = vmatpush1.msra.mxu0 0.0
    %2481 = vmatprep.subr.mxu0 0.0
    %2482 = vmatpush1.msra.mxu0 0.0
    %2483 = vmatprep.subr.mxu0 0.0
    %2484 = vmatpush1.msra.mxu0 0.0
    %2485 = vmatprep.subr.mxu0 0.0
    %2486 = vmatpush1.msra.mxu0 0.0
    %2487 = vmatprep.subr.mxu0 0.0
    %2488 = vmatpush1.msra.mxu0 0.0
    %2489 = vmatprep.subr.mxu0 0.0
    %2490 = vmatpush1.msra.mxu0 0.0
    %2491 = vmatprep.subr.mxu0 0.0
    %v2492 = vand.u32 %v170, 4294901760
    %v2493 = vsub.f32 %v170, %v2492
    %v2494 = vand.u32 %v2493, 4294901760
    %2495 = vmatpush1.msra.mxu0 %v2494
    %2496 = vmatprep.subr.mxu0 0.0
    %v2497 = vand.u32 %v169, 4294901760
    %v2498 = vsub.f32 %v169, %v2497
    %v2499 = vand.u32 %v2498, 4294901760
    %2500 = vmatpush1.msra.mxu0 %v2499
    %2501 = vmatprep.subr.mxu0 0.0
    %v2502 = vand.u32 %v168, 4294901760
    %v2503 = vsub.f32 %v168, %v2502
    %v2504 = vand.u32 %v2503, 4294901760
    %2505 = vmatpush1.msra.mxu0 %v2504
    %2506 = vmatprep.subr.mxu0 0.0
    %v2507 = vand.u32 %v167, 4294901760
    %v2508 = vsub.f32 %v167, %v2507
    %v2509 = vand.u32 %v2508, 4294901760
    %2510 = vmatpush1.msra.mxu0 %v2509
    %2511 = vmatprep.subr.mxu0 0.0
    %2512 = vmatpush2.msra.mxu0 0.0
    %2513 = vmatprep.subr.mxu0 0.0
    %2514 = vmatpush2.msra.mxu0 0.0
    %2515 = vmatprep.subr.mxu0 0.0
    %2516 = vmatpush2.msra.mxu0 0.0
    %2517 = vmatprep.subr.mxu0 0.0
    %2518 = vmatpush2.msra.mxu0 0.0
    %2519 = vmatprep.subr.mxu0 0.0
    %2520 = vmatpush2.msra.mxu0 0.0
    %2521 = vmatprep.subr.mxu0 0.0
    %2522 = vmatpush2.msra.mxu0 0.0
    %2523 = vmatprep.subr.mxu0 0.0
    %2524 = vmatpush2.msra.mxu0 0.0
    %2525 = vmatprep.subr.mxu0 0.0
    %2526 = vmatpush2.msra.mxu0 0.0
    %2527 = vmatprep.subr.mxu0 0.0
    %2528 = vmatpush2.msra.mxu0 0.0
    %2529 = vmatprep.subr.mxu0 0.0
    %2530 = vmatpush2.msra.mxu0 0.0
    %2531 = vmatprep.subr.mxu0 0.0
    %2532 = vmatpush2.msra.mxu0 0.0
    %2533 = vmatprep.subr.mxu0 0.0
    %2534 = vmatpush2.msra.mxu0 0.0
    %2535 = vmatprep.subr.mxu0 0.0
    %2536 = vmatpush2.msra.mxu0 0.0
    %2537 = vmatprep.subr.mxu0 0.0
    %2538 = vmatpush2.msra.mxu0 0.0
    %2539 = vmatprep.subr.mxu0 0.0
    %2540 = vmatpush2.msra.mxu0 0.0
    %2541 = vmatprep.subr.mxu0 0.0
    %2542 = vmatpush2.msra.mxu0 0.0
    %2543 = vmatprep.mubr.f32.mxu0 0.0
    %v2544 = vand.u32 %v2138, 4294901760
    %2545 = vmatmul.mubr.f32.gmra.mxu0 %v2544
    %v2546 = vpop.f32.mrf.mxu0
    %v2547 = vadd.f32 %v2464, %v2546
    %v2548 = vpop.f32.mrf.mxu0
    %2549 = vdwg.mxu0
    %2550 = vmatprep.subr.mxu0 0.0
    %2551 = vmatpush1.msra.mxu0 0.0
    %2552 = vmatprep.subr.mxu0 0.0
    %2553 = vmatpush1.msra.mxu0 0.0
    %2554 = vmatprep.subr.mxu0 0.0
    %2555 = vmatpush1.msra.mxu0 0.0
    %2556 = vmatprep.subr.mxu0 0.0
    %2557 = vmatpush1.msra.mxu0 0.0
    %2558 = vmatprep.subr.mxu0 0.0
    %2559 = vmatpush1.msra.mxu0 0.0
    %2560 = vmatprep.subr.mxu0 0.0
    %2561 = vmatpush1.msra.mxu0 0.0
    %2562 = vmatprep.subr.mxu0 0.0
    %2563 = vmatpush1.msra.mxu0 0.0
    %2564 = vmatprep.subr.mxu0 0.0
    %2565 = vmatpush1.msra.mxu0 0.0
    %2566 = vmatprep.subr.mxu0 0.0
    %2567 = vmatpush1.msra.mxu0 0.0
    %2568 = vmatprep.subr.mxu0 0.0
    %2569 = vmatpush1.msra.mxu0 0.0
    %2570 = vmatprep.subr.mxu0 0.0
    %2571 = vmatpush1.msra.mxu0 0.0
    %2572 = vmatprep.subr.mxu0 0.0
    %2573 = vmatpush1.msra.mxu0 0.0
    %2574 = vmatprep.subr.mxu0 0.0
    %v2575 = vand.u32 %v170, 4294901760
    %2576 = vmatpush1.msra.mxu0 %v2575
    %2577 = vmatprep.subr.mxu0 0.0
    %v2578 = vand.u32 %v169, 4294901760
    %2579 = vmatpush1.msra.mxu0 %v2578
    %2580 = vmatprep.subr.mxu0 0.0
    %v2581 = vand.u32 %v168, 4294901760
    %2582 = vmatpush1.msra.mxu0 %v2581
    %2583 = vmatprep.subr.mxu0 0.0
    %v2584 = vand.u32 %v167, 4294901760
    %2585 = vmatpush1.msra.mxu0 %v2584
    %2586 = vmatprep.subr.mxu0 0.0
    %2587 = vmatpush2.msra.mxu0 0.0
    %2588 = vmatprep.subr.mxu0 0.0
    %2589 = vmatpush2.msra.mxu0 0.0
    %2590 = vmatprep.subr.mxu0 0.0
    %2591 = vmatpush2.msra.mxu0 0.0
    %2592 = vmatprep.subr.mxu0 0.0
    %2593 = vmatpush2.msra.mxu0 0.0
    %2594 = vmatprep.subr.mxu0 0.0
    %2595 = vmatpush2.msra.mxu0 0.0
    %2596 = vmatprep.subr.mxu0 0.0
    %2597 = vmatpush2.msra.mxu0 0.0
    %2598 = vmatprep.subr.mxu0 0.0
    %2599 = vmatpush2.msra.mxu0 0.0
    %2600 = vmatprep.subr.mxu0 0.0
    %2601 = vmatpush2.msra.mxu0 0.0
    %2602 = vmatprep.subr.mxu0 0.0
    %2603 = vmatpush2.msra.mxu0 0.0
    %2604 = vmatprep.subr.mxu0 0.0
    %2605 = vmatpush2.msra.mxu0 0.0
    %2606 = vmatprep.subr.mxu0 0.0
    %2607 = vmatpush2.msra.mxu0 0.0
    %2608 = vmatprep.subr.mxu0 0.0
    %2609 = vmatpush2.msra.mxu0 0.0
    %2610 = vmatprep.subr.mxu0 0.0
    %2611 = vmatpush2.msra.mxu0 0.0
    %2612 = vmatprep.subr.mxu0 0.0
    %2613 = vmatpush2.msra.mxu0 0.0
    %2614 = vmatprep.subr.mxu0 0.0
    %2615 = vmatpush2.msra.mxu0 0.0
    %2616 = vmatprep.subr.mxu0 0.0
    %2617 = vmatpush2.msra.mxu0 0.0
    %2618 = vmatprep.mubr.f32.mxu0 0.0
    %v2619 = vand.u32 %v2138, 4294901760
    %2620 = vmatmul.mubr.f32.gmra.mxu0 %v2619
    %v2621 = vpop.f32.mrf.mxu0
    %v2622 = vadd.f32 %v2547, %v2621
    %v2623 = vpop.f32.mrf.mxu0
    %2624 = vdwg.mxu0
    %v2625 = vadd.f32 %v2136, %v2622
    %v2626 = vtanh.pop %v2625
    %v2627 = vld [vmem:[%s123] sm:$0x3]
    %v2629 = vsel %vm172, %v2626, 0
    %2631 = vmatprep.subr.mxu0 0.0
    %2632 = vmatpush1.msra.mxu0 0.0
    %2633 = vmatprep.subr.mxu0 0.0
    %2634 = vmatpush1.msra.mxu0 0.0
    %2635 = vmatprep.subr.mxu0 0.0
    %2636 = vmatpush1.msra.mxu0 0.0
    %2637 = vmatprep.subr.mxu0 0.0
    %2638 = vmatpush1.msra.mxu0 0.0
    %2639 = vmatprep.subr.mxu0 0.0
    %2640 = vmatpush1.msra.mxu0 0.0
    %2641 = vmatprep.subr.mxu0 0.0
    %2642 = vmatpush1.msra.mxu0 0.0
    %2643 = vmatprep.subr.mxu0 0.0
    %2644 = vmatpush1.msra.mxu0 0.0
    %2645 = vmatprep.subr.mxu0 0.0
    %2646 = vmatpush1.msra.mxu0 0.0
    %2647 = vmatprep.subr.mxu0 0.0
    %2648 = vmatpush1.msra.mxu0 0.0
    %2649 = vmatprep.subr.mxu0 0.0
    %2650 = vmatpush1.msra.mxu0 0.0
    %2651 = vmatprep.subr.mxu0 0.0
    %2652 = vmatpush1.msra.mxu0 0.0
    %2653 = vmatprep.subr.mxu0 0.0
    %2654 = vmatpush1.msra.mxu0 0.0
    %2655 = vmatprep.subr.mxu0 0.0
    %v2656 = vand.u32 %v170, 4294901760
    %2657 = vmatpush1.msra.mxu0 %v2656
    %2658 = vmatprep.subr.mxu0 0.0
    %v2659 = vand.u32 %v169, 4294901760
    %2660 = vmatpush1.msra.mxu0 %v2659
    %2661 = vmatprep.subr.mxu0 0.0
    %v2662 = vand.u32 %v168, 4294901760
    %2663 = vmatpush1.msra.mxu0 %v2662
    %2664 = vmatprep.subr.mxu0 0.0
    %v2665 = vand.u32 %v167, 4294901760
    %2666 = vmatpush1.msra.mxu0 %v2665
    %2667 = vmatprep.subr.mxu0 0.0
    %2668 = vmatpush2.msra.mxu0 0.0
    %2669 = vmatprep.subr.mxu0 0.0
    %2670 = vmatpush2.msra.mxu0 0.0
    %2671 = vmatprep.subr.mxu0 0.0
    %2672 = vmatpush2.msra.mxu0 0.0
    %2673 = vmatprep.subr.mxu0 0.0
    %2674 = vmatpush2.msra.mxu0 0.0
    %2675 = vmatprep.subr.mxu0 0.0
    %2676 = vmatpush2.msra.mxu0 0.0
    %2677 = vmatprep.subr.mxu0 0.0
    %2678 = vmatpush2.msra.mxu0 0.0
    %2679 = vmatprep.subr.mxu0 0.0
    %2680 = vmatpush2.msra.mxu0 0.0
    %2681 = vmatprep.subr.mxu0 0.0
    %2682 = vmatpush2.msra.mxu0 0.0
    %2683 = vmatprep.subr.mxu0 0.0
    %2684 = vmatpush2.msra.mxu0 0.0
    %2685 = vmatprep.subr.mxu0 0.0
    %2686 = vmatpush2.msra.mxu0 0.0
    %2687 = vmatprep.subr.mxu0 0.0
    %2688 = vmatpush2.msra.mxu0 0.0
    %2689 = vmatprep.subr.mxu0 0.0
    %2690 = vmatpush2.msra.mxu0 0.0
    %2691 = vmatprep.subr.mxu0 0.0
    %2692 = vmatpush2.msra.mxu0 0.0
    %2693 = vmatprep.subr.mxu0 0.0
    %2694 = vmatpush2.msra.mxu0 0.0
    %2695 = vmatprep.subr.mxu0 0.0
    %2696 = vmatpush2.msra.mxu0 0.0
    %2697 = vmatprep.subr.mxu0 0.0
    %2698 = vmatpush2.msra.mxu0 0.0
    %2699 = vmatprep.mubr.f32.mxu0 0.0
    %v2700 = vand.u32 %v2629, 4294901760
    %v2701 = vsub.f32 %v2629, %v2700
    %v2702 = vand.u32 %v2701, 4294901760
    %v2703 = vsub.f32 %v2701, %v2702
    %v2704 = vand.u32 %v2703, 4294901760
    %2705 = vmatmul.mubr.f32.gmra.mxu0 %v2704
    %v2706 = vpop.f32.mrf.mxu0
    %v2707 = vadd.f32 0.0, %v2706
    %v2708 = vpop.f32.mrf.mxu0
    %2709 = vdwg.mxu0
    %2710 = vmatprep.subr.mxu0 0.0
    %2711 = vmatpush1.msra.mxu0 0.0
    %2712 = vmatprep.subr.mxu0 0.0
    %2713 = vmatpush1.msra.mxu0 0.0
    %2714 = vmatprep.subr.mxu0 0.0
    %2715 = vmatpush1.msra.mxu0 0.0
    %2716 = vmatprep.subr.mxu0 0.0
    %2717 = vmatpush1.msra.mxu0 0.0
    %2718 = vmatprep.subr.mxu0 0.0
    %2719 = vmatpush1.msra.mxu0 0.0
    %2720 = vmatprep.subr.mxu0 0.0
    %2721 = vmatpush1.msra.mxu0 0.0
    %2722 = vmatprep.subr.mxu0 0.0
    %2723 = vmatpush1.msra.mxu0 0.0
    %2724 = vmatprep.subr.mxu0 0.0
    %2725 = vmatpush1.msra.mxu0 0.0
    %2726 = vmatprep.subr.mxu0 0.0
    %2727 = vmatpush1.msra.mxu0 0.0
    %2728 = vmatprep.subr.mxu0 0.0
    %2729 = vmatpush1.msra.mxu0 0.0
    %2730 = vmatprep.subr.mxu0 0.0
    %2731 = vmatpush1.msra.mxu0 0.0
    %2732 = vmatprep.subr.mxu0 0.0
    %2733 = vmatpush1.msra.mxu0 0.0
    %2734 = vmatprep.subr.mxu0 0.0
    %v2735 = vand.u32 %v170, 4294901760
    %v2736 = vsub.f32 %v170, %v2735
    %v2737 = vand.u32 %v2736, 4294901760
    %v2738 = vsub.f32 %v2736, %v2737
    %v2739 = vand.u32 %v2738, 4294901760
    %2740 = vmatpush1.msra.mxu0 %v2739
    %2741 = vmatprep.subr.mxu0 0.0
    %v2742 = vand.u32 %v169, 4294901760
    %v2743 = vsub.f32 %v169, %v2742
    %v2744 = vand.u32 %v2743, 4294901760
    %v2745 = vsub.f32 %v2743, %v2744
    %v2746 = vand.u32 %v2745, 4294901760
    %2747 = vmatpush1.msra.mxu0 %v2746
    %2748 = vmatprep.subr.mxu0 0.0
    %v2749 = vand.u32 %v168, 4294901760
    %v2750 = vsub.f32 %v168, %v2749
    %v2751 = vand.u32 %v2750, 4294901760
    %v2752 = vsub.f32 %v2750, %v2751
    %v2753 = vand.u32 %v2752, 4294901760
    %2754 = vmatpush1.msra.mxu0 %v2753
    %2755 = vmatprep.subr.mxu0 0.0
    %v2756 = vand.u32 %v167, 4294901760
    %v2757 = vsub.f32 %v167, %v2756
    %v2758 = vand.u32 %v2757, 4294901760
    %v2759 = vsub.f32 %v2757, %v2758
    %v2760 = vand.u32 %v2759, 4294901760
    %2761 = vmatpush1.msra.mxu0 %v2760
    %2762 = vmatprep.subr.mxu0 0.0
    %2763 = vmatpush2.msra.mxu0 0.0
    %2764 = vmatprep.subr.mxu0 0.0
    %2765 = vmatpush2.msra.mxu0 0.0
    %2766 = vmatprep.subr.mxu0 0.0
    %2767 = vmatpush2.msra.mxu0 0.0
    %2768 = vmatprep.subr.mxu0 0.0
    %2769 = vmatpush2.msra.mxu0 0.0
    %2770 = vmatprep.subr.mxu0 0.0
    %2771 = vmatpush2.msra.mxu0 0.0
    %2772 = vmatprep.subr.mxu0 0.0
    %2773 = vmatpush2.msra.mxu0 0.0
    %2774 = vmatprep.subr.mxu0 0.0
    %2775 = vmatpush2.msra.mxu0 0.0
    %2776 = vmatprep.subr.mxu0 0.0
    %2777 = vmatpush2.msra.mxu0 0.0
    %2778 = vmatprep.subr.mxu0 0.0
    %2779 = vmatpush2.msra.mxu0 0.0
    %2780 = vmatprep.subr.mxu0 0.0
    %2781 = vmatpush2.msra.mxu0 0.0
    %2782 = vmatprep.subr.mxu0 0.0
    %2783 = vmatpush2.msra.mxu0 0.0
    %2784 = vmatprep.subr.mxu0 0.0
    %2785 = vmatpush2.msra.mxu0 0.0
    %2786 = vmatprep.subr.mxu0 0.0
    %2787 = vmatpush2.msra.mxu0 0.0
    %2788 = vmatprep.subr.mxu0 0.0
    %2789 = vmatpush2.msra.mxu0 0.0
    %2790 = vmatprep.subr.mxu0 0.0
    %2791 = vmatpush2.msra.mxu0 0.0
    %2792 = vmatprep.subr.mxu0 0.0
    %2793 = vmatpush2.msra.mxu0 0.0
    %2794 = vmatprep.mubr.f32.mxu0 0.0
    %v2795 = vand.u32 %v2629, 4294901760
    %2796 = vmatmul.mubr.f32.gmra.mxu0 %v2795
    %v2797 = vpop.f32.mrf.mxu0
    %v2798 = vadd.f32 %v2707, %v2797
    %v2799 = vpop.f32.mrf.mxu0
    %2800 = vdwg.mxu0
    %2801 = vmatprep.subr.mxu0 0.0
    %2802 = vmatpush1.msra.mxu0 0.0
    %2803 = vmatprep.subr.mxu0 0.0
    %2804 = vmatpush1.msra.mxu0 0.0
    %2805 = vmatprep.subr.mxu0 0.0
    %2806 = vmatpush1.msra.mxu0 0.0
    %2807 = vmatprep.subr.mxu0 0.0
    %2808 = vmatpush1.msra.mxu0 0.0
    %2809 = vmatprep.subr.mxu0 0.0
    %2810 = vmatpush1.msra.mxu0 0.0
    %2811 = vmatprep.subr.mxu0 0.0
    %2812 = vmatpush1.msra.mxu0 0.0
    %2813 = vmatprep.subr.mxu0 0.0
    %2814 = vmatpush1.msra.mxu0 0.0
    %2815 = vmatprep.subr.mxu0 0.0
    %2816 = vmatpush1.msra.mxu0 0.0
    %2817 = vmatprep.subr.mxu0 0.0
    %2818 = vmatpush1.msra.mxu0 0.0
    %2819 = vmatprep.subr.mxu0 0.0
    %2820 = vmatpush1.msra.mxu0 0.0
    %2821 = vmatprep.subr.mxu0 0.0
    %2822 = vmatpush1.msra.mxu0 0.0
    %2823 = vmatprep.subr.mxu0 0.0
    %2824 = vmatpush1.msra.mxu0 0.0
    %2825 = vmatprep.subr.mxu0 0.0
    %v2826 = vand.u32 %v170, 4294901760
    %v2827 = vsub.f32 %v170, %v2826
    %2828 = vmatpush1.msra.mxu0 %v2827
    %2829 = vmatprep.subr.mxu0 0.0
    %v2830 = vand.u32 %v169, 4294901760
    %v2831 = vsub.f32 %v169, %v2830
    %2832 = vmatpush1.msra.mxu0 %v2831
    %2833 = vmatprep.subr.mxu0 0.0
    %v2834 = vand.u32 %v168, 4294901760
    %v2835 = vsub.f32 %v168, %v2834
    %2836 = vmatpush1.msra.mxu0 %v2835
    %2837 = vmatprep.subr.mxu0 0.0
    %v2838 = vand.u32 %v167, 4294901760
    %v2839 = vsub.f32 %v167, %v2838
    %2840 = vmatpush1.msra.mxu0 %v2839
    %2841 = vmatprep.subr.mxu0 0.0
    %2842 = vmatpush2.msra.mxu0 0.0
    %2843 = vmatprep.subr.mxu0 0.0
    %2844 = vmatpush2.msra.mxu0 0.0
    %2845 = vmatprep.subr.mxu0 0.0
    %2846 = vmatpush2.msra.mxu0 0.0
    %2847 = vmatprep.subr.mxu0 0.0
    %2848 = vmatpush2.msra.mxu0 0.0
    %2849 = vmatprep.subr.mxu0 0.0
    %2850 = vmatpush2.msra.mxu0 0.0
    %2851 = vmatprep.subr.mxu0 0.0
    %2852 = vmatpush2.msra.mxu0 0.0
    %2853 = vmatprep.subr.mxu0 0.0
    %2854 = vmatpush2.msra.mxu0 0.0
    %2855 = vmatprep.subr.mxu0 0.0
    %2856 = vmatpush2.msra.mxu0 0.0
    %2857 = vmatprep.subr.mxu0 0.0
    %2858 = vmatpush2.msra.mxu0 0.0
    %2859 = vmatprep.subr.mxu0 0.0
    %2860 = vmatpush2.msra.mxu0 0.0
    %2861 = vmatprep.subr.mxu0 0.0
    %2862 = vmatpush2.msra.mxu0 0.0
    %2863 = vmatprep.subr.mxu0 0.0
    %2864 = vmatpush2.msra.mxu0 0.0
    %2865 = vmatprep.subr.mxu0 0.0
    %2866 = vmatpush2.msra.mxu0 0.0
    %2867 = vmatprep.subr.mxu0 0.0
    %2868 = vmatpush2.msra.mxu0 0.0
    %2869 = vmatprep.subr.mxu0 0.0
    %2870 = vmatpush2.msra.mxu0 0.0
    %2871 = vmatprep.subr.mxu0 0.0
    %2872 = vmatpush2.msra.mxu0 0.0
    %2873 = vmatprep.mubr.f32.mxu0 0.0
    %v2874 = vand.u32 %v2629, 4294901760
    %v2875 = vsub.f32 %v2629, %v2874
    %2876 = vmatmul.mubr.f32.gmra.mxu0 %v2875
    %v2877 = vpop.f32.mrf.mxu0
    %v2878 = vadd.f32 %v2798, %v2877
    %v2879 = vpop.f32.mrf.mxu0
    %2880 = vdwg.mxu0
    %2881 = vmatprep.subr.mxu0 0.0
    %2882 = vmatpush1.msra.mxu0 0.0
    %2883 = vmatprep.subr.mxu0 0.0
    %2884 = vmatpush1.msra.mxu0 0.0
    %2885 = vmatprep.subr.mxu0 0.0
    %2886 = vmatpush1.msra.mxu0 0.0
    %2887 = vmatprep.subr.mxu0 0.0
    %2888 = vmatpush1.msra.mxu0 0.0
    %2889 = vmatprep.subr.mxu0 0.0
    %2890 = vmatpush1.msra.mxu0 0.0
    %2891 = vmatprep.subr.mxu0 0.0
    %2892 = vmatpush1.msra.mxu0 0.0
    %2893 = vmatprep.subr.mxu0 0.0
    %2894 = vmatpush1.msra.mxu0 0.0
    %2895 = vmatprep.subr.mxu0 0.0
    %2896 = vmatpush1.msra.mxu0 0.0
    %2897 = vmatprep.subr.mxu0 0.0
    %2898 = vmatpush1.msra.mxu0 0.0
    %2899 = vmatprep.subr.mxu0 0.0
    %2900 = vmatpush1.msra.mxu0 0.0
    %2901 = vmatprep.subr.mxu0 0.0
    %2902 = vmatpush1.msra.mxu0 0.0
    %2903 = vmatprep.subr.mxu0 0.0
    %2904 = vmatpush1.msra.mxu0 0.0
    %2905 = vmatprep.subr.mxu0 0.0
    %v2906 = vand.u32 %v170, 4294901760
    %2907 = vmatpush1.msra.mxu0 %v2906
    %2908 = vmatprep.subr.mxu0 0.0
    %v2909 = vand.u32 %v169, 4294901760
    %2910 = vmatpush1.msra.mxu0 %v2909
    %2911 = vmatprep.subr.mxu0 0.0
    %v2912 = vand.u32 %v168, 4294901760
    %2913 = vmatpush1.msra.mxu0 %v2912
    %2914 = vmatprep.subr.mxu0 0.0
    %v2915 = vand.u32 %v167, 4294901760
    %2916 = vmatpush1.msra.mxu0 %v2915
    %2917 = vmatprep.subr.mxu0 0.0
    %2918 = vmatpush2.msra.mxu0 0.0
    %2919 = vmatprep.subr.mxu0 0.0
    %2920 = vmatpush2.msra.mxu0 0.0
    %2921 = vmatprep.subr.mxu0 0.0
    %2922 = vmatpush2.msra.mxu0 0.0
    %2923 = vmatprep.subr.mxu0 0.0
    %2924 = vmatpush2.msra.mxu0 0.0
    %2925 = vmatprep.subr.mxu0 0.0
    %2926 = vmatpush2.msra.mxu0 0.0
    %2927 = vmatprep.subr.mxu0 0.0
    %2928 = vmatpush2.msra.mxu0 0.0
    %2929 = vmatprep.subr.mxu0 0.0
    %2930 = vmatpush2.msra.mxu0 0.0
    %2931 = vmatprep.subr.mxu0 0.0
    %2932 = vmatpush2.msra.mxu0 0.0
    %2933 = vmatprep.subr.mxu0 0.0
    %2934 = vmatpush2.msra.mxu0 0.0
    %2935 = vmatprep.subr.mxu0 0.0
    %2936 = vmatpush2.msra.mxu0 0.0
    %2937 = vmatprep.subr.mxu0 0.0
    %2938 = vmatpush2.msra.mxu0 0.0
    %2939 = vmatprep.subr.mxu0 0.0
    %2940 = vmatpush2.msra.mxu0 0.0
    %2941 = vmatprep.subr.mxu0 0.0
    %2942 = vmatpush2.msra.mxu0 0.0
    %2943 = vmatprep.subr.mxu0 0.0
    %2944 = vmatpush2.msra.mxu0 0.0
    %2945 = vmatprep.subr.mxu0 0.0
    %2946 = vmatpush2.msra.mxu0 0.0
    %2947 = vmatprep.subr.mxu0 0.0
    %2948 = vmatpush2.msra.mxu0 0.0
    %2949 = vmatprep.mubr.f32.mxu0 0.0
    %v2950 = vand.u32 %v2629, 4294901760
    %v2951 = vsub.f32 %v2629, %v2950
    %v2952 = vand.u32 %v2951, 4294901760
    %2953 = vmatmul.mubr.f32.gmra.mxu0 %v2952
    %v2954 = vpop.f32.mrf.mxu0
    %v2955 = vadd.f32 %v2878, %v2954
    %v2956 = vpop.f32.mrf.mxu0
    %2957 = vdwg.mxu0
    %2958 = vmatprep.subr.mxu0 0.0
    %2959 = vmatpush1.msra.mxu0 0.0
    %2960 = vmatprep.subr.mxu0 0.0
    %2961 = vmatpush1.msra.mxu0 0.0
    %2962 = vmatprep.subr.mxu0 0.0
    %2963 = vmatpush1.msra.mxu0 0.0
    %2964 = vmatprep.subr.mxu0 0.0
    %2965 = vmatpush1.msra.mxu0 0.0
    %2966 = vmatprep.subr.mxu0 0.0
    %2967 = vmatpush1.msra.mxu0 0.0
    %2968 = vmatprep.subr.mxu0 0.0
    %2969 = vmatpush1.msra.mxu0 0.0
    %2970 = vmatprep.subr.mxu0 0.0
    %2971 = vmatpush1.msra.mxu0 0.0
    %2972 = vmatprep.subr.mxu0 0.0
    %2973 = vmatpush1.msra.mxu0 0.0
    %2974 = vmatprep.subr.mxu0 0.0
    %2975 = vmatpush1.msra.mxu0 0.0
    %2976 = vmatprep.subr.mxu0 0.0
    %2977 = vmatpush1.msra.mxu0 0.0
    %2978 = vmatprep.subr.mxu0 0.0
    %2979 = vmatpush1.msra.mxu0 0.0
    %2980 = vmatprep.subr.mxu0 0.0
    %2981 = vmatpush1.msra.mxu0 0.0
    %2982 = vmatprep.subr.mxu0 0.0
    %v2983 = vand.u32 %v170, 4294901760
    %v2984 = vsub.f32 %v170, %v2983
    %v2985 = vand.u32 %v2984, 4294901760
    %2986 = vmatpush1.msra.mxu0 %v2985
    %2987 = vmatprep.subr.mxu0 0.0
    %v2988 = vand.u32 %v169, 4294901760
    %v2989 = vsub.f32 %v169, %v2988
    %v2990 = vand.u32 %v2989, 4294901760
    %2991 = vmatpush1.msra.mxu0 %v2990
    %2992 = vmatprep.subr.mxu0 0.0
    %v2993 = vand.u32 %v168, 4294901760
    %v2994 = vsub.f32 %v168, %v2993
    %v2995 = vand.u32 %v2994, 4294901760
    %2996 = vmatpush1.msra.mxu0 %v2995
    %2997 = vmatprep.subr.mxu0 0.0
    %v2998 = vand.u32 %v167, 4294901760
    %v2999 = vsub.f32 %v167, %v2998
    %v3000 = vand.u32 %v2999, 4294901760
    %3001 = vmatpush1.msra.mxu0 %v3000
    %3002 = vmatprep.subr.mxu0 0.0
    %3003 = vmatpush2.msra.mxu0 0.0
    %3004 = vmatprep.subr.mxu0 0.0
    %3005 = vmatpush2.msra.mxu0 0.0
    %3006 = vmatprep.subr.mxu0 0.0
    %3007 = vmatpush2.msra.mxu0 0.0
    %3008 = vmatprep.subr.mxu0 0.0
    %3009 = vmatpush2.msra.mxu0 0.0
    %3010 = vmatprep.subr.mxu0 0.0
    %3011 = vmatpush2.msra.mxu0 0.0
    %3012 = vmatprep.subr.mxu0 0.0
    %3013 = vmatpush2.msra.mxu0 0.0
    %3014 = vmatprep.subr.mxu0 0.0
    %3015 = vmatpush2.msra.mxu0 0.0
    %3016 = vmatprep.subr.mxu0 0.0
    %3017 = vmatpush2.msra.mxu0 0.0
    %3018 = vmatprep.subr.mxu0 0.0
    %3019 = vmatpush2.msra.mxu0 0.0
    %3020 = vmatprep.subr.mxu0 0.0
    %3021 = vmatpush2.msra.mxu0 0.0
    %3022 = vmatprep.subr.mxu0 0.0
    %3023 = vmatpush2.msra.mxu0 0.0
    %3024 = vmatprep.subr.mxu0 0.0
    %3025 = vmatpush2.msra.mxu0 0.0
    %3026 = vmatprep.subr.mxu0 0.0
    %3027 = vmatpush2.msra.mxu0 0.0
    %3028 = vmatprep.subr.mxu0 0.0
    %3029 = vmatpush2.msra.mxu0 0.0
    %3030 = vmatprep.subr.mxu0 0.0
    %3031 = vmatpush2.msra.mxu0 0.0
    %3032 = vmatprep.subr.mxu0 0.0
    %3033 = vmatpush2.msra.mxu0 0.0
    %3034 = vmatprep.mubr.f32.mxu0 0.0
    %v3035 = vand.u32 %v2629, 4294901760
    %3036 = vmatmul.mubr.f32.gmra.mxu0 %v3035
    %v3037 = vpop.f32.mrf.mxu0
    %v3038 = vadd.f32 %v2955, %v3037
    %v3039 = vpop.f32.mrf.mxu0
    %3040 = vdwg.mxu0
    %3041 = vmatprep.subr.mxu0 0.0
    %3042 = vmatpush1.msra.mxu0 0.0
    %3043 = vmatprep.subr.mxu0 0.0
    %3044 = vmatpush1.msra.mxu0 0.0
    %3045 = vmatprep.subr.mxu0 0.0
    %3046 = vmatpush1.msra.mxu0 0.0
    %3047 = vmatprep.subr.mxu0 0.0
    %3048 = vmatpush1.msra.mxu0 0.0
    %3049 = vmatprep.subr.mxu0 0.0
    %3050 = vmatpush1.msra.mxu0 0.0
    %3051 = vmatprep.subr.mxu0 0.0
    %3052 = vmatpush1.msra.mxu0 0.0
    %3053 = vmatprep.subr.mxu0 0.0
    %3054 = vmatpush1.msra.mxu0 0.0
    %3055 = vmatprep.subr.mxu0 0.0
    %3056 = vmatpush1.msra.mxu0 0.0
    %3057 = vmatprep.subr.mxu0 0.0
    %3058 = vmatpush1.msra.mxu0 0.0
    %3059 = vmatprep.subr.mxu0 0.0
    %3060 = vmatpush1.msra.mxu0 0.0
    %3061 = vmatprep.subr.mxu0 0.0
    %3062 = vmatpush1.msra.mxu0 0.0
    %3063 = vmatprep.subr.mxu0 0.0
    %3064 = vmatpush1.msra.mxu0 0.0
    %3065 = vmatprep.subr.mxu0 0.0
    %v3066 = vand.u32 %v170, 4294901760
    %3067 = vmatpush1.msra.mxu0 %v3066
    %3068 = vmatprep.subr.mxu0 0.0
    %v3069 = vand.u32 %v169, 4294901760
    %3070 = vmatpush1.msra.mxu0 %v3069
    %3071 = vmatprep.subr.mxu0 0.0
    %v3072 = vand.u32 %v168, 4294901760
    %3073 = vmatpush1.msra.mxu0 %v3072
    %3074 = vmatprep.subr.mxu0 0.0
    %v3075 = vand.u32 %v167, 4294901760
    %3076 = vmatpush1.msra.mxu0 %v3075
    %3077 = vmatprep.subr.mxu0 0.0
    %3078 = vmatpush2.msra.mxu0 0.0
    %3079 = vmatprep.subr.mxu0 0.0
    %3080 = vmatpush2.msra.mxu0 0.0
    %3081 = vmatprep.subr.mxu0 0.0
    %3082 = vmatpush2.msra.mxu0 0.0
    %3083 = vmatprep.subr.mxu0 0.0
    %3084 = vmatpush2.msra.mxu0 0.0
    %3085 = vmatprep.subr.mxu0 0.0
    %3086 = vmatpush2.msra.mxu0 0.0
    %3087 = vmatprep.subr.mxu0 0.0
    %3088 = vmatpush2.msra.mxu0 0.0
    %3089 = vmatprep.subr.mxu0 0.0
    %3090 = vmatpush2.msra.mxu0 0.0
    %3091 = vmatprep.subr.mxu0 0.0
    %3092 = vmatpush2.msra.mxu0 0.0
    %3093 = vmatprep.subr.mxu0 0.0
    %3094 = vmatpush2.msra.mxu0 0.0
    %3095 = vmatprep.subr.mxu0 0.0
    %3096 = vmatpush2.msra.mxu0 0.0
    %3097 = vmatprep.subr.mxu0 0.0
    %3098 = vmatpush2.msra.mxu0 0.0
    %3099 = vmatprep.subr.mxu0 0.0
    %3100 = vmatpush2.msra.mxu0 0.0
    %3101 = vmatprep.subr.mxu0 0.0
    %3102 = vmatpush2.msra.mxu0 0.0
    %3103 = vmatprep.subr.mxu0 0.0
    %3104 = vmatpush2.msra.mxu0 0.0
    %3105 = vmatprep.subr.mxu0 0.0
    %3106 = vmatpush2.msra.mxu0 0.0
    %3107 = vmatprep.subr.mxu0 0.0
    %3108 = vmatpush2.msra.mxu0 0.0
    %3109 = vmatprep.mubr.f32.mxu0 0.0
    %v3110 = vand.u32 %v2629, 4294901760
    %3111 = vmatmul.mubr.f32.gmra.mxu0 %v3110
    %v3112 = vpop.f32.mrf.mxu0
    %v3113 = vadd.f32 %v3038, %v3112
    %v3114 = vpop.f32.mrf.mxu0
    %3115 = vdwg.mxu0
    %v3116 = vadd.f32 %v2627, %v3113
    %v3117 = vtanh.pop %v3116
    %v3118 = vld [vmem:[%s140] sm:$0x3]
    %v3120 = vsel %vm172, %v3117, 0
    %3122 = vmatprep.subr.mxu0 0.0
    %3123 = vmatpush1.msra.mxu0 0.0
    %3124 = vmatprep.subr.mxu0 0.0
    %3125 = vmatpush1.msra.mxu0 0.0
    %3126 = vmatprep.subr.mxu0 0.0
    %3127 = vmatpush1.msra.mxu0 0.0
    %3128 = vmatprep.subr.mxu0 0.0
    %3129 = vmatpush1.msra.mxu0 0.0
    %3130 = vmatprep.subr.mxu0 0.0
    %3131 = vmatpush1.msra.mxu0 0.0
    %3132 = vmatprep.subr.mxu0 0.0
    %3133 = vmatpush1.msra.mxu0 0.0
    %3134 = vmatprep.subr.mxu0 0.0
    %3135 = vmatpush1.msra.mxu0 0.0
    %3136 = vmatprep.subr.mxu0 0.0
    %3137 = vmatpush1.msra.mxu0 0.0
    %3138 = vmatprep.subr.mxu0 0.0
    %3139 = vmatpush1.msra.mxu0 0.0
    %3140 = vmatprep.subr.mxu0 0.0
    %3141 = vmatpush1.msra.mxu0 0.0
    %3142 = vmatprep.subr.mxu0 0.0
    %3143 = vmatpush1.msra.mxu0 0.0
    %3144 = vmatprep.subr.mxu0 0.0
    %3145 = vmatpush1.msra.mxu0 0.0
    %3146 = vmatprep.subr.mxu0 0.0
    %v3147 = vand.u32 %v170, 4294901760
    %3148 = vmatpush1.msra.mxu0 %v3147
    %3149 = vmatprep.subr.mxu0 0.0
    %v3150 = vand.u32 %v169, 4294901760
    %3151 = vmatpush1.msra.mxu0 %v3150
    %3152 = vmatprep.subr.mxu0 0.0
    %v3153 = vand.u32 %v168, 4294901760
    %3154 = vmatpush1.msra.mxu0 %v3153
    %3155 = vmatprep.subr.mxu0 0.0
    %v3156 = vand.u32 %v167, 4294901760
    %3157 = vmatpush1.msra.mxu0 %v3156
    %3158 = vmatprep.subr.mxu0 0.0
    %3159 = vmatpush2.msra.mxu0 0.0
    %3160 = vmatprep.subr.mxu0 0.0
    %3161 = vmatpush2.msra.mxu0 0.0
    %3162 = vmatprep.subr.mxu0 0.0
    %3163 = vmatpush2.msra.mxu0 0.0
    %3164 = vmatprep.subr.mxu0 0.0
    %3165 = vmatpush2.msra.mxu0 0.0
    %3166 = vmatprep.subr.mxu0 0.0
    %3167 = vmatpush2.msra.mxu0 0.0
    %3168 = vmatprep.subr.mxu0 0.0
    %3169 = vmatpush2.msra.mxu0 0.0
    %3170 = vmatprep.subr.mxu0 0.0
    %3171 = vmatpush2.msra.mxu0 0.0
    %3172 = vmatprep.subr.mxu0 0.0
    %3173 = vmatpush2.msra.mxu0 0.0
    %3174 = vmatprep.subr.mxu0 0.0
    %3175 = vmatpush2.msra.mxu0 0.0
    %3176 = vmatprep.subr.mxu0 0.0
    %3177 = vmatpush2.msra.mxu0 0.0
    %3178 = vmatprep.subr.mxu0 0.0
    %3179 = vmatpush2.msra.mxu0 0.0
    %3180 = vmatprep.subr.mxu0 0.0
    %3181 = vmatpush2.msra.mxu0 0.0
    %3182 = vmatprep.subr.mxu0 0.0
    %3183 = vmatpush2.msra.mxu0 0.0
    %3184 = vmatprep.subr.mxu0 0.0
    %3185 = vmatpush2.msra.mxu0 0.0
    %3186 = vmatprep.subr.mxu0 0.0
    %3187 = vmatpush2.msra.mxu0 0.0
    %3188 = vmatprep.subr.mxu0 0.0
    %3189 = vmatpush2.msra.mxu0 0.0
    %3190 = vmatprep.mubr.f32.mxu0 0.0
    %v3191 = vand.u32 %v3120, 4294901760
    %v3192 = vsub.f32 %v3120, %v3191
    %v3193 = vand.u32 %v3192, 4294901760
    %v3194 = vsub.f32 %v3192, %v3193
    %v3195 = vand.u32 %v3194, 4294901760
    %3196 = vmatmul.mubr.f32.gmra.mxu0 %v3195
    %v3197 = vpop.f32.mrf.mxu0
    %v3198 = vadd.f32 0.0, %v3197
    %v3199 = vpop.f32.mrf.mxu0
    %3200 = vdwg.mxu0
    %3201 = vmatprep.subr.mxu0 0.0
    %3202 = vmatpush1.msra.mxu0 0.0
    %3203 = vmatprep.subr.mxu0 0.0
    %3204 = vmatpush1.msra.mxu0 0.0
    %3205 = vmatprep.subr.mxu0 0.0
    %3206 = vmatpush1.msra.mxu0 0.0
    %3207 = vmatprep.subr.mxu0 0.0
    %3208 = vmatpush1.msra.mxu0 0.0
    %3209 = vmatprep.subr.mxu0 0.0
    %3210 = vmatpush1.msra.mxu0 0.0
    %3211 = vmatprep.subr.mxu0 0.0
    %3212 = vmatpush1.msra.mxu0 0.0
    %3213 = vmatprep.subr.mxu0 0.0
    %3214 = vmatpush1.msra.mxu0 0.0
    %3215 = vmatprep.subr.mxu0 0.0
    %3216 = vmatpush1.msra.mxu0 0.0
    %3217 = vmatprep.subr.mxu0 0.0
    %3218 = vmatpush1.msra.mxu0 0.0
    %3219 = vmatprep.subr.mxu0 0.0
    %3220 = vmatpush1.msra.mxu0 0.0
    %3221 = vmatprep.subr.mxu0 0.0
    %3222 = vmatpush1.msra.mxu0 0.0
    %3223 = vmatprep.subr.mxu0 0.0
    %3224 = vmatpush1.msra.mxu0 0.0
    %3225 = vmatprep.subr.mxu0 0.0
    %v3226 = vand.u32 %v170, 4294901760
    %v3227 = vsub.f32 %v170, %v3226
    %v3228 = vand.u32 %v3227, 4294901760
    %v3229 = vsub.f32 %v3227, %v3228
    %v3230 = vand.u32 %v3229, 4294901760
    %3231 = vmatpush1.msra.mxu0 %v3230
    %3232 = vmatprep.subr.mxu0 0.0
    %v3233 = vand.u32 %v169, 4294901760
    %v3234 = vsub.f32 %v169, %v3233
    %v3235 = vand.u32 %v3234, 4294901760
    %v3236 = vsub.f32 %v3234, %v3235
    %v3237 = vand.u32 %v3236, 4294901760
    %3238 = vmatpush1.msra.mxu0 %v3237
    %3239 = vmatprep.subr.mxu0 0.0
    %v3240 = vand.u32 %v168, 4294901760
    %v3241 = vsub.f32 %v168, %v3240
    %v3242 = vand.u32 %v3241, 4294901760
    %v3243 = vsub.f32 %v3241, %v3242
    %v3244 = vand.u32 %v3243, 4294901760
    %3245 = vmatpush1.msra.mxu0 %v3244
    %3246 = vmatprep.subr.mxu0 0.0
    %v3247 = vand.u32 %v167, 4294901760
    %v3248 = vsub.f32 %v167, %v3247
    %v3249 = vand.u32 %v3248, 4294901760
    %v3250 = vsub.f32 %v3248, %v3249
    %v3251 = vand.u32 %v3250, 4294901760
    %3252 = vmatpush1.msra.mxu0 %v3251
    %3253 = vmatprep.subr.mxu0 0.0
    %3254 = vmatpush2.msra.mxu0 0.0
    %3255 = vmatprep.subr.mxu0 0.0
    %3256 = vmatpush2.msra.mxu0 0.0
    %3257 = vmatprep.subr.mxu0 0.0
    %3258 = vmatpush2.msra.mxu0 0.0
    %3259 = vmatprep.subr.mxu0 0.0
    %3260 = vmatpush2.msra.mxu0 0.0
    %3261 = vmatprep.subr.mxu0 0.0
    %3262 = vmatpush2.msra.mxu0 0.0
    %3263 = vmatprep.subr.mxu0 0.0
    %3264 = vmatpush2.msra.mxu0 0.0
    %3265 = vmatprep.subr.mxu0 0.0
    %3266 = vmatpush2.msra.mxu0 0.0
    %3267 = vmatprep.subr.mxu0 0.0
    %3268 = vmatpush2.msra.mxu0 0.0
    %3269 = vmatprep.subr.mxu0 0.0
    %3270 = vmatpush2.msra.mxu0 0.0
    %3271 = vmatprep.subr.mxu0 0.0
    %3272 = vmatpush2.msra.mxu0 0.0
    %3273 = vmatprep.subr.mxu0 0.0
    %3274 = vmatpush2.msra.mxu0 0.0
    %3275 = vmatprep.subr.mxu0 0.0
    %3276 = vmatpush2.msra.mxu0 0.0
    %3277 = vmatprep.subr.mxu0 0.0
    %3278 = vmatpush2.msra.mxu0 0.0
    %3279 = vmatprep.subr.mxu0 0.0
    %3280 = vmatpush2.msra.mxu0 0.0
    %3281 = vmatprep.subr.mxu0 0.0
    %3282 = vmatpush2.msra.mxu0 0.0
    %3283 = vmatprep.subr.mxu0 0.0
    %3284 = vmatpush2.msra.mxu0 0.0
    %3285 = vmatprep.mubr.f32.mxu0 0.0
    %v3286 = vand.u32 %v3120, 4294901760
    %3287 = vmatmul.mubr.f32.gmra.mxu0 %v3286
    %v3288 = vpop.f32.mrf.mxu0
    %v3289 = vadd.f32 %v3198, %v3288
    %v3290 = vpop.f32.mrf.mxu0
    %3291 = vdwg.mxu0
    %3292 = vmatprep.subr.mxu0 0.0
    %3293 = vmatpush1.msra.mxu0 0.0
    %3294 = vmatprep.subr.mxu0 0.0
    %3295 = vmatpush1.msra.mxu0 0.0
    %3296 = vmatprep.subr.mxu0 0.0
    %3297 = vmatpush1.msra.mxu0 0.0
    %3298 = vmatprep.subr.mxu0 0.0
    %3299 = vmatpush1.msra.mxu0 0.0
    %3300 = vmatprep.subr.mxu0 0.0
    %3301 = vmatpush1.msra.mxu0 0.0
    %3302 = vmatprep.subr.mxu0 0.0
    %3303 = vmatpush1.msra.mxu0 0.0
    %3304 = vmatprep.subr.mxu0 0.0
    %3305 = vmatpush1.msra.mxu0 0.0
    %3306 = vmatprep.subr.mxu0 0.0
    %3307 = vmatpush1.msra.mxu0 0.0
    %3308 = vmatprep.subr.mxu0 0.0
    %3309 = vmatpush1.msra.mxu0 0.0
    %3310 = vmatprep.subr.mxu0 0.0
    %3311 = vmatpush1.msra.mxu0 0.0
    %3312 = vmatprep.subr.mxu0 0.0
    %3313 = vmatpush1.msra.mxu0 0.0
    %3314 = vmatprep.subr.mxu0 0.0
    %3315 = vmatpush1.msra.mxu0 0.0
    %3316 = vmatprep.subr.mxu0 0.0
    %v3317 = vand.u32 %v170, 4294901760
    %v3318 = vsub.f32 %v170, %v3317
    %3319 = vmatpush1.msra.mxu0 %v3318
    %3320 = vmatprep.subr.mxu0 0.0
    %v3321 = vand.u32 %v169, 4294901760
    %v3322 = vsub.f32 %v169, %v3321
    %3323 = vmatpush1.msra.mxu0 %v3322
    %3324 = vmatprep.subr.mxu0 0.0
    %v3325 = vand.u32 %v168, 4294901760
    %v3326 = vsub.f32 %v168, %v3325
    %3327 = vmatpush1.msra.mxu0 %v3326
    %3328 = vmatprep.subr.mxu0 0.0
    %v3329 = vand.u32 %v167, 4294901760
    %v3330 = vsub.f32 %v167, %v3329
    %3331 = vmatpush1.msra.mxu0 %v3330
    %3332 = vmatprep.subr.mxu0 0.0
    %3333 = vmatpush2.msra.mxu0 0.0
    %3334 = vmatprep.subr.mxu0 0.0
    %3335 = vmatpush2.msra.mxu0 0.0
    %3336 = vmatprep.subr.mxu0 0.0
    %3337 = vmatpush2.msra.mxu0 0.0
    %3338 = vmatprep.subr.mxu0 0.0
    %3339 = vmatpush2.msra.mxu0 0.0
    %3340 = vmatprep.subr.mxu0 0.0
    %3341 = vmatpush2.msra.mxu0 0.0
    %3342 = vmatprep.subr.mxu0 0.0
    %3343 = vmatpush2.msra.mxu0 0.0
    %3344 = vmatprep.subr.mxu0 0.0
    %3345 = vmatpush2.msra.mxu0 0.0
    %3346 = vmatprep.subr.mxu0 0.0
    %3347 = vmatpush2.msra.mxu0 0.0
    %3348 = vmatprep.subr.mxu0 0.0
    %3349 = vmatpush2.msra.mxu0 0.0
    %3350 = vmatprep.subr.mxu0 0.0
    %3351 = vmatpush2.msra.mxu0 0.0
    %3352 = vmatprep.subr.mxu0 0.0
    %3353 = vmatpush2.msra.mxu0 0.0
    %3354 = vmatprep.subr.mxu0 0.0
    %3355 = vmatpush2.msra.mxu0 0.0
    %3356 = vmatprep.subr.mxu0 0.0
    %3357 = vmatpush2.msra.mxu0 0.0
    %3358 = vmatprep.subr.mxu0 0.0
    %3359 = vmatpush2.msra.mxu0 0.0
    %3360 = vmatprep.subr.mxu0 0.0
    %3361 = vmatpush2.msra.mxu0 0.0
    %3362 = vmatprep.subr.mxu0 0.0
    %3363 = vmatpush2.msra.mxu0 0.0
    %3364 = vmatprep.mubr.f32.mxu0 0.0
    %v3365 = vand.u32 %v3120, 4294901760
    %v3366 = vsub.f32 %v3120, %v3365
    %3367 = vmatmul.mubr.f32.gmra.mxu0 %v3366
    %v3368 = vpop.f32.mrf.mxu0
    %v3369 = vadd.f32 %v3289, %v3368
    %v3370 = vpop.f32.mrf.mxu0
    %3371 = vdwg.mxu0
    %3372 = vmatprep.subr.mxu0 0.0
    %3373 = vmatpush1.msra.mxu0 0.0
    %3374 = vmatprep.subr.mxu0 0.0
    %3375 = vmatpush1.msra.mxu0 0.0
    %3376 = vmatprep.subr.mxu0 0.0
    %3377 = vmatpush1.msra.mxu0 0.0
    %3378 = vmatprep.subr.mxu0 0.0
    %3379 = vmatpush1.msra.mxu0 0.0
    %3380 = vmatprep.subr.mxu0 0.0
    %3381 = vmatpush1.msra.mxu0 0.0
    %3382 = vmatprep.subr.mxu0 0.0
    %3383 = vmatpush1.msra.mxu0 0.0
    %3384 = vmatprep.subr.mxu0 0.0
    %3385 = vmatpush1.msra.mxu0 0.0
    %3386 = vmatprep.subr.mxu0 0.0
    %3387 = vmatpush1.msra.mxu0 0.0
    %3388 = vmatprep.subr.mxu0 0.0
    %3389 = vmatpush1.msra.mxu0 0.0
    %3390 = vmatprep.subr.mxu0 0.0
    %3391 = vmatpush1.msra.mxu0 0.0
    %3392 = vmatprep.subr.mxu0 0.0
    %3393 = vmatpush1.msra.mxu0 0.0
    %3394 = vmatprep.subr.mxu0 0.0
    %3395 = vmatpush1.msra.mxu0 0.0
    %3396 = vmatprep.subr.mxu0 0.0
    %v3397 = vand.u32 %v170, 4294901760
    %3398 = vmatpush1.msra.mxu0 %v3397
    %3399 = vmatprep.subr.mxu0 0.0
    %v3400 = vand.u32 %v169, 4294901760
    %3401 = vmatpush1.msra.mxu0 %v3400
    %3402 = vmatprep.subr.mxu0 0.0
    %v3403 = vand.u32 %v168, 4294901760
    %3404 = vmatpush1.msra.mxu0 %v3403
    %3405 = vmatprep.subr.mxu0 0.0
    %v3406 = vand.u32 %v167, 4294901760
    %3407 = vmatpush1.msra.mxu0 %v3406
    %3408 = vmatprep.subr.mxu0 0.0
    %3409 = vmatpush2.msra.mxu0 0.0
    %3410 = vmatprep.subr.mxu0 0.0
    %3411 = vmatpush2.msra.mxu0 0.0
    %3412 = vmatprep.subr.mxu0 0.0
    %3413 = vmatpush2.msra.mxu0 0.0
    %3414 = vmatprep.subr.mxu0 0.0
    %3415 = vmatpush2.msra.mxu0 0.0
    %3416 = vmatprep.subr.mxu0 0.0
    %3417 = vmatpush2.msra.mxu0 0.0
    %3418 = vmatprep.subr.mxu0 0.0
    %3419 = vmatpush2.msra.mxu0 0.0
    %3420 = vmatprep.subr.mxu0 0.0
    %3421 = vmatpush2.msra.mxu0 0.0
    %3422 = vmatprep.subr.mxu0 0.0
    %3423 = vmatpush2.msra.mxu0 0.0
    %3424 = vmatprep.subr.mxu0 0.0
    %3425 = vmatpush2.msra.mxu0 0.0
    %3426 = vmatprep.subr.mxu0 0.0
    %3427 = vmatpush2.msra.mxu0 0.0
    %3428 = vmatprep.subr.mxu0 0.0
    %3429 = vmatpush2.msra.mxu0 0.0
    %3430 = vmatprep.subr.mxu0 0.0
    %3431 = vmatpush2.msra.mxu0 0.0
    %3432 = vmatprep.subr.mxu0 0.0
    %3433 = vmatpush2.msra.mxu0 0.0
    %3434 = vmatprep.subr.mxu0 0.0
    %3435 = vmatpush2.msra.mxu0 0.0
    %3436 = vmatprep.subr.mxu0 0.0
    %3437 = vmatpush2.msra.mxu0 0.0
    %3438 = vmatprep.subr.mxu0 0.0
    %3439 = vmatpush2.msra.mxu0 0.0
    %3440 = vmatprep.mubr.f32.mxu0 0.0
    %v3441 = vand.u32 %v3120, 4294901760
    %v3442 = vsub.f32 %v3120, %v3441
    %v3443 = vand.u32 %v3442, 4294901760
    %3444 = vmatmul.mubr.f32.gmra.mxu0 %v3443
    %v3445 = vpop.f32.mrf.mxu0
    %v3446 = vadd.f32 %v3369, %v3445
    %v3447 = vpop.f32.mrf.mxu0
    %3448 = vdwg.mxu0
    %3449 = vmatprep.subr.mxu0 0.0
    %3450 = vmatpush1.msra.mxu0 0.0
    %3451 = vmatprep.subr.mxu0 0.0
    %3452 = vmatpush1.msra.mxu0 0.0
    %3453 = vmatprep.subr.mxu0 0.0
    %3454 = vmatpush1.msra.mxu0 0.0
    %3455 = vmatprep.subr.mxu0 0.0
    %3456 = vmatpush1.msra.mxu0 0.0
    %3457 = vmatprep.subr.mxu0 0.0
    %3458 = vmatpush1.msra.mxu0 0.0
    %3459 = vmatprep.subr.mxu0 0.0
    %3460 = vmatpush1.msra.mxu0 0.0
    %3461 = vmatprep.subr.mxu0 0.0
    %3462 = vmatpush1.msra.mxu0 0.0
    %3463 = vmatprep.subr.mxu0 0.0
    %3464 = vmatpush1.msra.mxu0 0.0
    %3465 = vmatprep.subr.mxu0 0.0
    %3466 = vmatpush1.msra.mxu0 0.0
    %3467 = vmatprep.subr.mxu0 0.0
    %3468 = vmatpush1.msra.mxu0 0.0
    %3469 = vmatprep.subr.mxu0 0.0
    %3470 = vmatpush1.msra.mxu0 0.0
    %3471 = vmatprep.subr.mxu0 0.0
    %3472 = vmatpush1.msra.mxu0 0.0
    %3473 = vmatprep.subr.mxu0 0.0
    %v3474 = vand.u32 %v170, 4294901760
    %v3475 = vsub.f32 %v170, %v3474
    %v3476 = vand.u32 %v3475, 4294901760
    %3477 = vmatpush1.msra.mxu0 %v3476
    %3478 = vmatprep.subr.mxu0 0.0
    %v3479 = vand.u32 %v169, 4294901760
    %v3480 = vsub.f32 %v169, %v3479
    %v3481 = vand.u32 %v3480, 4294901760
    %3482 = vmatpush1.msra.mxu0 %v3481
    %3483 = vmatprep.subr.mxu0 0.0
    %v3484 = vand.u32 %v168, 4294901760
    %v3485 = vsub.f32 %v168, %v3484
    %v3486 = vand.u32 %v3485, 4294901760
    %3487 = vmatpush1.msra.mxu0 %v3486
    %3488 = vmatprep.subr.mxu0 0.0
    %v3489 = vand.u32 %v167, 4294901760
    %v3490 = vsub.f32 %v167, %v3489
    %v3491 = vand.u32 %v3490, 4294901760
    %3492 = vmatpush1.msra.mxu0 %v3491
    %3493 = vmatprep.subr.mxu0 0.0
    %3494 = vmatpush2.msra.mxu0 0.0
    %3495 = vmatprep.subr.mxu0 0.0
    %3496 = vmatpush2.msra.mxu0 0.0
    %3497 = vmatprep.subr.mxu0 0.0
    %3498 = vmatpush2.msra.mxu0 0.0
    %3499 = vmatprep.subr.mxu0 0.0
    %3500 = vmatpush2.msra.mxu0 0.0
    %3501 = vmatprep.subr.mxu0 0.0
    %3502 = vmatpush2.msra.mxu0 0.0
    %3503 = vmatprep.subr.mxu0 0.0
    %3504 = vmatpush2.msra.mxu0 0.0
    %3505 = vmatprep.subr.mxu0 0.0
    %3506 = vmatpush2.msra.mxu0 0.0
    %3507 = vmatprep.subr.mxu0 0.0
    %3508 = vmatpush2.msra.mxu0 0.0
    %3509 = vmatprep.subr.mxu0 0.0
    %3510 = vmatpush2.msra.mxu0 0.0
    %3511 = vmatprep.subr.mxu0 0.0
    %3512 = vmatpush2.msra.mxu0 0.0
    %3513 = vmatprep.subr.mxu0 0.0
    %3514 = vmatpush2.msra.mxu0 0.0
    %3515 = vmatprep.subr.mxu0 0.0
    %3516 = vmatpush2.msra.mxu0 0.0
    %3517 = vmatprep.subr.mxu0 0.0
    %3518 = vmatpush2.msra.mxu0 0.0
    %3519 = vmatprep.subr.mxu0 0.0
    %3520 = vmatpush2.msra.mxu0 0.0
    %3521 = vmatprep.subr.mxu0 0.0
    %3522 = vmatpush2.msra.mxu0 0.0
    %3523 = vmatprep.subr.mxu0 0.0
    %3524 = vmatpush2.msra.mxu0 0.0
    %3525 = vmatprep.mubr.f32.mxu0 0.0
    %v3526 = vand.u32 %v3120, 4294901760
    %3527 = vmatmul.mubr.f32.gmra.mxu0 %v3526
    %v3528 = vpop.f32.mrf.mxu0
    %v3529 = vadd.f32 %v3446, %v3528
    %v3530 = vpop.f32.mrf.mxu0
    %3531 = vdwg.mxu0
    %3532 = vmatprep.subr.mxu0 0.0
    %3533 = vmatpush1.msra.mxu0 0.0
    %3534 = vmatprep.subr.mxu0 0.0
    %3535 = vmatpush1.msra.mxu0 0.0
    %3536 = vmatprep.subr.mxu0 0.0
    %3537 = vmatpush1.msra.mxu0 0.0
    %3538 = vmatprep.subr.mxu0 0.0
    %3539 = vmatpush1.msra.mxu0 0.0
    %3540 = vmatprep.subr.mxu0 0.0
    %3541 = vmatpush1.msra.mxu0 0.0
    %3542 = vmatprep.subr.mxu0 0.0
    %3543 = vmatpush1.msra.mxu0 0.0
    %3544 = vmatprep.subr.mxu0 0.0
    %3545 = vmatpush1.msra.mxu0 0.0
    %3546 = vmatprep.subr.mxu0 0.0
    %3547 = vmatpush1.msra.mxu0 0.0
    %3548 = vmatprep.subr.mxu0 0.0
    %3549 = vmatpush1.msra.mxu0 0.0
    %3550 = vmatprep.subr.mxu0 0.0
    %3551 = vmatpush1.msra.mxu0 0.0
    %3552 = vmatprep.subr.mxu0 0.0
    %3553 = vmatpush1.msra.mxu0 0.0
    %3554 = vmatprep.subr.mxu0 0.0
    %3555 = vmatpush1.msra.mxu0 0.0
    %3556 = vmatprep.subr.mxu0 0.0
    %v3557 = vand.u32 %v170, 4294901760
    %3558 = vmatpush1.msra.mxu0 %v3557
    %3559 = vmatprep.subr.mxu0 0.0
    %v3560 = vand.u32 %v169, 4294901760
    %3561 = vmatpush1.msra.mxu0 %v3560
    %3562 = vmatprep.subr.mxu0 0.0
    %v3563 = vand.u32 %v168, 4294901760
    %3564 = vmatpush1.msra.mxu0 %v3563
    %3565 = vmatprep.subr.mxu0 0.0
    %v3566 = vand.u32 %v167, 4294901760
    %3567 = vmatpush1.msra.mxu0 %v3566
    %3568 = vmatprep.subr.mxu0 0.0
    %3569 = vmatpush2.msra.mxu0 0.0
    %3570 = vmatprep.subr.mxu0 0.0
    %3571 = vmatpush2.msra.mxu0 0.0
    %3572 = vmatprep.subr.mxu0 0.0
    %3573 = vmatpush2.msra.mxu0 0.0
    %3574 = vmatprep.subr.mxu0 0.0
    %3575 = vmatpush2.msra.mxu0 0.0
    %3576 = vmatprep.subr.mxu0 0.0
    %3577 = vmatpush2.msra.mxu0 0.0
    %3578 = vmatprep.subr.mxu0 0.0
    %3579 = vmatpush2.msra.mxu0 0.0
    %3580 = vmatprep.subr.mxu0 0.0
    %3581 = vmatpush2.msra.mxu0 0.0
    %3582 = vmatprep.subr.mxu0 0.0
    %3583 = vmatpush2.msra.mxu0 0.0
    %3584 = vmatprep.subr.mxu0 0.0
    %3585 = vmatpush2.msra.mxu0 0.0
    %3586 = vmatprep.subr.mxu0 0.0
    %3587 = vmatpush2.msra.mxu0 0.0
    %3588 = vmatprep.subr.mxu0 0.0
    %3589 = vmatpush2.msra.mxu0 0.0
    %3590 = vmatprep.subr.mxu0 0.0
    %3591 = vmatpush2.msra.mxu0 0.0
    %3592 = vmatprep.subr.mxu0 0.0
    %3593 = vmatpush2.msra.mxu0 0.0
    %3594 = vmatprep.subr.mxu0 0.0
    %3595 = vmatpush2.msra.mxu0 0.0
    %3596 = vmatprep.subr.mxu0 0.0
    %3597 = vmatpush2.msra.mxu0 0.0
    %3598 = vmatprep.subr.mxu0 0.0
    %3599 = vmatpush2.msra.mxu0 0.0
    %3600 = vmatprep.mubr.f32.mxu0 0.0
    %v3601 = vand.u32 %v3120, 4294901760
    %3602 = vmatmul.mubr.f32.gmra.mxu0 %v3601
    %v3603 = vpop.f32.mrf.mxu0
    %v3604 = vadd.f32 %v3529, %v3603
    %v3605 = vpop.f32.mrf.mxu0
    %3606 = vdwg.mxu0
    %v3607 = vadd.f32 %v3118, %v3604
    %v3608 = vtanh.pop %v3607
    %v3609 = vld [vmem:[%s157] sm:$0x3]
    %v3611 = vsel %vm172, %v3608, 0
    %3613 = vmatprep.subr.mxu0 0.0
    %3614 = vmatpush1.msra.mxu0 0.0
    %3615 = vmatprep.subr.mxu0 0.0
    %3616 = vmatpush1.msra.mxu0 0.0
    %3617 = vmatprep.subr.mxu0 0.0
    %3618 = vmatpush1.msra.mxu0 0.0
    %3619 = vmatprep.subr.mxu0 0.0
    %3620 = vmatpush1.msra.mxu0 0.0
    %3621 = vmatprep.subr.mxu0 0.0
    %3622 = vmatpush1.msra.mxu0 0.0
    %3623 = vmatprep.subr.mxu0 0.0
    %3624 = vmatpush1.msra.mxu0 0.0
    %3625 = vmatprep.subr.mxu0 0.0
    %3626 = vmatpush1.msra.mxu0 0.0
    %3627 = vmatprep.subr.mxu0 0.0
    %3628 = vmatpush1.msra.mxu0 0.0
    %3629 = vmatprep.subr.mxu0 0.0
    %3630 = vmatpush1.msra.mxu0 0.0
    %3631 = vmatprep.subr.mxu0 0.0
    %3632 = vmatpush1.msra.mxu0 0.0
    %3633 = vmatprep.subr.mxu0 0.0
    %3634 = vmatpush1.msra.mxu0 0.0
    %3635 = vmatprep.subr.mxu0 0.0
    %3636 = vmatpush1.msra.mxu0 0.0
    %3637 = vmatprep.subr.mxu0 0.0
    %v3638 = vand.u32 %v170, 4294901760
    %3639 = vmatpush1.msra.mxu0 %v3638
    %3640 = vmatprep.subr.mxu0 0.0
    %v3641 = vand.u32 %v169, 4294901760
    %3642 = vmatpush1.msra.mxu0 %v3641
    %3643 = vmatprep.subr.mxu0 0.0
    %v3644 = vand.u32 %v168, 4294901760
    %3645 = vmatpush1.msra.mxu0 %v3644
    %3646 = vmatprep.subr.mxu0 0.0
    %v3647 = vand.u32 %v167, 4294901760
    %3648 = vmatpush1.msra.mxu0 %v3647
    %3649 = vmatprep.subr.mxu0 0.0
    %3650 = vmatpush2.msra.mxu0 0.0
    %3651 = vmatprep.subr.mxu0 0.0
    %3652 = vmatpush2.msra.mxu0 0.0
    %3653 = vmatprep.subr.mxu0 0.0
    %3654 = vmatpush2.msra.mxu0 0.0
    %3655 = vmatprep.subr.mxu0 0.0
    %3656 = vmatpush2.msra.mxu0 0.0
    %3657 = vmatprep.subr.mxu0 0.0
    %3658 = vmatpush2.msra.mxu0 0.0
    %3659 = vmatprep.subr.mxu0 0.0
    %3660 = vmatpush2.msra.mxu0 0.0
    %3661 = vmatprep.subr.mxu0 0.0
    %3662 = vmatpush2.msra.mxu0 0.0
    %3663 = vmatprep.subr.mxu0 0.0
    %3664 = vmatpush2.msra.mxu0 0.0
    %3665 = vmatprep.subr.mxu0 0.0
    %3666 = vmatpush2.msra.mxu0 0.0
    %3667 = vmatprep.subr.mxu0 0.0
    %3668 = vmatpush2.msra.mxu0 0.0
    %3669 = vmatprep.subr.mxu0 0.0
    %3670 = vmatpush2.msra.mxu0 0.0
    %3671 = vmatprep.subr.mxu0 0.0
    %3672 = vmatpush2.msra.mxu0 0.0
    %3673 = vmatprep.subr.mxu0 0.0
    %3674 = vmatpush2.msra.mxu0 0.0
    %3675 = vmatprep.subr.mxu0 0.0
    %3676 = vmatpush2.msra.mxu0 0.0
    %3677 = vmatprep.subr.mxu0 0.0
    %3678 = vmatpush2.msra.mxu0 0.0
    %3679 = vmatprep.subr.mxu0 0.0
    %3680 = vmatpush2.msra.mxu0 0.0
    %3681 = vmatprep.mubr.f32.mxu0 0.0
    %v3682 = vand.u32 %v3611, 4294901760
    %v3683 = vsub.f32 %v3611, %v3682
    %v3684 = vand.u32 %v3683, 4294901760
    %v3685 = vsub.f32 %v3683, %v3684
    %v3686 = vand.u32 %v3685, 4294901760
    %3687 = vmatmul.mubr.f32.gmra.mxu0 %v3686
    %v3688 = vpop.f32.mrf.mxu0
    %v3689 = vadd.f32 0.0, %v3688
    %v3690 = vpop.f32.mrf.mxu0
    %3691 = vdwg.mxu0
    %3692 = vmatprep.subr.mxu0 0.0
    %3693 = vmatpush1.msra.mxu0 0.0
    %3694 = vmatprep.subr.mxu0 0.0
    %3695 = vmatpush1.msra.mxu0 0.0
    %3696 = vmatprep.subr.mxu0 0.0
    %3697 = vmatpush1.msra.mxu0 0.0
    %3698 = vmatprep.subr.mxu0 0.0
    %3699 = vmatpush1.msra.mxu0 0.0
    %3700 = vmatprep.subr.mxu0 0.0
    %3701 = vmatpush1.msra.mxu0 0.0
    %3702 = vmatprep.subr.mxu0 0.0
    %3703 = vmatpush1.msra.mxu0 0.0
    %3704 = vmatprep.subr.mxu0 0.0
    %3705 = vmatpush1.msra.mxu0 0.0
    %3706 = vmatprep.subr.mxu0 0.0
    %3707 = vmatpush1.msra.mxu0 0.0
    %3708 = vmatprep.subr.mxu0 0.0
    %3709 = vmatpush1.msra.mxu0 0.0
    %3710 = vmatprep.subr.mxu0 0.0
    %3711 = vmatpush1.msra.mxu0 0.0
    %3712 = vmatprep.subr.mxu0 0.0
    %3713 = vmatpush1.msra.mxu0 0.0
    %3714 = vmatprep.subr.mxu0 0.0
    %3715 = vmatpush1.msra.mxu0 0.0
    %3716 = vmatprep.subr.mxu0 0.0
    %v3717 = vand.u32 %v170, 4294901760
    %v3718 = vsub.f32 %v170, %v3717
    %v3719 = vand.u32 %v3718, 4294901760
    %v3720 = vsub.f32 %v3718, %v3719
    %v3721 = vand.u32 %v3720, 4294901760
    %3722 = vmatpush1.msra.mxu0 %v3721
    %3723 = vmatprep.subr.mxu0 0.0
    %v3724 = vand.u32 %v169, 4294901760
    %v3725 = vsub.f32 %v169, %v3724
    %v3726 = vand.u32 %v3725, 4294901760
    %v3727 = vsub.f32 %v3725, %v3726
    %v3728 = vand.u32 %v3727, 4294901760
    %3729 = vmatpush1.msra.mxu0 %v3728
    %3730 = vmatprep.subr.mxu0 0.0
    %v3731 = vand.u32 %v168, 4294901760
    %v3732 = vsub.f32 %v168, %v3731
    %v3733 = vand.u32 %v3732, 4294901760
    %v3734 = vsub.f32 %v3732, %v3733
    %v3735 = vand.u32 %v3734, 4294901760
    %3736 = vmatpush1.msra.mxu0 %v3735
    %3737 = vmatprep.subr.mxu0 0.0
    %v3738 = vand.u32 %v167, 4294901760
    %v3739 = vsub.f32 %v167, %v3738
    %v3740 = vand.u32 %v3739, 4294901760
    %v3741 = vsub.f32 %v3739, %v3740
    %v3742 = vand.u32 %v3741, 4294901760
    %3743 = vmatpush1.msra.mxu0 %v3742
    %3744 = vmatprep.subr.mxu0 0.0
    %3745 = vmatpush2.msra.mxu0 0.0
    %3746 = vmatprep.subr.mxu0 0.0
    %3747 = vmatpush2.msra.mxu0 0.0
    %3748 = vmatprep.subr.mxu0 0.0
    %3749 = vmatpush2.msra.mxu0 0.0
    %3750 = vmatprep.subr.mxu0 0.0
    %3751 = vmatpush2.msra.mxu0 0.0
    %3752 = vmatprep.subr.mxu0 0.0
    %3753 = vmatpush2.msra.mxu0 0.0
    %3754 = vmatprep.subr.mxu0 0.0
    %3755 = vmatpush2.msra.mxu0 0.0
    %3756 = vmatprep.subr.mxu0 0.0
    %3757 = vmatpush2.msra.mxu0 0.0
    %3758 = vmatprep.subr.mxu0 0.0
    %3759 = vmatpush2.msra.mxu0 0.0
    %3760 = vmatprep.subr.mxu0 0.0
    %3761 = vmatpush2.msra.mxu0 0.0
    %3762 = vmatprep.subr.mxu0 0.0
    %3763 = vmatpush2.msra.mxu0 0.0
    %3764 = vmatprep.subr.mxu0 0.0
    %3765 = vmatpush2.msra.mxu0 0.0
    %3766 = vmatprep.subr.mxu0 0.0
    %3767 = vmatpush2.msra.mxu0 0.0
    %3768 = vmatprep.subr.mxu0 0.0
    %3769 = vmatpush2.msra.mxu0 0.0
    %3770 = vmatprep.subr.mxu0 0.0
    %3771 = vmatpush2.msra.mxu0 0.0
    %3772 = vmatprep.subr.mxu0 0.0
    %3773 = vmatpush2.msra.mxu0 0.0
    %3774 = vmatprep.subr.mxu0 0.0
    %3775 = vmatpush2.msra.mxu0 0.0
    %3776 = vmatprep.mubr.f32.mxu0 0.0
    %v3777 = vand.u32 %v3611, 4294901760
    %3778 = vmatmul.mubr.f32.gmra.mxu0 %v3777
    %v3779 = vpop.f32.mrf.mxu0
    %v3780 = vadd.f32 %v3689, %v3779
    %v3781 = vpop.f32.mrf.mxu0
    %3782 = vdwg.mxu0
    %3783 = vmatprep.subr.mxu0 0.0
    %3784 = vmatpush1.msra.mxu0 0.0
    %3785 = vmatprep.subr.mxu0 0.0
    %3786 = vmatpush1.msra.mxu0 0.0
    %3787 = vmatprep.subr.mxu0 0.0
    %3788 = vmatpush1.msra.mxu0 0.0
    %3789 = vmatprep.subr.mxu0 0.0
    %3790 = vmatpush1.msra.mxu0 0.0
    %3791 = vmatprep.subr.mxu0 0.0
    %3792 = vmatpush1.msra.mxu0 0.0
    %3793 = vmatprep.subr.mxu0 0.0
    %3794 = vmatpush1.msra.mxu0 0.0
    %3795 = vmatprep.subr.mxu0 0.0
    %3796 = vmatpush1.msra.mxu0 0.0
    %3797 = vmatprep.subr.mxu0 0.0
    %3798 = vmatpush1.msra.mxu0 0.0
    %3799 = vmatprep.subr.mxu0 0.0
    %3800 = vmatpush1.msra.mxu0 0.0
    %3801 = vmatprep.subr.mxu0 0.0
    %3802 = vmatpush1.msra.mxu0 0.0
    %3803 = vmatprep.subr.mxu0 0.0
    %3804 = vmatpush1.msra.mxu0 0.0
    %3805 = vmatprep.subr.mxu0 0.0
    %3806 = vmatpush1.msra.mxu0 0.0
    %3807 = vmatprep.subr.mxu0 0.0
    %v3808 = vand.u32 %v170, 4294901760
    %v3809 = vsub.f32 %v170, %v3808
    %3810 = vmatpush1.msra.mxu0 %v3809
    %3811 = vmatprep.subr.mxu0 0.0
    %v3812 = vand.u32 %v169, 4294901760
    %v3813 = vsub.f32 %v169, %v3812
    %3814 = vmatpush1.msra.mxu0 %v3813
    %3815 = vmatprep.subr.mxu0 0.0
    %v3816 = vand.u32 %v168, 4294901760
    %v3817 = vsub.f32 %v168, %v3816
    %3818 = vmatpush1.msra.mxu0 %v3817
    %3819 = vmatprep.subr.mxu0 0.0
    %v3820 = vand.u32 %v167, 4294901760
    %v3821 = vsub.f32 %v167, %v3820
    %3822 = vmatpush1.msra.mxu0 %v3821
    %3823 = vmatprep.subr.mxu0 0.0
    %3824 = vmatpush2.msra.mxu0 0.0
    %3825 = vmatprep.subr.mxu0 0.0
    %3826 = vmatpush2.msra.mxu0 0.0
    %3827 = vmatprep.subr.mxu0 0.0
    %3828 = vmatpush2.msra.mxu0 0.0
    %3829 = vmatprep.subr.mxu0 0.0
    %3830 = vmatpush2.msra.mxu0 0.0
    %3831 = vmatprep.subr.mxu0 0.0
    %3832 = vmatpush2.msra.mxu0 0.0
    %3833 = vmatprep.subr.mxu0 0.0
    %3834 = vmatpush2.msra.mxu0 0.0
    %3835 = vmatprep.subr.mxu0 0.0
    %3836 = vmatpush2.msra.mxu0 0.0
    %3837 = vmatprep.subr.mxu0 0.0
    %3838 = vmatpush2.msra.mxu0 0.0
    %3839 = vmatprep.subr.mxu0 0.0
    %3840 = vmatpush2.msra.mxu0 0.0
    %3841 = vmatprep.subr.mxu0 0.0
    %3842 = vmatpush2.msra.mxu0 0.0
    %3843 = vmatprep.subr.mxu0 0.0
    %3844 = vmatpush2.msra.mxu0 0.0
    %3845 = vmatprep.subr.mxu0 0.0
    %3846 = vmatpush2.msra.mxu0 0.0
    %3847 = vmatprep.subr.mxu0 0.0
    %3848 = vmatpush2.msra.mxu0 0.0
    %3849 = vmatprep.subr.mxu0 0.0
    %3850 = vmatpush2.msra.mxu0 0.0
    %3851 = vmatprep.subr.mxu0 0.0
    %3852 = vmatpush2.msra.mxu0 0.0
    %3853 = vmatprep.subr.mxu0 0.0
    %3854 = vmatpush2.msra.mxu0 0.0
    %3855 = vmatprep.mubr.f32.mxu0 0.0
    %v3856 = vand.u32 %v3611, 4294901760
    %v3857 = vsub.f32 %v3611, %v3856
    %3858 = vmatmul.mubr.f32.gmra.mxu0 %v3857
    %v3859 = vpop.f32.mrf.mxu0
    %v3860 = vadd.f32 %v3780, %v3859
    %v3861 = vpop.f32.mrf.mxu0
    %3862 = vdwg.mxu0
    %3863 = vmatprep.subr.mxu0 0.0
    %3864 = vmatpush1.msra.mxu0 0.0
    %3865 = vmatprep.subr.mxu0 0.0
    %3866 = vmatpush1.msra.mxu0 0.0
    %3867 = vmatprep.subr.mxu0 0.0
    %3868 = vmatpush1.msra.mxu0 0.0
    %3869 = vmatprep.subr.mxu0 0.0
    %3870 = vmatpush1.msra.mxu0 0.0
    %3871 = vmatprep.subr.mxu0 0.0
    %3872 = vmatpush1.msra.mxu0 0.0
    %3873 = vmatprep.subr.mxu0 0.0
    %3874 = vmatpush1.msra.mxu0 0.0
    %3875 = vmatprep.subr.mxu0 0.0
    %3876 = vmatpush1.msra.mxu0 0.0
    %3877 = vmatprep.subr.mxu0 0.0
    %3878 = vmatpush1.msra.mxu0 0.0
    %3879 = vmatprep.subr.mxu0 0.0
    %3880 = vmatpush1.msra.mxu0 0.0
    %3881 = vmatprep.subr.mxu0 0.0
    %3882 = vmatpush1.msra.mxu0 0.0
    %3883 = vmatprep.subr.mxu0 0.0
    %3884 = vmatpush1.msra.mxu0 0.0
    %3885 = vmatprep.subr.mxu0 0.0
    %3886 = vmatpush1.msra.mxu0 0.0
    %3887 = vmatprep.subr.mxu0 0.0
    %v3888 = vand.u32 %v170, 4294901760
    %3889 = vmatpush1.msra.mxu0 %v3888
    %3890 = vmatprep.subr.mxu0 0.0
    %v3891 = vand.u32 %v169, 4294901760
    %3892 = vmatpush1.msra.mxu0 %v3891
    %3893 = vmatprep.subr.mxu0 0.0
    %v3894 = vand.u32 %v168, 4294901760
    %3895 = vmatpush1.msra.mxu0 %v3894
    %3896 = vmatprep.subr.mxu0 0.0
    %v3897 = vand.u32 %v167, 4294901760
    %3898 = vmatpush1.msra.mxu0 %v3897
    %3899 = vmatprep.subr.mxu0 0.0
    %3900 = vmatpush2.msra.mxu0 0.0
    %3901 = vmatprep.subr.mxu0 0.0
    %3902 = vmatpush2.msra.mxu0 0.0
    %3903 = vmatprep.subr.mxu0 0.0
    %3904 = vmatpush2.msra.mxu0 0.0
    %3905 = vmatprep.subr.mxu0 0.0
    %3906 = vmatpush2.msra.mxu0 0.0
    %3907 = vmatprep.subr.mxu0 0.0
    %3908 = vmatpush2.msra.mxu0 0.0
    %3909 = vmatprep.subr.mxu0 0.0
    %3910 = vmatpush2.msra.mxu0 0.0
    %3911 = vmatprep.subr.mxu0 0.0
    %3912 = vmatpush2.msra.mxu0 0.0
    %3913 = vmatprep.subr.mxu0 0.0
    %3914 = vmatpush2.msra.mxu0 0.0
    %3915 = vmatprep.subr.mxu0 0.0
    %3916 = vmatpush2.msra.mxu0 0.0
    %3917 = vmatprep.subr.mxu0 0.0
    %3918 = vmatpush2.msra.mxu0 0.0
    %3919 = vmatprep.subr.mxu0 0.0
    %3920 = vmatpush2.msra.mxu0 0.0
    %3921 = vmatprep.subr.mxu0 0.0
    %3922 = vmatpush2.msra.mxu0 0.0
    %3923 = vmatprep.subr.mxu0 0.0
    %3924 = vmatpush2.msra.mxu0 0.0
    %3925 = vmatprep.subr.mxu0 0.0
    %3926 = vmatpush2.msra.mxu0 0.0
    %3927 = vmatprep.subr.mxu0 0.0
    %3928 = vmatpush2.msra.mxu0 0.0
    %3929 = vmatprep.subr.mxu0 0.0
    %3930 = vmatpush2.msra.mxu0 0.0
    %3931 = vmatprep.mubr.f32.mxu0 0.0
    %v3932 = vand.u32 %v3611, 4294901760
    %v3933 = vsub.f32 %v3611, %v3932
    %v3934 = vand.u32 %v3933, 4294901760
    %3935 = vmatmul.mubr.f32.gmra.mxu0 %v3934
    %v3936 = vpop.f32.mrf.mxu0
    %v3937 = vadd.f32 %v3860, %v3936
    %v3938 = vpop.f32.mrf.mxu0
    %3939 = vdwg.mxu0
    %3940 = vmatprep.subr.mxu0 0.0
    %3941 = vmatpush1.msra.mxu0 0.0
    %3942 = vmatprep.subr.mxu0 0.0
    %3943 = vmatpush1.msra.mxu0 0.0
    %3944 = vmatprep.subr.mxu0 0.0
    %3945 = vmatpush1.msra.mxu0 0.0
    %3946 = vmatprep.subr.mxu0 0.0
    %3947 = vmatpush1.msra.mxu0 0.0
    %3948 = vmatprep.subr.mxu0 0.0
    %3949 = vmatpush1.msra.mxu0 0.0
    %3950 = vmatprep.subr.mxu0 0.0
    %3951 = vmatpush1.msra.mxu0 0.0
    %3952 = vmatprep.subr.mxu0 0.0
    %3953 = vmatpush1.msra.mxu0 0.0
    %3954 = vmatprep.subr.mxu0 0.0
    %3955 = vmatpush1.msra.mxu0 0.0
    %3956 = vmatprep.subr.mxu0 0.0
    %3957 = vmatpush1.msra.mxu0 0.0
    %3958 = vmatprep.subr.mxu0 0.0
    %3959 = vmatpush1.msra.mxu0 0.0
    %3960 = vmatprep.subr.mxu0 0.0
    %3961 = vmatpush1.msra.mxu0 0.0
    %3962 = vmatprep.subr.mxu0 0.0
    %3963 = vmatpush1.msra.mxu0 0.0
    %3964 = vmatprep.subr.mxu0 0.0
    %v3965 = vand.u32 %v170, 4294901760
    %v3966 = vsub.f32 %v170, %v3965
    %v3967 = vand.u32 %v3966, 4294901760
    %3968 = vmatpush1.msra.mxu0 %v3967
    %3969 = vmatprep.subr.mxu0 0.0
    %v3970 = vand.u32 %v169, 4294901760
    %v3971 = vsub.f32 %v169, %v3970
    %v3972 = vand.u32 %v3971, 4294901760
    %3973 = vmatpush1.msra.mxu0 %v3972
    %3974 = vmatprep.subr.mxu0 0.0
    %v3975 = vand.u32 %v168, 4294901760
    %v3976 = vsub.f32 %v168, %v3975
    %v3977 = vand.u32 %v3976, 4294901760
    %3978 = vmatpush1.msra.mxu0 %v3977
    %3979 = vmatprep.subr.mxu0 0.0
    %v3980 = vand.u32 %v167, 4294901760
    %v3981 = vsub.f32 %v167, %v3980
    %v3982 = vand.u32 %v3981, 4294901760
    %3983 = vmatpush1.msra.mxu0 %v3982
    %3984 = vmatprep.subr.mxu0 0.0
    %3985 = vmatpush2.msra.mxu0 0.0
    %3986 = vmatprep.subr.mxu0 0.0
    %3987 = vmatpush2.msra.mxu0 0.0
    %3988 = vmatprep.subr.mxu0 0.0
    %3989 = vmatpush2.msra.mxu0 0.0
    %3990 = vmatprep.subr.mxu0 0.0
    %3991 = vmatpush2.msra.mxu0 0.0
    %3992 = vmatprep.subr.mxu0 0.0
    %3993 = vmatpush2.msra.mxu0 0.0
    %3994 = vmatprep.subr.mxu0 0.0
    %3995 = vmatpush2.msra.mxu0 0.0
    %3996 = vmatprep.subr.mxu0 0.0
    %3997 = vmatpush2.msra.mxu0 0.0
    %3998 = vmatprep.subr.mxu0 0.0
    %3999 = vmatpush2.msra.mxu0 0.0
    %4000 = vmatprep.subr.mxu0 0.0
    %4001 = vmatpush2.msra.mxu0 0.0
    %4002 = vmatprep.subr.mxu0 0.0
    %4003 = vmatpush2.msra.mxu0 0.0
    %4004 = vmatprep.subr.mxu0 0.0
    %4005 = vmatpush2.msra.mxu0 0.0
    %4006 = vmatprep.subr.mxu0 0.0
    %4007 = vmatpush2.msra.mxu0 0.0
    %4008 = vmatprep.subr.mxu0 0.0
    %4009 = vmatpush2.msra.mxu0 0.0
    %4010 = vmatprep.subr.mxu0 0.0
    %4011 = vmatpush2.msra.mxu0 0.0
    %4012 = vmatprep.subr.mxu0 0.0
    %4013 = vmatpush2.msra.mxu0 0.0
    %4014 = vmatprep.subr.mxu0 0.0
    %4015 = vmatpush2.msra.mxu0 0.0
    %4016 = vmatprep.mubr.f32.mxu0 0.0
    %v4017 = vand.u32 %v3611, 4294901760
    %4018 = vmatmul.mubr.f32.gmra.mxu0 %v4017
    %v4019 = vpop.f32.mrf.mxu0
    %v4020 = vadd.f32 %v3937, %v4019
    %v4021 = vpop.f32.mrf.mxu0
    %4022 = vdwg.mxu0
    %4023 = vmatprep.subr.mxu0 0.0
    %4024 = vmatpush1.msra.mxu0 0.0
    %4025 = vmatprep.subr.mxu0 0.0
    %4026 = vmatpush1.msra.mxu0 0.0
    %4027 = vmatprep.subr.mxu0 0.0
    %4028 = vmatpush1.msra.mxu0 0.0
    %4029 = vmatprep.subr.mxu0 0.0
    %4030 = vmatpush1.msra.mxu0 0.0
    %4031 = vmatprep.subr.mxu0 0.0
    %4032 = vmatpush1.msra.mxu0 0.0
    %4033 = vmatprep.subr.mxu0 0.0
    %4034 = vmatpush1.msra.mxu0 0.0
    %4035 = vmatprep.subr.mxu0 0.0
    %4036 = vmatpush1.msra.mxu0 0.0
    %4037 = vmatprep.subr.mxu0 0.0
    %4038 = vmatpush1.msra.mxu0 0.0
    %4039 = vmatprep.subr.mxu0 0.0
    %4040 = vmatpush1.msra.mxu0 0.0
    %4041 = vmatprep.subr.mxu0 0.0
    %4042 = vmatpush1.msra.mxu0 0.0
    %4043 = vmatprep.subr.mxu0 0.0
    %4044 = vmatpush1.msra.mxu0 0.0
    %4045 = vmatprep.subr.mxu0 0.0
    %4046 = vmatpush1.msra.mxu0 0.0
    %4047 = vmatprep.subr.mxu0 0.0
    %v4048 = vand.u32 %v170, 4294901760
    %4049 = vmatpush1.msra.mxu0 %v4048
    %4050 = vmatprep.subr.mxu0 0.0
    %v4051 = vand.u32 %v169, 4294901760
    %4052 = vmatpush1.msra.mxu0 %v4051
    %4053 = vmatprep.subr.mxu0 0.0
    %v4054 = vand.u32 %v168, 4294901760
    %4055 = vmatpush1.msra.mxu0 %v4054
    %4056 = vmatprep.subr.mxu0 0.0
    %v4057 = vand.u32 %v167, 4294901760
    %4058 = vmatpush1.msra.mxu0 %v4057
    %4059 = vmatprep.subr.mxu0 0.0
    %4060 = vmatpush2.msra.mxu0 0.0
    %4061 = vmatprep.subr.mxu0 0.0
    %4062 = vmatpush2.msra.mxu0 0.0
    %4063 = vmatprep.subr.mxu0 0.0
    %4064 = vmatpush2.msra.mxu0 0.0
    %4065 = vmatprep.subr.mxu0 0.0
    %4066 = vmatpush2.msra.mxu0 0.0
    %4067 = vmatprep.subr.mxu0 0.0
    %4068 = vmatpush2.msra.mxu0 0.0
    %4069 = vmatprep.subr.mxu0 0.0
    %4070 = vmatpush2.msra.mxu0 0.0
    %4071 = vmatprep.subr.mxu0 0.0
    %4072 = vmatpush2.msra.mxu0 0.0
    %4073 = vmatprep.subr.mxu0 0.0
    %4074 = vmatpush2.msra.mxu0 0.0
    %4075 = vmatprep.subr.mxu0 0.0
    %4076 = vmatpush2.msra.mxu0 0.0
    %4077 = vmatprep.subr.mxu0 0.0
    %4078 = vmatpush2.msra.mxu0 0.0
    %4079 = vmatprep.subr.mxu0 0.0
    %4080 = vmatpush2.msra.mxu0 0.0
    %4081 = vmatprep.subr.mxu0 0.0
    %4082 = vmatpush2.msra.mxu0 0.0
    %4083 = vmatprep.subr.mxu0 0.0
    %4084 = vmatpush2.msra.mxu0 0.0
    %4085 = vmatprep.subr.mxu0 0.0
    %4086 = vmatpush2.msra.mxu0 0.0
    %4087 = vmatprep.subr.mxu0 0.0
    %4088 = vmatpush2.msra.mxu0 0.0
    %4089 = vmatprep.subr.mxu0 0.0
    %4090 = vmatpush2.msra.mxu0 0.0
    %4091 = vmatprep.mubr.f32.mxu0 0.0
    %v4092 = vand.u32 %v3611, 4294901760
    %4093 = vmatmul.mubr.f32.gmra.mxu0 %v4092
    %v4094 = vpop.f32.mrf.mxu0
    %v4095 = vadd.f32 %v4020, %v4094
    %v4096 = vpop.f32.mrf.mxu0
    %4097 = vdwg.mxu0
    %v4098 = vadd.f32 %v3609, %v4095
    %v4099 = vtanh.pop %v4098
    %v4100 = vld [vmem:[%s3] sm:$0xff]
    %v4101 = vld [vmem:[%s3 + $0x8] sm:$0xff]
    %v4102 = vld [vmem:[%s3 + $0x10] sm:$0xff]
    %v4103 = vld [vmem:[%s3 + $0x18] sm:$0xff]
    %v4104 = vld [vmem:[%s3 + $0x20] sm:$0x1]
    %v4105 = vlaneseq
    %v4106 = vshrl.u32 %v4105, 7
    %v4107 = vsub.s32 0, %v4106
    %v4108 = vrot.slane %v4104, %v4107
    %v4110 = vsel %vm172, %v4099, 0
    %4112 = vmatprep.subr.mxu0 0.0
    %4113 = vmatpush1.msra.mxu0 0.0
    %4114 = vmatprep.subr.mxu0 0.0
    %4115 = vmatpush1.msra.mxu0 0.0
    %4116 = vmatprep.subr.mxu0 0.0
    %4117 = vmatpush1.msra.mxu0 0.0
    %4118 = vmatprep.subr.mxu0 0.0
    %4119 = vmatpush1.msra.mxu0 0.0
    %4120 = vmatprep.subr.mxu0 0.0
    %4121 = vmatpush1.msra.mxu0 0.0
    %4122 = vmatprep.subr.mxu0 0.0
    %4123 = vmatpush1.msra.mxu0 0.0
    %4124 = vmatprep.subr.mxu0 0.0
    %4125 = vmatpush1.msra.mxu0 0.0
    %4126 = vmatprep.subr.mxu0 0.0
    %4127 = vmatpush1.msra.mxu0 0.0
    %4128 = vmatprep.subr.mxu0 0.0
    %4129 = vmatpush1.msra.mxu0 0.0
    %4130 = vmatprep.subr.mxu0 0.0
    %4131 = vmatpush1.msra.mxu0 0.0
    %4132 = vmatprep.subr.mxu0 0.0
    %4133 = vmatpush1.msra.mxu0 0.0
    %4134 = vmatprep.subr.mxu0 0.0
    %4135 = vmatpush1.msra.mxu0 0.0
    %4136 = vmatprep.subr.mxu0 0.0
    %v4137 = vand.u32 %v4103, 4294901760
    %4138 = vmatpush1.msra.mxu0 %v4137
    %4139 = vmatprep.subr.mxu0 0.0
    %v4140 = vand.u32 %v4102, 4294901760
    %4141 = vmatpush1.msra.mxu0 %v4140
    %4142 = vmatprep.subr.mxu0 0.0
    %v4143 = vand.u32 %v4101, 4294901760
    %4144 = vmatpush1.msra.mxu0 %v4143
    %4145 = vmatprep.subr.mxu0 0.0
    %v4146 = vand.u32 %v4100, 4294901760
    %4147 = vmatpush1.msra.mxu0 %v4146
    %4148 = vmatprep.subr.mxu0 0.0
    %4149 = vmatpush2.msra.mxu0 0.0
    %4150 = vmatprep.subr.mxu0 0.0
    %4151 = vmatpush2.msra.mxu0 0.0
    %4152 = vmatprep.subr.mxu0 0.0
    %4153 = vmatpush2.msra.mxu0 0.0
    %4154 = vmatprep.subr.mxu0 0.0
    %4155 = vmatpush2.msra.mxu0 0.0
    %4156 = vmatprep.subr.mxu0 0.0
    %4157 = vmatpush2.msra.mxu0 0.0
    %4158 = vmatprep.subr.mxu0 0.0
    %4159 = vmatpush2.msra.mxu0 0.0
    %4160 = vmatprep.subr.mxu0 0.0
    %4161 = vmatpush2.msra.mxu0 0.0
    %4162 = vmatprep.subr.mxu0 0.0
    %4163 = vmatpush2.msra.mxu0 0.0
    %4164 = vmatprep.subr.mxu0 0.0
    %4165 = vmatpush2.msra.mxu0 0.0
    %4166 = vmatprep.subr.mxu0 0.0
    %4167 = vmatpush2.msra.mxu0 0.0
    %4168 = vmatprep.subr.mxu0 0.0
    %4169 = vmatpush2.msra.mxu0 0.0
    %4170 = vmatprep.subr.mxu0 0.0
    %4171 = vmatpush2.msra.mxu0 0.0
    %4172 = vmatprep.subr.mxu0 0.0
    %4173 = vmatpush2.msra.mxu0 0.0
    %4174 = vmatprep.subr.mxu0 0.0
    %4175 = vmatpush2.msra.mxu0 0.0
    %4176 = vmatprep.subr.mxu0 0.0
    %4177 = vmatpush2.msra.mxu0 0.0
    %4178 = vmatprep.subr.mxu0 0.0
    %4179 = vmatpush2.msra.mxu0 0.0
    %4180 = vmatprep.mubr.f32.mxu0 0.0
    %v4181 = vand.u32 %v4110, 4294901760
    %v4182 = vsub.f32 %v4110, %v4181
    %v4183 = vand.u32 %v4182, 4294901760
    %v4184 = vsub.f32 %v4182, %v4183
    %v4185 = vand.u32 %v4184, 4294901760
    %4186 = vmatmul.mubr.f32.gmra.mxu0 %v4185
    %v4187 = vpop.f32.mrf.mxu0
    %v4188 = vadd.f32 %v4108, %v4187
    %v4189 = vpop.f32.mrf.mxu0
    %4190 = vdwg.mxu0
    %4191 = vmatprep.subr.mxu0 0.0
    %4192 = vmatpush1.msra.mxu0 0.0
    %4193 = vmatprep.subr.mxu0 0.0
    %4194 = vmatpush1.msra.mxu0 0.0
    %4195 = vmatprep.subr.mxu0 0.0
    %4196 = vmatpush1.msra.mxu0 0.0
    %4197 = vmatprep.subr.mxu0 0.0
    %4198 = vmatpush1.msra.mxu0 0.0
    %4199 = vmatprep.subr.mxu0 0.0
    %4200 = vmatpush1.msra.mxu0 0.0
    %4201 = vmatprep.subr.mxu0 0.0
    %4202 = vmatpush1.msra.mxu0 0.0
    %4203 = vmatprep.subr.mxu0 0.0
    %4204 = vmatpush1.msra.mxu0 0.0
    %4205 = vmatprep.subr.mxu0 0.0
    %4206 = vmatpush1.msra.mxu0 0.0
    %4207 = vmatprep.subr.mxu0 0.0
    %4208 = vmatpush1.msra.mxu0 0.0
    %4209 = vmatprep.subr.mxu0 0.0
    %4210 = vmatpush1.msra.mxu0 0.0
    %4211 = vmatprep.subr.mxu0 0.0
    %4212 = vmatpush1.msra.mxu0 0.0
    %4213 = vmatprep.subr.mxu0 0.0
    %4214 = vmatpush1.msra.mxu0 0.0
    %4215 = vmatprep.subr.mxu0 0.0
    %v4216 = vand.u32 %v4103, 4294901760
    %v4217 = vsub.f32 %v4103, %v4216
    %v4218 = vand.u32 %v4217, 4294901760
    %v4219 = vsub.f32 %v4217, %v4218
    %v4220 = vand.u32 %v4219, 4294901760
    %4221 = vmatpush1.msra.mxu0 %v4220
    %4222 = vmatprep.subr.mxu0 0.0
    %v4223 = vand.u32 %v4102, 4294901760
    %v4224 = vsub.f32 %v4102, %v4223
    %v4225 = vand.u32 %v4224, 4294901760
    %v4226 = vsub.f32 %v4224, %v4225
    %v4227 = vand.u32 %v4226, 4294901760
    %4228 = vmatpush1.msra.mxu0 %v4227
    %4229 = vmatprep.subr.mxu0 0.0
    %v4230 = vand.u32 %v4101, 4294901760
    %v4231 = vsub.f32 %v4101, %v4230
    %v4232 = vand.u32 %v4231, 4294901760
    %v4233 = vsub.f32 %v4231, %v4232
    %v4234 = vand.u32 %v4233, 4294901760
    %4235 = vmatpush1.msra.mxu0 %v4234
    %4236 = vmatprep.subr.mxu0 0.0
    %v4237 = vand.u32 %v4100, 4294901760
    %v4238 = vsub.f32 %v4100, %v4237
    %v4239 = vand.u32 %v4238, 4294901760
    %v4240 = vsub.f32 %v4238, %v4239
    %v4241 = vand.u32 %v4240, 4294901760
    %4242 = vmatpush1.msra.mxu0 %v4241
    %4243 = vmatprep.subr.mxu0 0.0
    %4244 = vmatpush2.msra.mxu0 0.0
    %4245 = vmatprep.subr.mxu0 0.0
    %4246 = vmatpush2.msra.mxu0 0.0
    %4247 = vmatprep.subr.mxu0 0.0
    %4248 = vmatpush2.msra.mxu0 0.0
    %4249 = vmatprep.subr.mxu0 0.0
    %4250 = vmatpush2.msra.mxu0 0.0
    %4251 = vmatprep.subr.mxu0 0.0
    %4252 = vmatpush2.msra.mxu0 0.0
    %4253 = vmatprep.subr.mxu0 0.0
    %4254 = vmatpush2.msra.mxu0 0.0
    %4255 = vmatprep.subr.mxu0 0.0
    %4256 = vmatpush2.msra.mxu0 0.0
    %4257 = vmatprep.subr.mxu0 0.0
    %4258 = vmatpush2.msra.mxu0 0.0
    %4259 = vmatprep.subr.mxu0 0.0
    %4260 = vmatpush2.msra.mxu0 0.0
    %4261 = vmatprep.subr.mxu0 0.0
    %4262 = vmatpush2.msra.mxu0 0.0
    %4263 = vmatprep.subr.mxu0 0.0
    %4264 = vmatpush2.msra.mxu0 0.0
    %4265 = vmatprep.subr.mxu0 0.0
    %4266 = vmatpush2.msra.mxu0 0.0
    %4267 = vmatprep.subr.mxu0 0.0
    %4268 = vmatpush2.msra.mxu0 0.0
    %4269 = vmatprep.subr.mxu0 0.0
    %4270 = vmatpush2.msra.mxu0 0.0
    %4271 = vmatprep.subr.mxu0 0.0
    %4272 = vmatpush2.msra.mxu0 0.0
    %4273 = vmatprep.subr.mxu0 0.0
    %4274 = vmatpush2.msra.mxu0 0.0
    %4275 = vmatprep.mubr.f32.mxu0 0.0
    %v4276 = vand.u32 %v4110, 4294901760
    %4277 = vmatmul.mubr.f32.gmra.mxu0 %v4276
    %v4278 = vpop.f32.mrf.mxu0
    %v4279 = vadd.f32 %v4188, %v4278
    %v4280 = vpop.f32.mrf.mxu0
    %4281 = vdwg.mxu0
    %4282 = vmatprep.subr.mxu0 0.0
    %4283 = vmatpush1.msra.mxu0 0.0
    %4284 = vmatprep.subr.mxu0 0.0
    %4285 = vmatpush1.msra.mxu0 0.0
    %4286 = vmatprep.subr.mxu0 0.0
    %4287 = vmatpush1.msra.mxu0 0.0
    %4288 = vmatprep.subr.mxu0 0.0
    %4289 = vmatpush1.msra.mxu0 0.0
    %4290 = vmatprep.subr.mxu0 0.0
    %4291 = vmatpush1.msra.mxu0 0.0
    %4292 = vmatprep.subr.mxu0 0.0
    %4293 = vmatpush1.msra.mxu0 0.0
    %4294 = vmatprep.subr.mxu0 0.0
    %4295 = vmatpush1.msra.mxu0 0.0
    %4296 = vmatprep.subr.mxu0 0.0
    %4297 = vmatpush1.msra.mxu0 0.0
    %4298 = vmatprep.subr.mxu0 0.0
    %4299 = vmatpush1.msra.mxu0 0.0
    %4300 = vmatprep.subr.mxu0 0.0
    %4301 = vmatpush1.msra.mxu0 0.0
    %4302 = vmatprep.subr.mxu0 0.0
    %4303 = vmatpush1.msra.mxu0 0.0
    %4304 = vmatprep.subr.mxu0 0.0
    %4305 = vmatpush1.msra.mxu0 0.0
    %4306 = vmatprep.subr.mxu0 0.0
    %v4307 = vand.u32 %v4103, 4294901760
    %v4308 = vsub.f32 %v4103, %v4307
    %4309 = vmatpush1.msra.mxu0 %v4308
    %4310 = vmatprep.subr.mxu0 0.0
    %v4311 = vand.u32 %v4102, 4294901760
    %v4312 = vsub.f32 %v4102, %v4311
    %4313 = vmatpush1.msra.mxu0 %v4312
    %4314 = vmatprep.subr.mxu0 0.0
    %v4315 = vand.u32 %v4101, 4294901760
    %v4316 = vsub.f32 %v4101, %v4315
    %4317 = vmatpush1.msra.mxu0 %v4316
    %4318 = vmatprep.subr.mxu0 0.0
    %v4319 = vand.u32 %v4100, 4294901760
    %v4320 = vsub.f32 %v4100, %v4319
    %4321 = vmatpush1.msra.mxu0 %v4320
    %4322 = vmatprep.subr.mxu0 0.0
    %4323 = vmatpush2.msra.mxu0 0.0
    %4324 = vmatprep.subr.mxu0 0.0
    %4325 = vmatpush2.msra.mxu0 0.0
    %4326 = vmatprep.subr.mxu0 0.0
    %4327 = vmatpush2.msra.mxu0 0.0
    %4328 = vmatprep.subr.mxu0 0.0
    %4329 = vmatpush2.msra.mxu0 0.0
    %4330 = vmatprep.subr.mxu0 0.0
    %4331 = vmatpush2.msra.mxu0 0.0
    %4332 = vmatprep.subr.mxu0 0.0
    %4333 = vmatpush2.msra.mxu0 0.0
    %4334 = vmatprep.subr.mxu0 0.0
    %4335 = vmatpush2.msra.mxu0 0.0
    %4336 = vmatprep.subr.mxu0 0.0
    %4337 = vmatpush2.msra.mxu0 0.0
    %4338 = vmatprep.subr.mxu0 0.0
    %4339 = vmatpush2.msra.mxu0 0.0
    %4340 = vmatprep.subr.mxu0 0.0
    %4341 = vmatpush2.msra.mxu0 0.0
    %4342 = vmatprep.subr.mxu0 0.0
    %4343 = vmatpush2.msra.mxu0 0.0
    %4344 = vmatprep.subr.mxu0 0.0
    %4345 = vmatpush2.msra.mxu0 0.0
    %4346 = vmatprep.subr.mxu0 0.0
    %4347 = vmatpush2.msra.mxu0 0.0
    %4348 = vmatprep.subr.mxu0 0.0
    %4349 = vmatpush2.msra.mxu0 0.0
    %4350 = vmatprep.subr.mxu0 0.0
    %4351 = vmatpush2.msra.mxu0 0.0
    %4352 = vmatprep.subr.mxu0 0.0
    %4353 = vmatpush2.msra.mxu0 0.0
    %4354 = vmatprep.mubr.f32.mxu0 0.0
    %v4355 = vand.u32 %v4110, 4294901760
    %v4356 = vsub.f32 %v4110, %v4355
    %4357 = vmatmul.mubr.f32.gmra.mxu0 %v4356
    %v4358 = vpop.f32.mrf.mxu0
    %v4359 = vadd.f32 %v4279, %v4358
    %v4360 = vpop.f32.mrf.mxu0
    %4361 = vdwg.mxu0
    %4362 = vmatprep.subr.mxu0 0.0
    %4363 = vmatpush1.msra.mxu0 0.0
    %4364 = vmatprep.subr.mxu0 0.0
    %4365 = vmatpush1.msra.mxu0 0.0
    %4366 = vmatprep.subr.mxu0 0.0
    %4367 = vmatpush1.msra.mxu0 0.0
    %4368 = vmatprep.subr.mxu0 0.0
    %4369 = vmatpush1.msra.mxu0 0.0
    %4370 = vmatprep.subr.mxu0 0.0
    %4371 = vmatpush1.msra.mxu0 0.0
    %4372 = vmatprep.subr.mxu0 0.0
    %4373 = vmatpush1.msra.mxu0 0.0
    %4374 = vmatprep.subr.mxu0 0.0
    %4375 = vmatpush1.msra.mxu0 0.0
    %4376 = vmatprep.subr.mxu0 0.0
    %4377 = vmatpush1.msra.mxu0 0.0
    %4378 = vmatprep.subr.mxu0 0.0
    %4379 = vmatpush1.msra.mxu0 0.0
    %4380 = vmatprep.subr.mxu0 0.0
    %4381 = vmatpush1.msra.mxu0 0.0
    %4382 = vmatprep.subr.mxu0 0.0
    %4383 = vmatpush1.msra.mxu0 0.0
    %4384 = vmatprep.subr.mxu0 0.0
    %4385 = vmatpush1.msra.mxu0 0.0
    %4386 = vmatprep.subr.mxu0 0.0
    %v4387 = vand.u32 %v4103, 4294901760
    %4388 = vmatpush1.msra.mxu0 %v4387
    %4389 = vmatprep.subr.mxu0 0.0
    %v4390 = vand.u32 %v4102, 4294901760
    %4391 = vmatpush1.msra.mxu0 %v4390
    %4392 = vmatprep.subr.mxu0 0.0
    %v4393 = vand.u32 %v4101, 4294901760
    %4394 = vmatpush1.msra.mxu0 %v4393
    %4395 = vmatprep.subr.mxu0 0.0
    %v4396 = vand.u32 %v4100, 4294901760
    %4397 = vmatpush1.msra.mxu0 %v4396
    %4398 = vmatprep.subr.mxu0 0.0
    %4399 = vmatpush2.msra.mxu0 0.0
    %4400 = vmatprep.subr.mxu0 0.0
    %4401 = vmatpush2.msra.mxu0 0.0
    %4402 = vmatprep.subr.mxu0 0.0
    %4403 = vmatpush2.msra.mxu0 0.0
    %4404 = vmatprep.subr.mxu0 0.0
    %4405 = vmatpush2.msra.mxu0 0.0
    %4406 = vmatprep.subr.mxu0 0.0
    %4407 = vmatpush2.msra.mxu0 0.0
    %4408 = vmatprep.subr.mxu0 0.0
    %4409 = vmatpush2.msra.mxu0 0.0
    %4410 = vmatprep.subr.mxu0 0.0
    %4411 = vmatpush2.msra.mxu0 0.0
    %4412 = vmatprep.subr.mxu0 0.0
    %4413 = vmatpush2.msra.mxu0 0.0
    %4414 = vmatprep.subr.mxu0 0.0
    %4415 = vmatpush2.msra.mxu0 0.0
    %4416 = vmatprep.subr.mxu0 0.0
    %4417 = vmatpush2.msra.mxu0 0.0
    %4418 = vmatprep.subr.mxu0 0.0
    %4419 = vmatpush2.msra.mxu0 0.0
    %4420 = vmatprep.subr.mxu0 0.0
    %4421 = vmatpush2.msra.mxu0 0.0
    %4422 = vmatprep.subr.mxu0 0.0
    %4423 = vmatpush2.msra.mxu0 0.0
    %4424 = vmatprep.subr.mxu0 0.0
    %4425 = vmatpush2.msra.mxu0 0.0
    %4426 = vmatprep.subr.mxu0 0.0
    %4427 = vmatpush2.msra.mxu0 0.0
    %4428 = vmatprep.subr.mxu0 0.0
    %4429 = vmatpush2.msra.mxu0 0.0
    %4430 = vmatprep.mubr.f32.mxu0 0.0
    %v4431 = vand.u32 %v4110, 4294901760
    %v4432 = vsub.f32 %v4110, %v4431
    %v4433 = vand.u32 %v4432, 4294901760
    %4434 = vmatmul.mubr.f32.gmra.mxu0 %v4433
    %v4435 = vpop.f32.mrf.mxu0
    %v4436 = vadd.f32 %v4359, %v4435
    %v4437 = vpop.f32.mrf.mxu0
    %4438 = vdwg.mxu0
    %4439 = vmatprep.subr.mxu0 0.0
    %4440 = vmatpush1.msra.mxu0 0.0
    %4441 = vmatprep.subr.mxu0 0.0
    %4442 = vmatpush1.msra.mxu0 0.0
    %4443 = vmatprep.subr.mxu0 0.0
    %4444 = vmatpush1.msra.mxu0 0.0
    %4445 = vmatprep.subr.mxu0 0.0
    %4446 = vmatpush1.msra.mxu0 0.0
    %4447 = vmatprep.subr.mxu0 0.0
    %4448 = vmatpush1.msra.mxu0 0.0
    %4449 = vmatprep.subr.mxu0 0.0
    %4450 = vmatpush1.msra.mxu0 0.0
    %4451 = vmatprep.subr.mxu0 0.0
    %4452 = vmatpush1.msra.mxu0 0.0
    %4453 = vmatprep.subr.mxu0 0.0
    %4454 = vmatpush1.msra.mxu0 0.0
    %4455 = vmatprep.subr.mxu0 0.0
    %4456 = vmatpush1.msra.mxu0 0.0
    %4457 = vmatprep.subr.mxu0 0.0
    %4458 = vmatpush1.msra.mxu0 0.0
    %4459 = vmatprep.subr.mxu0 0.0
    %4460 = vmatpush1.msra.mxu0 0.0
    %4461 = vmatprep.subr.mxu0 0.0
    %4462 = vmatpush1.msra.mxu0 0.0
    %4463 = vmatprep.subr.mxu0 0.0
    %v4464 = vand.u32 %v4103, 4294901760
    %v4465 = vsub.f32 %v4103, %v4464
    %v4466 = vand.u32 %v4465, 4294901760
    %4467 = vmatpush1.msra.mxu0 %v4466
    %4468 = vmatprep.subr.mxu0 0.0
    %v4469 = vand.u32 %v4102, 4294901760
    %v4470 = vsub.f32 %v4102, %v4469
    %v4471 = vand.u32 %v4470, 4294901760
    %4472 = vmatpush1.msra.mxu0 %v4471
    %4473 = vmatprep.subr.mxu0 0.0
    %v4474 = vand.u32 %v4101, 4294901760
    %v4475 = vsub.f32 %v4101, %v4474
    %v4476 = vand.u32 %v4475, 4294901760
    %4477 = vmatpush1.msra.mxu0 %v4476
    %4478 = vmatprep.subr.mxu0 0.0
    %v4479 = vand.u32 %v4100, 4294901760
    %v4480 = vsub.f32 %v4100, %v4479
    %v4481 = vand.u32 %v4480, 4294901760
    %4482 = vmatpush1.msra.mxu0 %v4481
    %4483 = vmatprep.subr.mxu0 0.0
    %4484 = vmatpush2.msra.mxu0 0.0
    %4485 = vmatprep.subr.mxu0 0.0
    %4486 = vmatpush2.msra.mxu0 0.0
    %4487 = vmatprep.subr.mxu0 0.0
    %4488 = vmatpush2.msra.mxu0 0.0
    %4489 = vmatprep.subr.mxu0 0.0
    %4490 = vmatpush2.msra.mxu0 0.0
    %4491 = vmatprep.subr.mxu0 0.0
    %4492 = vmatpush2.msra.mxu0 0.0
    %4493 = vmatprep.subr.mxu0 0.0
    %4494 = vmatpush2.msra.mxu0 0.0
    %4495 = vmatprep.subr.mxu0 0.0
    %4496 = vmatpush2.msra.mxu0 0.0
    %4497 = vmatprep.subr.mxu0 0.0
    %4498 = vmatpush2.msra.mxu0 0.0
    %4499 = vmatprep.subr.mxu0 0.0
    %4500 = vmatpush2.msra.mxu0 0.0
    %4501 = vmatprep.subr.mxu0 0.0
    %4502 = vmatpush2.msra.mxu0 0.0
    %4503 = vmatprep.subr.mxu0 0.0
    %4504 = vmatpush2.msra.mxu0 0.0
    %4505 = vmatprep.subr.mxu0 0.0
    %4506 = vmatpush2.msra.mxu0 0.0
    %4507 = vmatprep.subr.mxu0 0.0
    %4508 = vmatpush2.msra.mxu0 0.0
    %4509 = vmatprep.subr.mxu0 0.0
    %4510 = vmatpush2.msra.mxu0 0.0
    %4511 = vmatprep.subr.mxu0 0.0
    %4512 = vmatpush2.msra.mxu0 0.0
    %4513 = vmatprep.subr.mxu0 0.0
    %4514 = vmatpush2.msra.mxu0 0.0
    %4515 = vmatprep.mubr.f32.mxu0 0.0
    %v4516 = vand.u32 %v4110, 4294901760
    %4517 = vmatmul.mubr.f32.gmra.mxu0 %v4516
    %v4518 = vpop.f32.mrf.mxu0
    %v4519 = vadd.f32 %v4436, %v4518
    %v4520 = vpop.f32.mrf.mxu0
    %4521 = vdwg.mxu0
    %4522 = vmatprep.subr.mxu0 0.0
    %4523 = vmatpush1.msra.mxu0 0.0
    %4524 = vmatprep.subr.mxu0 0.0
    %4525 = vmatpush1.msra.mxu0 0.0
    %4526 = vmatprep.subr.mxu0 0.0
    %4527 = vmatpush1.msra.mxu0 0.0
    %4528 = vmatprep.subr.mxu0 0.0
    %4529 = vmatpush1.msra.mxu0 0.0
    %4530 = vmatprep.subr.mxu0 0.0
    %4531 = vmatpush1.msra.mxu0 0.0
    %4532 = vmatprep.subr.mxu0 0.0
    %4533 = vmatpush1.msra.mxu0 0.0
    %4534 = vmatprep.subr.mxu0 0.0
    %4535 = vmatpush1.msra.mxu0 0.0
    %4536 = vmatprep.subr.mxu0 0.0
    %4537 = vmatpush1.msra.mxu0 0.0
    %4538 = vmatprep.subr.mxu0 0.0
    %4539 = vmatpush1.msra.mxu0 0.0
    %4540 = vmatprep.subr.mxu0 0.0
    %4541 = vmatpush1.msra.mxu0 0.0
    %4542 = vmatprep.subr.mxu0 0.0
    %4543 = vmatpush1.msra.mxu0 0.0
    %4544 = vmatprep.subr.mxu0 0.0
    %4545 = vmatpush1.msra.mxu0 0.0
    %4546 = vmatprep.subr.mxu0 0.0
    %v4547 = vand.u32 %v4103, 4294901760
    %4548 = vmatpush1.msra.mxu0 %v4547
    %4549 = vmatprep.subr.mxu0 0.0
    %v4550 = vand.u32 %v4102, 4294901760
    %4551 = vmatpush1.msra.mxu0 %v4550
    %4552 = vmatprep.subr.mxu0 0.0
    %v4553 = vand.u32 %v4101, 4294901760
    %4554 = vmatpush1.msra.mxu0 %v4553
    %4555 = vmatprep.subr.mxu0 0.0
    %v4556 = vand.u32 %v4100, 4294901760
    %4557 = vmatpush1.msra.mxu0 %v4556
    %4558 = vmatprep.subr.mxu0 0.0
    %4559 = vmatpush2.msra.mxu0 0.0
    %4560 = vmatprep.subr.mxu0 0.0
    %4561 = vmatpush2.msra.mxu0 0.0
    %4562 = vmatprep.subr.mxu0 0.0
    %4563 = vmatpush2.msra.mxu0 0.0
    %4564 = vmatprep.subr.mxu0 0.0
    %4565 = vmatpush2.msra.mxu0 0.0
    %4566 = vmatprep.subr.mxu0 0.0
    %4567 = vmatpush2.msra.mxu0 0.0
    %4568 = vmatprep.subr.mxu0 0.0
    %4569 = vmatpush2.msra.mxu0 0.0
    %4570 = vmatprep.subr.mxu0 0.0
    %4571 = vmatpush2.msra.mxu0 0.0
    %4572 = vmatprep.subr.mxu0 0.0
    %4573 = vmatpush2.msra.mxu0 0.0
    %4574 = vmatprep.subr.mxu0 0.0
    %4575 = vmatpush2.msra.mxu0 0.0
    %4576 = vmatprep.subr.mxu0 0.0
    %4577 = vmatpush2.msra.mxu0 0.0
    %4578 = vmatprep.subr.mxu0 0.0
    %4579 = vmatpush2.msra.mxu0 0.0
    %4580 = vmatprep.subr.mxu0 0.0
    %4581 = vmatpush2.msra.mxu0 0.0
    %4582 = vmatprep.subr.mxu0 0.0
    %4583 = vmatpush2.msra.mxu0 0.0
    %4584 = vmatprep.subr.mxu0 0.0
    %4585 = vmatpush2.msra.mxu0 0.0
    %4586 = vmatprep.subr.mxu0 0.0
    %4587 = vmatpush2.msra.mxu0 0.0
    %4588 = vmatprep.subr.mxu0 0.0
    %4589 = vmatpush2.msra.mxu0 0.0
    %4590 = vmatprep.mubr.f32.mxu0 0.0
    %v4591 = vand.u32 %v4110, 4294901760
    %4592 = vmatmul.mubr.f32.gmra.mxu0 %v4591
    %v4593 = vpop.f32.mrf.mxu0
    %v4594 = vadd.f32 %v4519, %v4593
    %v4595 = vpop.f32.mrf.mxu0
    %4596 = vdwg.mxu0
    %vm4597 = vcmask 25600
    %4598 = vst.msk [vmem:[#allocation6] sm:$0x3] %vm4597, %v4594
    // Predicated region
    $region22: #{tpu_custom_call.1} parent=1 // pred_check
      _
    $region23: #{tpu_custom_call.1} parent=1 // pred_check_branch
      %4600 = sbr.rel (0) target = $region25
    $region24: #{tpu_custom_call.1} parent=1 // pred_region
      %s4602 = ssub.s32 32, 32
      %4603 = vsyncadd [#allocation4], %s4602
      %s4605 = sshll.u32 [#allocation6], 4
      %s4606 = int_to_ptr.vmem [resolvable:$true] %s4605
      %4608 = dma.vmem_to_hbm [thread:$0]  %s4606, 32, %s4, [#allocation4]
    $region25: #{tpu_custom_call.1} parent=1 // pred_fallthru
      _
    // Predicated region
    $region26: #{tpu_custom_call.1} parent=1 // pred_check
      _
    $region27: #{tpu_custom_call.1} parent=1 // pred_check_branch
      %4610 = sbr.rel (0) target = $region29
    $region28: #{tpu_custom_call.1} parent=1 // pred_region
      %4611 = dma.done [#allocation4], 32
    $region29: #{tpu_custom_call.1} parent=1 // pred_fallthru
      _
    %4612 = vsyncpa [#allocation4], 1
    %4613 = vsyncpa [#allocation5], 1

</llo_original>
